<compile_context>
chip_gen: v6e
topology: v6e:2x2x1
jax: 0.10.0
libtpu: 0.0.40
codegen_flags: <defaults>
</compile_context>

<pallas_src>
import jax
import jax.numpy as jnp
from jax.experimental import pallas as pl
from jax.experimental.pallas import tpu as pltpu

# ---- model configuration (small, consistent with the torch module) ----------
OBS_DIM = 37            # obs_dim
HIDDEN_LAYER = 64       # encoder width
INPUT_SIZE = HIDDEN_LAYER   # linear_ih consumes the encoder output
HIDDEN_SIZE = 32        # hidden_size
HYPER_HIDDEN = 32       # hyper_hidden_size
HYPER_EMBED = 8         # hyper_embedding_size
NUM_CHARS = 16
BATCH = 8               # >= 8 fills one full sublane set per vreg
SEQ_LEN = 8             # recurrence steps executed inside one pallas_call
EPS = 1e-6

# hyper-vector order used for the stacked projection / block-diag scale matmul
_HYPER_ORDER = ('ix', 'fx', 'gx', 'ox', 'ih', 'fh', 'gh', 'oh', 'ib', 'fb', 'gb', 'ob')


# ---- pure-JAX layer norm (exact, used by the reference) ----------------------
def _layer_norm_ref(v, gamma, beta):
    """torch LayerNorm from the module: unbiased std, eps added to std."""
    mean = jnp.mean(v, axis=-1, keepdims=True)
    var = jnp.sum((v - mean) ** 2, axis=-1, keepdims=True) / (v.shape[-1] - 1)
    std = jnp.sqrt(var)
    return gamma * (v - mean) / (std + EPS) + beta


# ------------------------------------------------------------------------------
# Pallas kernel: one time step per grid iteration, state carried in VMEM scratch
# ------------------------------------------------------------------------------
def hyper_lstm_kernel(
    # inputs (weights/consts use constant index maps -> resident in VMEM)
    x_ref, h0_ref, c0_ref, hyh0_ref, hyc0_ref,
    w1_ref, b1_ref, w2_ref, b2_ref, w3_ref, b3_ref,
    wxe_ref, wh_ref, whyhy_ref, bhy_ref,
    whyz_ref, bhyz_ref,
    bias_ref, fplus_ref,
    g_ifgo_ref, be_ifgo_ref, g_c_ref, be_c_ref,
    wout_ref, bout_ref,
    # outputs
    out_ref, nh_ref, nc_ref, nhyh_ref, nhyc_ref,
    # scratch: recurrent state, persists across the time grid
    h_s, c_s, hyh_s, hyc_s,
):
    f32 = jnp.float32
    H = HIDDEN_SIZE
    HH = HYPER_HIDDEN
    G4 = 4 * HH
    t = pl.program_id(0)

    def mm(a, b):
        return jnp.dot(a, b, preferred_element_type=f32)

    def ln(v, gamma, beta):
        # torch LayerNorm: unbiased std, eps added to the std; divide on the EUP.
        mean = jnp.mean(v, axis=-1, keepdims=True)
        var = jnp.sum((v - mean) ** 2, axis=-1, keepdims=True) * (1.0 / (v.shape[-1] - 1))
        inv = pl.reciprocal(jnp.sqrt(var) + EPS, approx=True)
        return gamma * (v - mean) * inv + beta

    # ---- initialize the recurrent state on the first time step ---------------
    @pl.when(t == 0)
    def _():
        h_s[...] = h0_ref[...]
        c_s[...] = c0_ref[...]
        hyh_s[...] = hyh0_ref[...]
        hyc_s[...] = hyc0_ref[...]

    x = x_ref[...]          # (B, OBS_DIM) for this step (leading T dim squeezed)
    h = h_s[...]
    c = c_s[...]
    hy_h = hyh_s[...]
    hy_c = hyc_s[...]

    # ---- encoder MLP ----------------------------------------------------------
    e = jnp.maximum(mm(x, w1_ref[...]) + b1_ref[...], 0.0)
    e = jnp.maximum(mm(e, w2_ref[...]) + b2_ref[...], 0.0)
    xe = mm(e, w3_ref[...]) + b3_ref[...]                      # (B, INPUT_SIZE)

    # ---- fused shared-LHS matmuls --------------------------------------------
    # wxe = [ W_ih(hyper, x-part) | linear_ih ]  -> one (B, 256) matmul for xe
    # wh  = [ W_ih(hyper, h-part) | linear_hh ]  -> one (B, 256) matmul for h
    xz = mm(xe, wxe_ref[...])                                   # (B, 4*HH + 4*H)
    hz = mm(h, wh_ref[...])                                     # (B, 4*HH + 4*H)
    hyper_gates = xz[:, :G4] + hz[:, :G4] + mm(hy_h, whyhy_ref[...]) + bhy_ref[...]
    xh = xz[:, G4:]                                             # (B, 4H) main x gates
    hh = hz[:, G4:]                                             # (B, 4H) main h gates

    # ---- hyper LSTM cell on cat([x_enc, h]) ----------------------------------
    hi = hyper_gates[:, 0 * HH:1 * HH]
    hf = hyper_gates[:, 1 * HH:2 * HH]
    hg = hyper_gates[:, 2 * HH:3 * HH]
    ho = hyper_gates[:, 3 * HH:4 * HH]
    new_hy_c = jax.nn.sigmoid(hf) * hy_c + jax.nn.sigmoid(hi) * jnp.tanh(hg)
    new_hy_h = jax.nn.sigmoid(ho) * jnp.tanh(new_hy_c)

    # ---- hyper modulation: proj ∘ scale pre-fused into one linear map --------
    z = mm(new_hy_h, whyz_ref[...]) + bhyz_ref[...]             # (B, 12*H)

    # Three 128-lane-aligned multiplies instead of 12 unaligned 32-wide slices;
    # fplus is the precomputed (+1 on forget-gate lanes) constant row.
    pre = (xh * z[:, 0 * 4 * H:1 * 4 * H]
           + hh * z[:, 1 * 4 * H:2 * 4 * H]
           + bias_ref[...] * z[:, 2 * 4 * H:3 * 4 * H]
           + fplus_ref[...])                                    # (B, 4H) = [i|f|g|o]

    # ---- ParallelLayerNorm over (i, f, g, o) ---------------------------------
    g_ifgo = g_ifgo_ref[...]
    be_ifgo = be_ifgo_ref[...]
    i_g = ln(pre[:, 0 * H:1 * H], g_ifgo[0:1, :], be_ifgo[0:1, :])
    f_g = ln(pre[:, 1 * H:2 * H], g_ifgo[1:2, :], be_ifgo[1:2, :])
    g_g = ln(pre[:, 2 * H:3 * H], g_ifgo[2:3, :], be_ifgo[2:3, :])
    o_g = ln(pre[:, 3 * H:4 * H], g_ifgo[3:4, :], be_ifgo[3:4, :])

    # ---- cell / hidden update -------------------------------------------------
    new_c = c * jax.nn.sigmoid(f_g) + jnp.tanh(g_g) * jax.nn.sigmoid(i_g)
    new_c = ln(new_c, g_c_ref[...], be_c_ref[...])
    new_h = jnp.tanh(new_c) * jax.nn.sigmoid(o_g)

    # ---- output projection -----------------------------------------------------
    out_ref[...] = mm(new_h, wout_ref[...]) + bout_ref[...]

    # carry the recurrent state to the next time step
    h_s[...] = new_h
    c_s[...] = new_c
    hyh_s[...] = new_hy_h
    hyc_s[...] = new_hy_c

    # final states written back once, at the last step
    @pl.when(t == pl.num_programs(0) - 1)
    def _():
        nh_ref[...] = new_h
        nc_ref[...] = new_c
        nhyh_ref[...] = new_hy_h
        nhyc_ref[...] = new_hy_c


# ------------------------------------------------------------------------------
# Parameters
# ------------------------------------------------------------------------------
def init_params(key):
    """Deterministic synthetic parameters (shapes follow HyperLSTMCell.__init__)."""
    ks = iter(jax.random.split(key, 64))

    def w(shape, scale=0.1):
        return (scale * jax.random.normal(next(ks), shape)).astype(jnp.float32)

    p = {}
    # encoder: Linear(obs,64) ReLU Linear(64,64) ReLU Linear(64,64)
    p['w1'] = w((OBS_DIM, HIDDEN_LAYER))
    p['b1'] = w((1, HIDDEN_LAYER), 0.01)
    p['w2'] = w((HIDDEN_LAYER, HIDDEN_LAYER))
    p['b2'] = w((1, HIDDEN_LAYER), 0.01)
    p['w3'] = w((HIDDEN_LAYER, HIDDEN_LAYER))
    p['b3'] = w((1, HIDDEN_LAYER), 0.01)
    # hyper LSTM cell: input = concat([x_enc, h]) -> 4*HYPER_HIDDEN
    p['wxh_hy'] = w((INPUT_SIZE, 4 * HYPER_HIDDEN))                  # x part of W_ih
    p['whh_hy'] = w((HIDDEN_SIZE + HYPER_HIDDEN, 4 * HYPER_HIDDEN))  # [h part of W_ih ; W_hh]
    p['bhy'] = w((1, 4 * HYPER_HIDDEN), 0.01)
    # main linear_ih / linear_hh (bias-free)
    p['wih'] = w((INPUT_SIZE, 4 * HIDDEN_SIZE))
    p['whh'] = w((HIDDEN_SIZE, 4 * HIDDEN_SIZE))
    # hyper projections (12 of them, biases only for the *h/*x ones) + scales
    wproj, bproj, wscale = [], [], []
    for name in _HYPER_ORDER:
        wproj.append(w((HYPER_HIDDEN, HYPER_EMBED)))
        if name.endswith('b'):
            bproj.append(jnp.zeros((HYPER_EMBED,), jnp.float32))     # proj_b has no bias
        else:
            bproj.append(w((HYPER_EMBED,), 0.1).reshape(HYPER_EMBED))
        wscale.append(w((HYPER_EMBED, HIDDEN_SIZE)))
    p['wproj'] = jnp.concatenate(wproj, axis=1)                      # (HH, 12*emb)
    p['bproj'] = jnp.concatenate(bproj, axis=0)[None, :]             # (1, 12*emb)
    # block-diagonal scale matrix: (12*emb, 12*H)  (used by the reference only;
    # the kernel gets the pre-folded dense map instead)
    bd = jnp.zeros((12 * HYPER_EMBED, 12 * HIDDEN_SIZE), jnp.float32)
    for k in range(12):
        bd = bd.at[k * HYPER_EMBED:(k + 1) * HYPER_EMBED,
                   k * HIDDEN_SIZE:(k + 1) * HIDDEN_SIZE].set(wscale[k])
    p['wscale_bd'] = bd
    # LSTM bias parameter
    p['bias'] = w((1, 4 * HIDDEN_SIZE), 0.01)
    # layer-norm params (reset_parameters -> gamma=1, beta=0)
    p['g_ifgo'] = jnp.ones((4, HIDDEN_SIZE), jnp.float32)
    p['be_ifgo'] = jnp.zeros((4, HIDDEN_SIZE), jnp.float32)
    p['g_c'] = jnp.ones((1, HIDDEN_SIZE), jnp.float32)
    p['be_c'] = jnp.zeros((1, HIDDEN_SIZE), jnp.float32)
    # output projection
    p['wout'] = w((HIDDEN_SIZE, NUM_CHARS))
    p['bout'] = w((1, NUM_CHARS), 0.01)
    return p


def prepare_kernel_params(p):
    """Fold / concatenate raw params into the kernel's fused layout (done once)."""
    H = HIDDEN_SIZE
    kp = {}
    kp['w1'], kp['b1'] = p['w1'], p['b1']
    kp['w2'], kp['b2'] = p['w2'], p['b2']
    kp['w3'], kp['b3'] = p['w3'], p['b3']
    # shared-LHS fusions
    kp['w_xe'] = jnp.concatenate([p['wxh_hy'], p['wih']], axis=1)          # (64, 256)
    kp['w_h'] = jnp.concatenate([p['whh_hy'][:H], p['whh']], axis=1)       # (32, 256)
    kp['w_hyhy'] = p['whh_hy'][H:]                                         # (32, 128)
    kp['b_hy'] = p['bhy']
    # proj ∘ block-diag scale folded into one dense map (no block-diag DMA)
    kp['w_hyz'] = p['wproj'] @ p['wscale_bd']                              # (32, 384)
    kp['b_hyz'] = p['bproj'] @ p['wscale_bd']                              # (1, 384)
    kp['bias'] = p['bias']
    fplus = jnp.zeros((1, 4 * H), jnp.float32)
    kp['fplus'] = fplus.at[0, H:2 * H].set(1.0)                            # +1 on forget gate
    kp['g_ifgo'], kp['be_ifgo'] = p['g_ifgo'], p['be_ifgo']
    kp['g_c'], kp['be_c'] = p['g_c'], p['be_c']
    kp['wout'], kp['bout'] = p['wout'], p['bout']
    return kp


# ------------------------------------------------------------------------------
# Wrapper: one pallas_call runs the whole sequence
# ------------------------------------------------------------------------------
def hyper_lstm_sequence_forward(kp, xs, state, hyper_state):
    """xs: (T, B, OBS_DIM). Returns (outputs (T,B,NUM_CHARS), (h,c), (hy_h,hy_c))."""
    T, B, _ = xs.shape
    h0, c0 = state
    hyh0, hyc0 = hyper_state

    inputs = [
        xs, h0, c0, hyh0, hyc0,
        kp['w1'], kp['b1'], kp['w2'], kp['b2'], kp['w3'], kp['b3'],
        kp['w_xe'], kp['w_h'], kp['w_hyhy'], kp['b_hy'],
        kp['w_hyz'], kp['b_hyz'],
        kp['bias'], kp['fplus'],
        kp['g_ifgo'], kp['be_ifgo'], kp['g_c'], kp['be_c'],
        kp['wout'], kp['bout'],
    ]

    def resident(arr):
        # constant block index across the time grid -> loaded into VMEM once
        zeros = (0,) * arr.ndim
        return pl.BlockSpec(arr.shape, lambda t, _z=zeros: _z)

    in_specs = [pl.BlockSpec((None, B, OBS_DIM), lambda t: (t, 0, 0))]
    in_specs += [resident(a) for a in inputs[1:]]

    out_shape = (
        jax.ShapeDtypeStruct((T, B, NUM_CHARS), jnp.float32),   # per-step outputs
        jax.ShapeDtypeStruct((B, HIDDEN_SIZE), jnp.float32),    # final h
        jax.ShapeDtypeStruct((B, HIDDEN_SIZE), jnp.float32),    # final c
        jax.ShapeDtypeStruct((B, HYPER_HIDDEN), jnp.float32),   # final hyper_h
        jax.ShapeDtypeStruct((B, HYPER_HIDDEN), jnp.float32),   # final hyper_c
    )
    out_specs = (
        pl.BlockSpec((None, B, NUM_CHARS), lambda t: (t, 0, 0)),
        pl.BlockSpec((B, HIDDEN_SIZE), lambda t: (0, 0)),
        pl.BlockSpec((B, HIDDEN_SIZE), lambda t: (0, 0)),
        pl.BlockSpec((B, HYPER_HIDDEN), lambda t: (0, 0)),
        pl.BlockSpec((B, HYPER_HIDDEN), lambda t: (0, 0)),
    )
    scratch_shapes = [
        pltpu.VMEM((B, HIDDEN_SIZE), jnp.float32),    # h
        pltpu.VMEM((B, HIDDEN_SIZE), jnp.float32),    # c
        pltpu.VMEM((B, HYPER_HIDDEN), jnp.float32),   # hyper_h
        pltpu.VMEM((B, HYPER_HIDDEN), jnp.float32),   # hyper_c
    ]

    fn = pl.pallas_call(
        hyper_lstm_kernel,
        out_shape=out_shape,
        grid=(T,),
        in_specs=in_specs,
        out_specs=out_specs,
        scratch_shapes=scratch_shapes,
        compiler_params=pltpu.CompilerParams(
            dimension_semantics=("arbitrary",)),   # time axis is sequential
    )
    out_seq, nh, nc, nhyh, nhyc = fn(*inputs)
    return out_seq, (nh, nc), (nhyh, nhyc)


# ------------------------------------------------------------------------------
# Pure-JAX reference (mirrors the torch module per step, raw parameters)
# ------------------------------------------------------------------------------
def reference_step(p, x, state, hyper_state):
    h, c = state
    hy_h, hy_c = hyper_state
    e = jax.nn.relu(x @ p['w1'] + p['b1'])
    e = jax.nn.relu(e @ p['w2'] + p['b2'])
    xe = e @ p['w3'] + p['b3']

    HH = HYPER_HIDDEN
    gates = xe @ p['wxh_hy'] + h @ p['whh_hy'][:HIDDEN_SIZE] \
        + hy_h @ p['whh_hy'][HIDDEN_SIZE:] + p['bhy']
    hi, hf, hg, ho = [gates[:, k * HH:(k + 1) * HH] for k in range(4)]
    new_hy_c = jax.nn.sigmoid(hf) * hy_c + jax.nn.sigmoid(hi) * jnp.tanh(hg)
    new_hy_h = jax.nn.sigmoid(ho) * jnp.tanh(new_hy_c)

    xh = xe @ p['wih']
    hh = h @ p['whh']
    proj = new_hy_h @ p['wproj'] + p['bproj']
    Z = proj @ p['wscale_bd']

    H = HIDDEN_SIZE
    zc = [Z[:, k * H:(k + 1) * H] for k in range(12)]
    xc = [xh[:, k * H:(k + 1) * H] for k in range(4)]
    hc = [hh[:, k * H:(k + 1) * H] for k in range(4)]
    bc = [p['bias'][:, k * H:(k + 1) * H] for k in range(4)]

    i_g = xc[0] * zc[0] + hc[0] * zc[4] + bc[0] * zc[8]
    f_g = xc[1] * zc[1] + hc[1] * zc[5] + bc[1] * zc[9] + 1.0
    g_g = xc[2] * zc[2] + hc[2] * zc[6] + bc[2] * zc[10]
    o_g = xc[3] * zc[3] + hc[3] * zc[7] + bc[3] * zc[11]

    i_g = _layer_norm_ref(i_g, p['g_ifgo'][0:1], p['be_ifgo'][0:1])
    f_g = _layer_norm_ref(f_g, p['g_ifgo'][1:2], p['be_ifgo'][1:2])
    g_g = _layer_norm_ref(g_g, p['g_ifgo'][2:3], p['be_ifgo'][2:3])
    o_g = _layer_norm_ref(o_g, p['g_ifgo'][3:4], p['be_ifgo'][3:4])

    new_c = c * jax.nn.sigmoid(f_g) + jnp.tanh(g_g) * jax.nn.sigmoid(i_g)
    new_c = _layer_norm_ref(new_c, p['g_c'], p['be_c'])
    new_h = jnp.tanh(new_c) * jax.nn.sigmoid(o_g)
    out = new_h @ p['wout'] + p['bout']
    return out, (new_h, new_c), (new_hy_h, new_hy_c)


def reference_sequence(p, xs, state, hyper_state):
    h, c = state
    hy_h, hy_c = hyper_state
    outs = []
    for t in range(xs.shape[0]):
        out, (h, c), (hy_h, hy_c) = reference_step(p, xs[t], (h, c), (hy_h, hy_c))
        outs.append(out)
    return jnp.stack(outs, axis=0), (h, c), (hy_h, hy_c)


# ------------------------------------------------------------------------------
if __name__ == "__main__":
    key = jax.random.PRNGKey(0)
    kparam, kx, kh, kc, khh, khc = jax.random.split(key, 6)
    raw = init_params(kparam)
    kern_params = prepare_kernel_params(raw)

    xs = jax.random.normal(kx, (SEQ_LEN, BATCH, OBS_DIM), jnp.float32)
    h = 0.1 * jax.random.normal(kh, (BATCH, HIDDEN_SIZE), jnp.float32)
    c = 0.1 * jax.random.normal(kc, (BATCH, HIDDEN_SIZE), jnp.float32)
    hy_h = 0.1 * jax.random.normal(khh, (BATCH, HYPER_HIDDEN), jnp.float32)
    hy_c = 0.1 * jax.random.normal(khc, (BATCH, HYPER_HIDDEN), jnp.float32)

    out_seq, (nh, nc), (nhyh, nhyc) = hyper_lstm_sequence_forward(
        kern_params, xs, (h, c), (hy_h, hy_c))
    jax.block_until_ready((out_seq, nh, nc, nhyh, nhyc))

    r_out, (r_nh, r_nc), (r_nhyh, r_nhyc) = reference_sequence(
        raw, xs, (h, c), (hy_h, hy_c))

    for a, b in ((out_seq, r_out), (nh, r_nh), (nc, r_nc),
                 (nhyh, r_nhyh), (nhyc, r_nhyc)):
        assert jnp.allclose(a, b, rtol=1e-2, atol=1e-2), \
            f"mismatch: max abs err {jnp.max(jnp.abs(a - b))}"

    print("KERNEL_OK")
</pallas_src>

<mosaic_0001>
module attributes {stable_mosaic.version = 11 : i64} {
  func.func @hyper_lstm_kernel(%arg0: i32, %arg1: memref<1x8x37xf32, #tpu.memory_space<vmem>>, %arg2: memref<8x32xf32, #tpu.memory_space<vmem>>, %arg3: memref<8x32xf32, #tpu.memory_space<vmem>>, %arg4: memref<8x32xf32, #tpu.memory_space<vmem>>, %arg5: memref<8x32xf32, #tpu.memory_space<vmem>>, %arg6: memref<37x64xf32, #tpu.memory_space<vmem>>, %arg7: memref<1x64xf32, #tpu.memory_space<vmem>>, %arg8: memref<64x64xf32, #tpu.memory_space<vmem>>, %arg9: memref<1x64xf32, #tpu.memory_space<vmem>>, %arg10: memref<64x64xf32, #tpu.memory_space<vmem>>, %arg11: memref<1x64xf32, #tpu.memory_space<vmem>>, %arg12: memref<64x256xf32, #tpu.memory_space<vmem>>, %arg13: memref<32x256xf32, #tpu.memory_space<vmem>>, %arg14: memref<32x128xf32, #tpu.memory_space<vmem>>, %arg15: memref<1x128xf32, #tpu.memory_space<vmem>>, %arg16: memref<32x384xf32, #tpu.memory_space<vmem>>, %arg17: memref<1x384xf32, #tpu.memory_space<vmem>>, %arg18: memref<1x128xf32, #tpu.memory_space<vmem>>, %arg19: memref<1x128xf32, #tpu.memory_space<vmem>>, %arg20: memref<4x32xf32, #tpu.memory_space<vmem>>, %arg21: memref<4x32xf32, #tpu.memory_space<vmem>>, %arg22: memref<1x32xf32, #tpu.memory_space<vmem>>, %arg23: memref<1x32xf32, #tpu.memory_space<vmem>>, %arg24: memref<32x16xf32, #tpu.memory_space<vmem>>, %arg25: memref<1x16xf32, #tpu.memory_space<vmem>>, %arg26: memref<1x8x16xf32, #tpu.memory_space<vmem>>, %arg27: memref<8x32xf32, #tpu.memory_space<vmem>>, %arg28: memref<8x32xf32, #tpu.memory_space<vmem>>, %arg29: memref<8x32xf32, #tpu.memory_space<vmem>>, %arg30: memref<8x32xf32, #tpu.memory_space<vmem>>, %arg31: memref<8x32xf32, #tpu.memory_space<vmem>>, %arg32: memref<8x32xf32, #tpu.memory_space<vmem>>, %arg33: memref<8x32xf32, #tpu.memory_space<vmem>>, %arg34: memref<8x32xf32, #tpu.memory_space<vmem>>) attributes {dimension_semantics = [#tpu.dimension_semantics<arbitrary>], iteration_bounds = array<i64: 8>, scalar_prefetch = 0 : i64, scratch_operands = 4 : i64, tpu.core_type = #tpu.core_type<tc>, window_params = [{transform_indices = @transform_0, window_bounds = array<i64: 1, 8, 37>}, {pipeline_mode = #tpu.pipeline_mode<synchronous>, transform_indices = @transform_1, window_bounds = array<i64: 8, 32>}, {pipeline_mode = #tpu.pipeline_mode<synchronous>, transform_indices = @transform_2, window_bounds = array<i64: 8, 32>}, {pipeline_mode = #tpu.pipeline_mode<synchronous>, transform_indices = @transform_3, window_bounds = array<i64: 8, 32>}, {pipeline_mode = #tpu.pipeline_mode<synchronous>, transform_indices = @transform_4, window_bounds = array<i64: 8, 32>}, {pipeline_mode = #tpu.pipeline_mode<synchronous>, transform_indices = @transform_5, window_bounds = array<i64: 37, 64>}, {pipeline_mode = #tpu.pipeline_mode<synchronous>, transform_indices = @transform_6, window_bounds = array<i64: 1, 64>}, {pipeline_mode = #tpu.pipeline_mode<synchronous>, transform_indices = @transform_7, window_bounds = array<i64: 64, 64>}, {pipeline_mode = #tpu.pipeline_mode<synchronous>, transform_indices = @transform_8, window_bounds = array<i64: 1, 64>}, {pipeline_mode = #tpu.pipeline_mode<synchronous>, transform_indices = @transform_9, window_bounds = array<i64: 64, 64>}, {pipeline_mode = #tpu.pipeline_mode<synchronous>, transform_indices = @transform_10, window_bounds = array<i64: 1, 64>}, {pipeline_mode = #tpu.pipeline_mode<synchronous>, transform_indices = @transform_11, window_bounds = array<i64: 64, 256>}, {pipeline_mode = #tpu.pipeline_mode<synchronous>, transform_indices = @transform_12, window_bounds = array<i64: 32, 256>}, {pipeline_mode = #tpu.pipeline_mode<synchronous>, transform_indices = @transform_13, window_bounds = array<i64: 32, 128>}, {pipeline_mode = #tpu.pipeline_mode<synchronous>, transform_indices = @transform_14, window_bounds = array<i64: 1, 128>}, {pipeline_mode = #tpu.pipeline_mode<synchronous>, transform_indices = @transform_15, window_bounds = array<i64: 32, 384>}, {pipeline_mode = #tpu.pipeline_mode<synchronous>, transform_indices = @transform_16, window_bounds = array<i64: 1, 384>}, {pipeline_mode = #tpu.pipeline_mode<synchronous>, transform_indices = @transform_17, window_bounds = array<i64: 1, 128>}, {pipeline_mode = #tpu.pipeline_mode<synchronous>, transform_indices = @transform_18, window_bounds = array<i64: 1, 128>}, {pipeline_mode = #tpu.pipeline_mode<synchronous>, transform_indices = @transform_19, window_bounds = array<i64: 4, 32>}, {pipeline_mode = #tpu.pipeline_mode<synchronous>, transform_indices = @transform_20, window_bounds = array<i64: 4, 32>}, {pipeline_mode = #tpu.pipeline_mode<synchronous>, transform_indices = @transform_21, window_bounds = array<i64: 1, 32>}, {pipeline_mode = #tpu.pipeline_mode<synchronous>, transform_indices = @transform_22, window_bounds = array<i64: 1, 32>}, {pipeline_mode = #tpu.pipeline_mode<synchronous>, transform_indices = @transform_23, window_bounds = array<i64: 32, 16>}, {pipeline_mode = #tpu.pipeline_mode<synchronous>, transform_indices = @transform_24, window_bounds = array<i64: 1, 16>}, {transform_indices = @transform_25, window_bounds = array<i64: 1, 8, 16>}, {pipeline_mode = #tpu.pipeline_mode<synchronous>, transform_indices = @transform_26, window_bounds = array<i64: 8, 32>}, {pipeline_mode = #tpu.pipeline_mode<synchronous>, transform_indices = @transform_27, window_bounds = array<i64: 8, 32>}, {pipeline_mode = #tpu.pipeline_mode<synchronous>, transform_indices = @transform_28, window_bounds = array<i64: 8, 32>}, {pipeline_mode = #tpu.pipeline_mode<synchronous>, transform_indices = @transform_29, window_bounds = array<i64: 8, 32>}]} {
    %c0_i32 = arith.constant 0 : i32
    %0 = arith.cmpi eq, %arg0, %c0_i32 : i32
    %1 = arith.extui %0 : i1 to i32
    %c0_i32_0 = arith.constant 0 : i32
    %2 = arith.cmpi ne, %1, %c0_i32_0 : i32
    scf.if %2 {
      %c0_103 = arith.constant 0 : index
      %c0_104 = arith.constant 0 : index
      %253 = vector.load %arg2[%c0_103, %c0_104] : memref<8x32xf32, #tpu.memory_space<vmem>>, vector<8x32xf32>
      %c0_105 = arith.constant 0 : index
      %c0_106 = arith.constant 0 : index
      %254 = vector.load %arg31[%c0_105, %c0_106] : memref<8x32xf32, #tpu.memory_space<vmem>>, vector<8x32xf32>
      tpu.vector_store %arg31[%c0_105, %c0_106], %253 {strides = array<i32>} : memref<8x32xf32, #tpu.memory_space<vmem>>, vector<8x32xf32>,
      %c0_107 = arith.constant 0 : index
      %c0_108 = arith.constant 0 : index
      %255 = vector.load %arg3[%c0_107, %c0_108] : memref<8x32xf32, #tpu.memory_space<vmem>>, vector<8x32xf32>
      %c0_109 = arith.constant 0 : index
      %c0_110 = arith.constant 0 : index
      %256 = vector.load %arg32[%c0_109, %c0_110] : memref<8x32xf32, #tpu.memory_space<vmem>>, vector<8x32xf32>
      tpu.vector_store %arg32[%c0_109, %c0_110], %255 {strides = array<i32>} : memref<8x32xf32, #tpu.memory_space<vmem>>, vector<8x32xf32>,
      %c0_111 = arith.constant 0 : index
      %c0_112 = arith.constant 0 : index
      %257 = vector.load %arg4[%c0_111, %c0_112] : memref<8x32xf32, #tpu.memory_space<vmem>>, vector<8x32xf32>
      %c0_113 = arith.constant 0 : index
      %c0_114 = arith.constant 0 : index
      %258 = vector.load %arg33[%c0_113, %c0_114] : memref<8x32xf32, #tpu.memory_space<vmem>>, vector<8x32xf32>
      tpu.vector_store %arg33[%c0_113, %c0_114], %257 {strides = array<i32>} : memref<8x32xf32, #tpu.memory_space<vmem>>, vector<8x32xf32>,
      %c0_115 = arith.constant 0 : index
      %c0_116 = arith.constant 0 : index
      %259 = vector.load %arg5[%c0_115, %c0_116] : memref<8x32xf32, #tpu.memory_space<vmem>>, vector<8x32xf32>
      %c0_117 = arith.constant 0 : index
      %c0_118 = arith.constant 0 : index
      %260 = vector.load %arg34[%c0_117, %c0_118] : memref<8x32xf32, #tpu.memory_space<vmem>>, vector<8x32xf32>
      tpu.vector_store %arg34[%c0_117, %c0_118], %259 {strides = array<i32>} : memref<8x32xf32, #tpu.memory_space<vmem>>, vector<8x32xf32>,
    } else {
    }
    %c0 = arith.constant 0 : index
    %c0_1 = arith.constant 0 : index
    %c0_2 = arith.constant 0 : index
    %3 = vector.load %arg1[%c0, %c0_1, %c0_2] : memref<1x8x37xf32, #tpu.memory_space<vmem>>, vector<1x8x37xf32>
    %4 = vector.shape_cast %3 : vector<1x8x37xf32> to vector<8x37xf32>
    %c0_3 = arith.constant 0 : index
    %c0_4 = arith.constant 0 : index
    %5 = vector.load %arg31[%c0_3, %c0_4] : memref<8x32xf32, #tpu.memory_space<vmem>>, vector<8x32xf32>
    %c0_5 = arith.constant 0 : index
    %c0_6 = arith.constant 0 : index
    %6 = vector.load %arg32[%c0_5, %c0_6] : memref<8x32xf32, #tpu.memory_space<vmem>>, vector<8x32xf32>
    %c0_7 = arith.constant 0 : index
    %c0_8 = arith.constant 0 : index
    %7 = vector.load %arg33[%c0_7, %c0_8] : memref<8x32xf32, #tpu.memory_space<vmem>>, vector<8x32xf32>
    %c0_9 = arith.constant 0 : index
    %c0_10 = arith.constant 0 : index
    %8 = vector.load %arg34[%c0_9, %c0_10] : memref<8x32xf32, #tpu.memory_space<vmem>>, vector<8x32xf32>
    %c0_11 = arith.constant 0 : index
    %c0_12 = arith.constant 0 : index
    %9 = vector.load %arg6[%c0_11, %c0_12] : memref<37x64xf32, #tpu.memory_space<vmem>>, vector<37x64xf32>
    %cst = arith.constant dense<0.000000e+00> : vector<8x64xf32>
    %10 = tpu.matmul %4, %9, %cst {dimension_numbers = #tpu.dot_dimension_numbers<[1], [0], [0], [1], [0, 0, 1, 1], [], []>} : vector<8x37xf32>, vector<37x64xf32>, vector<8x64xf32> -> vector<8x64xf32>
    %c0_13 = arith.constant 0 : index
    %c0_14 = arith.constant 0 : index
    %11 = vector.load %arg7[%c0_13, %c0_14] : memref<1x64xf32, #tpu.memory_space<vmem>>, vector<1x64xf32>
    %12 = vector.broadcast %11 : vector<1x64xf32> to vector<8x64xf32>
    %13 = arith.addf %10, %12 : vector<8x64xf32>
    %cst_15 = arith.constant 0.000000e+00 : f32
    %14 = vector.broadcast %cst_15 : f32 to vector<8x64xf32>
    %15 = arith.maximumf %13, %14 : vector<8x64xf32>
    %c0_16 = arith.constant 0 : index
    %c0_17 = arith.constant 0 : index
    %16 = vector.load %arg8[%c0_16, %c0_17] : memref<64x64xf32, #tpu.memory_space<vmem>>, vector<64x64xf32>
    %cst_18 = arith.constant dense<0.000000e+00> : vector<8x64xf32>
    %17 = tpu.matmul %15, %16, %cst_18 {dimension_numbers = #tpu.dot_dimension_numbers<[1], [0], [0], [1], [0, 0, 1, 1], [], []>} : vector<8x64xf32>, vector<64x64xf32>, vector<8x64xf32> -> vector<8x64xf32>
    %c0_19 = arith.constant 0 : index
    %c0_20 = arith.constant 0 : index
    %18 = vector.load %arg9[%c0_19, %c0_20] : memref<1x64xf32, #tpu.memory_space<vmem>>, vector<1x64xf32>
    %19 = vector.broadcast %18 : vector<1x64xf32> to vector<8x64xf32>
    %20 = arith.addf %17, %19 : vector<8x64xf32>
    %cst_21 = arith.constant 0.000000e+00 : f32
    %21 = vector.broadcast %cst_21 : f32 to vector<8x64xf32>
    %22 = arith.maximumf %20, %21 : vector<8x64xf32>
    %c0_22 = arith.constant 0 : index
    %c0_23 = arith.constant 0 : index
    %23 = vector.load %arg10[%c0_22, %c0_23] : memref<64x64xf32, #tpu.memory_space<vmem>>, vector<64x64xf32>
    %cst_24 = arith.constant dense<0.000000e+00> : vector<8x64xf32>
    %24 = tpu.matmul %22, %23, %cst_24 {dimension_numbers = #tpu.dot_dimension_numbers<[1], [0], [0], [1], [0, 0, 1, 1], [], []>} : vector<8x64xf32>, vector<64x64xf32>, vector<8x64xf32> -> vector<8x64xf32>
    %c0_25 = arith.constant 0 : index
    %c0_26 = arith.constant 0 : index
    %25 = vector.load %arg11[%c0_25, %c0_26] : memref<1x64xf32, #tpu.memory_space<vmem>>, vector<1x64xf32>
    %26 = vector.broadcast %25 : vector<1x64xf32> to vector<8x64xf32>
    %27 = arith.addf %24, %26 : vector<8x64xf32>
    %c0_27 = arith.constant 0 : index
    %c0_28 = arith.constant 0 : index
    %28 = vector.load %arg12[%c0_27, %c0_28] : memref<64x256xf32, #tpu.memory_space<vmem>>, vector<64x256xf32>
    %cst_29 = arith.constant dense<0.000000e+00> : vector<8x256xf32>
    %29 = tpu.matmul %27, %28, %cst_29 {dimension_numbers = #tpu.dot_dimension_numbers<[1], [0], [0], [1], [0, 0, 1, 1], [], []>} : vector<8x64xf32>, vector<64x256xf32>, vector<8x256xf32> -> vector<8x256xf32>
    %c0_30 = arith.constant 0 : index
    %c0_31 = arith.constant 0 : index
    %30 = vector.load %arg13[%c0_30, %c0_31] : memref<32x256xf32, #tpu.memory_space<vmem>>, vector<32x256xf32>
    %cst_32 = arith.constant dense<0.000000e+00> : vector<8x256xf32>
    %31 = tpu.matmul %5, %30, %cst_32 {dimension_numbers = #tpu.dot_dimension_numbers<[1], [0], [0], [1], [0, 0, 1, 1], [], []>} : vector<8x32xf32>, vector<32x256xf32>, vector<8x256xf32> -> vector<8x256xf32>
    %32 = vector.extract_strided_slice %29 {offsets = [0, 0], sizes = [8, 128], strides = [1, 1]} : vector<8x256xf32> to vector<8x128xf32>
    %33 = vector.extract_strided_slice %31 {offsets = [0, 0], sizes = [8, 128], strides = [1, 1]} : vector<8x256xf32> to vector<8x128xf32>
    %34 = arith.addf %32, %33 : vector<8x128xf32>
    %c0_33 = arith.constant 0 : index
    %c0_34 = arith.constant 0 : index
    %35 = vector.load %arg14[%c0_33, %c0_34] : memref<32x128xf32, #tpu.memory_space<vmem>>, vector<32x128xf32>
    %cst_35 = arith.constant dense<0.000000e+00> : vector<8x128xf32>
    %36 = tpu.matmul %7, %35, %cst_35 {dimension_numbers = #tpu.dot_dimension_numbers<[1], [0], [0], [1], [0, 0, 1, 1], [], []>} : vector<8x32xf32>, vector<32x128xf32>, vector<8x128xf32> -> vector<8x128xf32>
    %37 = arith.addf %34, %36 : vector<8x128xf32>
    %c0_36 = arith.constant 0 : index
    %c0_37 = arith.constant 0 : index
    %38 = vector.load %arg15[%c0_36, %c0_37] : memref<1x128xf32, #tpu.memory_space<vmem>>, vector<1x128xf32>
    %39 = vector.broadcast %38 : vector<1x128xf32> to vector<8x128xf32>
    %40 = arith.addf %37, %39 : vector<8x128xf32>
    %41 = vector.extract_strided_slice %29 {offsets = [0, 128], sizes = [8, 128], strides = [1, 1]} : vector<8x256xf32> to vector<8x128xf32>
    %42 = vector.extract_strided_slice %31 {offsets = [0, 128], sizes = [8, 128], strides = [1, 1]} : vector<8x256xf32> to vector<8x128xf32>
    %43 = vector.extract_strided_slice %40 {offsets = [0, 0], sizes = [8, 32], strides = [1, 1]} : vector<8x128xf32> to vector<8x32xf32>
    %44 = vector.extract_strided_slice %40 {offsets = [0, 32], sizes = [8, 32], strides = [1, 1]} : vector<8x128xf32> to vector<8x32xf32>
    %45 = vector.extract_strided_slice %40 {offsets = [0, 64], sizes = [8, 32], strides = [1, 1]} : vector<8x128xf32> to vector<8x32xf32>
    %46 = vector.extract_strided_slice %40 {offsets = [0, 96], sizes = [8, 32], strides = [1, 1]} : vector<8x128xf32> to vector<8x32xf32>
    %47 = arith.negf %44 : vector<8x32xf32>
    %48 = math.exp %47 : vector<8x32xf32>
    %cst_38 = arith.constant 1.000000e+00 : f32
    %49 = vector.broadcast %cst_38 : f32 to vector<8x32xf32>
    %50 = arith.addf %49, %48 : vector<8x32xf32>
    %51 = arith.divf %49, %50 : vector<8x32xf32>
    %52 = arith.mulf %51, %8 : vector<8x32xf32>
    %53 = arith.negf %43 : vector<8x32xf32>
    %54 = math.exp %53 : vector<8x32xf32>
    %cst_39 = arith.constant 1.000000e+00 : f32
    %55 = vector.broadcast %cst_39 : f32 to vector<8x32xf32>
    %56 = arith.addf %55, %54 : vector<8x32xf32>
    %57 = arith.divf %55, %56 : vector<8x32xf32>
    %58 = math.tanh %45 : vector<8x32xf32>
    %59 = arith.mulf %57, %58 : vector<8x32xf32>
    %60 = arith.addf %52, %59 : vector<8x32xf32>
    %61 = arith.negf %46 : vector<8x32xf32>
    %62 = math.exp %61 : vector<8x32xf32>
    %cst_40 = arith.constant 1.000000e+00 : f32
    %63 = vector.broadcast %cst_40 : f32 to vector<8x32xf32>
    %64 = arith.addf %63, %62 : vector<8x32xf32>
    %65 = arith.divf %63, %64 : vector<8x32xf32>
    %66 = math.tanh %60 : vector<8x32xf32>
    %67 = arith.mulf %65, %66 : vector<8x32xf32>
    %c0_41 = arith.constant 0 : index
    %c0_42 = arith.constant 0 : index
    %68 = vector.load %arg16[%c0_41, %c0_42] : memref<32x384xf32, #tpu.memory_space<vmem>>, vector<32x384xf32>
    %cst_43 = arith.constant dense<0.000000e+00> : vector<8x384xf32>
    %69 = tpu.matmul %67, %68, %cst_43 {dimension_numbers = #tpu.dot_dimension_numbers<[1], [0], [0], [1], [0, 0, 1, 1], [], []>} : vector<8x32xf32>, vector<32x384xf32>, vector<8x384xf32> -> vector<8x384xf32>
    %c0_44 = arith.constant 0 : index
    %c0_45 = arith.constant 0 : index
    %70 = vector.load %arg17[%c0_44, %c0_45] : memref<1x384xf32, #tpu.memory_space<vmem>>, vector<1x384xf32>
    %71 = vector.broadcast %70 : vector<1x384xf32> to vector<8x384xf32>
    %72 = arith.addf %69, %71 : vector<8x384xf32>
    %73 = vector.extract_strided_slice %72 {offsets = [0, 0], sizes = [8, 128], strides = [1, 1]} : vector<8x384xf32> to vector<8x128xf32>
    %74 = arith.mulf %41, %73 : vector<8x128xf32>
    %75 = vector.extract_strided_slice %72 {offsets = [0, 128], sizes = [8, 128], strides = [1, 1]} : vector<8x384xf32> to vector<8x128xf32>
    %76 = arith.mulf %42, %75 : vector<8x128xf32>
    %77 = arith.addf %74, %76 : vector<8x128xf32>
    %c0_46 = arith.constant 0 : index
    %c0_47 = arith.constant 0 : index
    %78 = vector.load %arg18[%c0_46, %c0_47] : memref<1x128xf32, #tpu.memory_space<vmem>>, vector<1x128xf32>
    %79 = vector.extract_strided_slice %72 {offsets = [0, 256], sizes = [8, 128], strides = [1, 1]} : vector<8x384xf32> to vector<8x128xf32>
    %80 = vector.broadcast %78 : vector<1x128xf32> to vector<8x128xf32>
    %81 = arith.mulf %80, %79 : vector<8x128xf32>
    %82 = arith.addf %77, %81 : vector<8x128xf32>
    %c0_48 = arith.constant 0 : index
    %c0_49 = arith.constant 0 : index
    %83 = vector.load %arg19[%c0_48, %c0_49] : memref<1x128xf32, #tpu.memory_space<vmem>>, vector<1x128xf32>
    %84 = vector.broadcast %83 : vector<1x128xf32> to vector<8x128xf32>
    %85 = arith.addf %82, %84 : vector<8x128xf32>
    %c0_50 = arith.constant 0 : index
    %c0_51 = arith.constant 0 : index
    %86 = vector.load %arg20[%c0_50, %c0_51] : memref<4x32xf32, #tpu.memory_space<vmem>>, vector<4x32xf32>
    %c0_52 = arith.constant 0 : index
    %c0_53 = arith.constant 0 : index
    %87 = vector.load %arg21[%c0_52, %c0_53] : memref<4x32xf32, #tpu.memory_space<vmem>>, vector<4x32xf32>
    %88 = vector.extract_strided_slice %85 {offsets = [0, 0], sizes = [8, 32], strides = [1, 1]} : vector<8x128xf32> to vector<8x32xf32>
    %89 = vector.extract_strided_slice %86 {offsets = [0, 0], sizes = [1, 32], strides = [1, 1]} : vector<4x32xf32> to vector<1x32xf32>
    %90 = vector.extract_strided_slice %87 {offsets = [0, 0], sizes = [1, 32], strides = [1, 1]} : vector<4x32xf32> to vector<1x32xf32>
    %cst_54 = arith.constant dense<0.000000e+00> : vector<8xf32>
    %91 = vector.multi_reduction <add>, %88, %cst_54 [1] : vector<8x32xf32> to vector<8xf32>
    %92 = vector.shape_cast %91 : vector<8xf32> to vector<8x1xf32>
    %cst_55 = arith.constant 3.200000e+01 : f32
    %93 = vector.broadcast %cst_55 : f32 to vector<8x1xf32>
    %94 = arith.divf %92, %93 : vector<8x1xf32>
    %95 = vector.broadcast %94 : vector<8x1xf32> to vector<8x32xf32>
    %96 = arith.subf %88, %95 : vector<8x32xf32>
    %97 = arith.mulf %96, %96 : vector<8x32xf32>
    %cst_56 = arith.constant dense<0.000000e+00> : vector<8xf32>
    %98 = vector.multi_reduction <add>, %97, %cst_56 [1] : vector<8x32xf32> to vector<8xf32>
    %99 = vector.shape_cast %98 : vector<8xf32> to vector<8x1xf32>
    %cst_57 = arith.constant 0.0322580636 : f32
    %100 = vector.broadcast %cst_57 : f32 to vector<8x1xf32>
    %101 = arith.mulf %99, %100 : vector<8x1xf32>
    %102 = math.sqrt %101 : vector<8x1xf32>
    %cst_58 = arith.constant 9.99999997E-7 : f32
    %103 = vector.broadcast %cst_58 : f32 to vector<8x1xf32>
    %104 = arith.addf %102, %103 : vector<8x1xf32>
    %105 = tpu.reciprocal %104 {approx = true} : vector<8x1xf32> -> vector<8x1xf32>
    %106 = vector.broadcast %94 : vector<8x1xf32> to vector<8x32xf32>
    %107 = arith.subf %88, %106 : vector<8x32xf32>
    %108 = vector.broadcast %89 : vector<1x32xf32> to vector<8x32xf32>
    %109 = arith.mulf %108, %107 : vector<8x32xf32>
    %110 = vector.broadcast %105 : vector<8x1xf32> to vector<8x32xf32>
    %111 = arith.mulf %109, %110 : vector<8x32xf32>
    %112 = vector.broadcast %90 : vector<1x32xf32> to vector<8x32xf32>
    %113 = arith.addf %111, %112 : vector<8x32xf32>
    %114 = vector.extract_strided_slice %85 {offsets = [0, 32], sizes = [8, 32], strides = [1, 1]} : vector<8x128xf32> to vector<8x32xf32>
    %115 = vector.extract_strided_slice %86 {offsets = [1, 0], sizes = [1, 32], strides = [1, 1]} : vector<4x32xf32> to vector<1x32xf32>
    %116 = vector.extract_strided_slice %87 {offsets = [1, 0], sizes = [1, 32], strides = [1, 1]} : vector<4x32xf32> to vector<1x32xf32>
    %cst_59 = arith.constant dense<0.000000e+00> : vector<8xf32>
    %117 = vector.multi_reduction <add>, %114, %cst_59 [1] : vector<8x32xf32> to vector<8xf32>
    %118 = vector.shape_cast %117 : vector<8xf32> to vector<8x1xf32>
    %cst_60 = arith.constant 3.200000e+01 : f32
    %119 = vector.broadcast %cst_60 : f32 to vector<8x1xf32>
    %120 = arith.divf %118, %119 : vector<8x1xf32>
    %121 = vector.broadcast %120 : vector<8x1xf32> to vector<8x32xf32>
    %122 = arith.subf %114, %121 : vector<8x32xf32>
    %123 = arith.mulf %122, %122 : vector<8x32xf32>
    %cst_61 = arith.constant dense<0.000000e+00> : vector<8xf32>
    %124 = vector.multi_reduction <add>, %123, %cst_61 [1] : vector<8x32xf32> to vector<8xf32>
    %125 = vector.shape_cast %124 : vector<8xf32> to vector<8x1xf32>
    %cst_62 = arith.constant 0.0322580636 : f32
    %126 = vector.broadcast %cst_62 : f32 to vector<8x1xf32>
    %127 = arith.mulf %125, %126 : vector<8x1xf32>
    %128 = math.sqrt %127 : vector<8x1xf32>
    %cst_63 = arith.constant 9.99999997E-7 : f32
    %129 = vector.broadcast %cst_63 : f32 to vector<8x1xf32>
    %130 = arith.addf %128, %129 : vector<8x1xf32>
    %131 = tpu.reciprocal %130 {approx = true} : vector<8x1xf32> -> vector<8x1xf32>
    %132 = vector.broadcast %120 : vector<8x1xf32> to vector<8x32xf32>
    %133 = arith.subf %114, %132 : vector<8x32xf32>
    %134 = vector.broadcast %115 : vector<1x32xf32> to vector<8x32xf32>
    %135 = arith.mulf %134, %133 : vector<8x32xf32>
    %136 = vector.broadcast %131 : vector<8x1xf32> to vector<8x32xf32>
    %137 = arith.mulf %135, %136 : vector<8x32xf32>
    %138 = vector.broadcast %116 : vector<1x32xf32> to vector<8x32xf32>
    %139 = arith.addf %137, %138 : vector<8x32xf32>
    %140 = vector.extract_strided_slice %85 {offsets = [0, 64], sizes = [8, 32], strides = [1, 1]} : vector<8x128xf32> to vector<8x32xf32>
    %141 = vector.extract_strided_slice %86 {offsets = [2, 0], sizes = [1, 32], strides = [1, 1]} : vector<4x32xf32> to vector<1x32xf32>
    %142 = vector.extract_strided_slice %87 {offsets = [2, 0], sizes = [1, 32], strides = [1, 1]} : vector<4x32xf32> to vector<1x32xf32>
    %cst_64 = arith.constant dense<0.000000e+00> : vector<8xf32>
    %143 = vector.multi_reduction <add>, %140, %cst_64 [1] : vector<8x32xf32> to vector<8xf32>
    %144 = vector.shape_cast %143 : vector<8xf32> to vector<8x1xf32>
    %cst_65 = arith.constant 3.200000e+01 : f32
    %145 = vector.broadcast %cst_65 : f32 to vector<8x1xf32>
    %146 = arith.divf %144, %145 : vector<8x1xf32>
    %147 = vector.broadcast %146 : vector<8x1xf32> to vector<8x32xf32>
    %148 = arith.subf %140, %147 : vector<8x32xf32>
    %149 = arith.mulf %148, %148 : vector<8x32xf32>
    %cst_66 = arith.constant dense<0.000000e+00> : vector<8xf32>
    %150 = vector.multi_reduction <add>, %149, %cst_66 [1] : vector<8x32xf32> to vector<8xf32>
    %151 = vector.shape_cast %150 : vector<8xf32> to vector<8x1xf32>
    %cst_67 = arith.constant 0.0322580636 : f32
    %152 = vector.broadcast %cst_67 : f32 to vector<8x1xf32>
    %153 = arith.mulf %151, %152 : vector<8x1xf32>
    %154 = math.sqrt %153 : vector<8x1xf32>
    %cst_68 = arith.constant 9.99999997E-7 : f32
    %155 = vector.broadcast %cst_68 : f32 to vector<8x1xf32>
    %156 = arith.addf %154, %155 : vector<8x1xf32>
    %157 = tpu.reciprocal %156 {approx = true} : vector<8x1xf32> -> vector<8x1xf32>
    %158 = vector.broadcast %146 : vector<8x1xf32> to vector<8x32xf32>
    %159 = arith.subf %140, %158 : vector<8x32xf32>
    %160 = vector.broadcast %141 : vector<1x32xf32> to vector<8x32xf32>
    %161 = arith.mulf %160, %159 : vector<8x32xf32>
    %162 = vector.broadcast %157 : vector<8x1xf32> to vector<8x32xf32>
    %163 = arith.mulf %161, %162 : vector<8x32xf32>
    %164 = vector.broadcast %142 : vector<1x32xf32> to vector<8x32xf32>
    %165 = arith.addf %163, %164 : vector<8x32xf32>
    %166 = vector.extract_strided_slice %85 {offsets = [0, 96], sizes = [8, 32], strides = [1, 1]} : vector<8x128xf32> to vector<8x32xf32>
    %167 = vector.extract_strided_slice %86 {offsets = [3, 0], sizes = [1, 32], strides = [1, 1]} : vector<4x32xf32> to vector<1x32xf32>
    %168 = vector.extract_strided_slice %87 {offsets = [3, 0], sizes = [1, 32], strides = [1, 1]} : vector<4x32xf32> to vector<1x32xf32>
    %cst_69 = arith.constant dense<0.000000e+00> : vector<8xf32>
    %169 = vector.multi_reduction <add>, %166, %cst_69 [1] : vector<8x32xf32> to vector<8xf32>
    %170 = vector.shape_cast %169 : vector<8xf32> to vector<8x1xf32>
    %cst_70 = arith.constant 3.200000e+01 : f32
    %171 = vector.broadcast %cst_70 : f32 to vector<8x1xf32>
    %172 = arith.divf %170, %171 : vector<8x1xf32>
    %173 = vector.broadcast %172 : vector<8x1xf32> to vector<8x32xf32>
    %174 = arith.subf %166, %173 : vector<8x32xf32>
    %175 = arith.mulf %174, %174 : vector<8x32xf32>
    %cst_71 = arith.constant dense<0.000000e+00> : vector<8xf32>
    %176 = vector.multi_reduction <add>, %175, %cst_71 [1] : vector<8x32xf32> to vector<8xf32>
    %177 = vector.shape_cast %176 : vector<8xf32> to vector<8x1xf32>
    %cst_72 = arith.constant 0.0322580636 : f32
    %178 = vector.broadcast %cst_72 : f32 to vector<8x1xf32>
    %179 = arith.mulf %177, %178 : vector<8x1xf32>
    %180 = math.sqrt %179 : vector<8x1xf32>
    %cst_73 = arith.constant 9.99999997E-7 : f32
    %181 = vector.broadcast %cst_73 : f32 to vector<8x1xf32>
    %182 = arith.addf %180, %181 : vector<8x1xf32>
    %183 = tpu.reciprocal %182 {approx = true} : vector<8x1xf32> -> vector<8x1xf32>
    %184 = vector.broadcast %172 : vector<8x1xf32> to vector<8x32xf32>
    %185 = arith.subf %166, %184 : vector<8x32xf32>
    %186 = vector.broadcast %167 : vector<1x32xf32> to vector<8x32xf32>
    %187 = arith.mulf %186, %185 : vector<8x32xf32>
    %188 = vector.broadcast %183 : vector<8x1xf32> to vector<8x32xf32>
    %189 = arith.mulf %187, %188 : vector<8x32xf32>
    %190 = vector.broadcast %168 : vector<1x32xf32> to vector<8x32xf32>
    %191 = arith.addf %189, %190 : vector<8x32xf32>
    %192 = arith.negf %139 : vector<8x32xf32>
    %193 = math.exp %192 : vector<8x32xf32>
    %cst_74 = arith.constant 1.000000e+00 : f32
    %194 = vector.broadcast %cst_74 : f32 to vector<8x32xf32>
    %195 = arith.addf %194, %193 : vector<8x32xf32>
    %196 = arith.divf %194, %195 : vector<8x32xf32>
    %197 = arith.mulf %6, %196 : vector<8x32xf32>
    %198 = math.tanh %165 : vector<8x32xf32>
    %199 = arith.negf %113 : vector<8x32xf32>
    %200 = math.exp %199 : vector<8x32xf32>
    %cst_75 = arith.constant 1.000000e+00 : f32
    %201 = vector.broadcast %cst_75 : f32 to vector<8x32xf32>
    %202 = arith.addf %201, %200 : vector<8x32xf32>
    %203 = arith.divf %201, %202 : vector<8x32xf32>
    %204 = arith.mulf %198, %203 : vector<8x32xf32>
    %205 = arith.addf %197, %204 : vector<8x32xf32>
    %c0_76 = arith.constant 0 : index
    %c0_77 = arith.constant 0 : index
    %206 = vector.load %arg22[%c0_76, %c0_77] : memref<1x32xf32, #tpu.memory_space<vmem>>, vector<1x32xf32>
    %c0_78 = arith.constant 0 : index
    %c0_79 = arith.constant 0 : index
    %207 = vector.load %arg23[%c0_78, %c0_79] : memref<1x32xf32, #tpu.memory_space<vmem>>, vector<1x32xf32>
    %cst_80 = arith.constant dense<0.000000e+00> : vector<8xf32>
    %208 = vector.multi_reduction <add>, %205, %cst_80 [1] : vector<8x32xf32> to vector<8xf32>
    %209 = vector.shape_cast %208 : vector<8xf32> to vector<8x1xf32>
    %cst_81 = arith.constant 3.200000e+01 : f32
    %210 = vector.broadcast %cst_81 : f32 to vector<8x1xf32>
    %211 = arith.divf %209, %210 : vector<8x1xf32>
    %212 = vector.broadcast %211 : vector<8x1xf32> to vector<8x32xf32>
    %213 = arith.subf %205, %212 : vector<8x32xf32>
    %214 = arith.mulf %213, %213 : vector<8x32xf32>
    %cst_82 = arith.constant dense<0.000000e+00> : vector<8xf32>
    %215 = vector.multi_reduction <add>, %214, %cst_82 [1] : vector<8x32xf32> to vector<8xf32>
    %216 = vector.shape_cast %215 : vector<8xf32> to vector<8x1xf32>
    %cst_83 = arith.constant 0.0322580636 : f32
    %217 = vector.broadcast %cst_83 : f32 to vector<8x1xf32>
    %218 = arith.mulf %216, %217 : vector<8x1xf32>
    %219 = math.sqrt %218 : vector<8x1xf32>
    %cst_84 = arith.constant 9.99999997E-7 : f32
    %220 = vector.broadcast %cst_84 : f32 to vector<8x1xf32>
    %221 = arith.addf %219, %220 : vector<8x1xf32>
    %222 = tpu.reciprocal %221 {approx = true} : vector<8x1xf32> -> vector<8x1xf32>
    %223 = vector.broadcast %211 : vector<8x1xf32> to vector<8x32xf32>
    %224 = arith.subf %205, %223 : vector<8x32xf32>
    %225 = vector.broadcast %206 : vector<1x32xf32> to vector<8x32xf32>
    %226 = arith.mulf %225, %224 : vector<8x32xf32>
    %227 = vector.broadcast %222 : vector<8x1xf32> to vector<8x32xf32>
    %228 = arith.mulf %226, %227 : vector<8x32xf32>
    %229 = vector.broadcast %207 : vector<1x32xf32> to vector<8x32xf32>
    %230 = arith.addf %228, %229 : vector<8x32xf32>
    %231 = math.tanh %230 : vector<8x32xf32>
    %232 = arith.negf %191 : vector<8x32xf32>
    %233 = math.exp %232 : vector<8x32xf32>
    %cst_85 = arith.constant 1.000000e+00 : f32
    %234 = vector.broadcast %cst_85 : f32 to vector<8x32xf32>
    %235 = arith.addf %234, %233 : vector<8x32xf32>
    %236 = arith.divf %234, %235 : vector<8x32xf32>
    %237 = arith.mulf %231, %236 : vector<8x32xf32>
    %c0_86 = arith.constant 0 : index
    %c0_87 = arith.constant 0 : index
    %238 = vector.load %arg24[%c0_86, %c0_87] : memref<32x16xf32, #tpu.memory_space<vmem>>, vector<32x16xf32>
    %cst_88 = arith.constant dense<0.000000e+00> : vector<8x16xf32>
    %239 = tpu.matmul %237, %238, %cst_88 {dimension_numbers = #tpu.dot_dimension_numbers<[1], [0], [0], [1], [0, 0, 1, 1], [], []>} : vector<8x32xf32>, vector<32x16xf32>, vector<8x16xf32> -> vector<8x16xf32>
    %c0_89 = arith.constant 0 : index
    %c0_90 = arith.constant 0 : index
    %240 = vector.load %arg25[%c0_89, %c0_90] : memref<1x16xf32, #tpu.memory_space<vmem>>, vector<1x16xf32>
    %241 = vector.broadcast %240 : vector<1x16xf32> to vector<8x16xf32>
    %242 = arith.addf %239, %241 : vector<8x16xf32>
    %c0_91 = arith.constant 0 : index
    %c0_92 = arith.constant 0 : index
    %c0_93 = arith.constant 0 : index
    %243 = vector.load %arg26[%c0_91, %c0_92, %c0_93] : memref<1x8x16xf32, #tpu.memory_space<vmem>>, vector<1x8x16xf32>
    %244 = vector.shape_cast %243 : vector<1x8x16xf32> to vector<8x16xf32>
    %245 = vector.shape_cast %242 : vector<8x16xf32> to vector<1x8x16xf32>
    tpu.vector_store %arg26[%c0_91, %c0_92, %c0_93], %245 {strides = array<i32>} : memref<1x8x16xf32, #tpu.memory_space<vmem>>, vector<1x8x16xf32>,
    %c0_94 = arith.constant 0 : index
    %c0_95 = arith.constant 0 : index
    %246 = vector.load %arg31[%c0_94, %c0_95] : memref<8x32xf32, #tpu.memory_space<vmem>>, vector<8x32xf32>
    tpu.vector_store %arg31[%c0_94, %c0_95], %237 {strides = array<i32>} : memref<8x32xf32, #tpu.memory_space<vmem>>, vector<8x32xf32>,
    %c0_96 = arith.constant 0 : index
    %c0_97 = arith.constant 0 : index
    %247 = vector.load %arg32[%c0_96, %c0_97] : memref<8x32xf32, #tpu.memory_space<vmem>>, vector<8x32xf32>
    tpu.vector_store %arg32[%c0_96, %c0_97], %230 {strides = array<i32>} : memref<8x32xf32, #tpu.memory_space<vmem>>, vector<8x32xf32>,
    %c0_98 = arith.constant 0 : index
    %c0_99 = arith.constant 0 : index
    %248 = vector.load %arg33[%c0_98, %c0_99] : memref<8x32xf32, #tpu.memory_space<vmem>>, vector<8x32xf32>
    tpu.vector_store %arg33[%c0_98, %c0_99], %67 {strides = array<i32>} : memref<8x32xf32, #tpu.memory_space<vmem>>, vector<8x32xf32>,
    %c0_100 = arith.constant 0 : index
    %c0_101 = arith.constant 0 : index
    %249 = vector.load %arg34[%c0_100, %c0_101] : memref<8x32xf32, #tpu.memory_space<vmem>>, vector<8x32xf32>
    tpu.vector_store %arg34[%c0_100, %c0_101], %60 {strides = array<i32>} : memref<8x32xf32, #tpu.memory_space<vmem>>, vector<8x32xf32>,
    %c7_i32 = arith.constant 7 : i32
    %250 = arith.cmpi eq, %arg0, %c7_i32 : i32
    %251 = arith.extui %250 : i1 to i32
    %c0_i32_102 = arith.constant 0 : i32
    %252 = arith.cmpi ne, %251, %c0_i32_102 : i32
    scf.if %252 {
      %c0_103 = arith.constant 0 : index
      %c0_104 = arith.constant 0 : index
      %253 = vector.load %arg27[%c0_103, %c0_104] : memref<8x32xf32, #tpu.memory_space<vmem>>, vector<8x32xf32>
      tpu.vector_store %arg27[%c0_103, %c0_104], %237 {strides = array<i32>} : memref<8x32xf32, #tpu.memory_space<vmem>>, vector<8x32xf32>,
      %c0_105 = arith.constant 0 : index
      %c0_106 = arith.constant 0 : index
      %254 = vector.load %arg28[%c0_105, %c0_106] : memref<8x32xf32, #tpu.memory_space<vmem>>, vector<8x32xf32>
      tpu.vector_store %arg28[%c0_105, %c0_106], %230 {strides = array<i32>} : memref<8x32xf32, #tpu.memory_space<vmem>>, vector<8x32xf32>,
      %c0_107 = arith.constant 0 : index
      %c0_108 = arith.constant 0 : index
      %255 = vector.load %arg29[%c0_107, %c0_108] : memref<8x32xf32, #tpu.memory_space<vmem>>, vector<8x32xf32>
      tpu.vector_store %arg29[%c0_107, %c0_108], %67 {strides = array<i32>} : memref<8x32xf32, #tpu.memory_space<vmem>>, vector<8x32xf32>,
      %c0_109 = arith.constant 0 : index
      %c0_110 = arith.constant 0 : index
      %256 = vector.load %arg30[%c0_109, %c0_110] : memref<8x32xf32, #tpu.memory_space<vmem>>, vector<8x32xf32>
      tpu.vector_store %arg30[%c0_109, %c0_110], %60 {strides = array<i32>} : memref<8x32xf32, #tpu.memory_space<vmem>>, vector<8x32xf32>,
    } else {
    }
    return
  }
  func.func @transform_0(%arg0: i32) -> (i32, i32, i32) {
    %c0_i32 = arith.constant 0 : i32
    %c0_i32_0 = arith.constant 0 : i32
    %c0_i32_1 = arith.constant 0 : i32
    return %arg0, %c0_i32, %c0_i32_0 : i32, i32, i32
  }
  func.func @transform_1(%arg0: i32) -> (i32, i32) {
    %c0_i32 = arith.constant 0 : i32
    %c0_i32_0 = arith.constant 0 : i32
    %c0_i32_1 = arith.constant 0 : i32
    return %c0_i32, %c0_i32_0 : i32, i32
  }
  func.func @transform_2(%arg0: i32) -> (i32, i32) {
    %c0_i32 = arith.constant 0 : i32
    %c0_i32_0 = arith.constant 0 : i32
    %c0_i32_1 = arith.constant 0 : i32
    return %c0_i32, %c0_i32_0 : i32, i32
  }
  func.func @transform_3(%arg0: i32) -> (i32, i32) {
    %c0_i32 = arith.constant 0 : i32
    %c0_i32_0 = arith.constant 0 : i32
    %c0_i32_1 = arith.constant 0 : i32
    return %c0_i32, %c0_i32_0 : i32, i32
  }
  func.func @transform_4(%arg0: i32) -> (i32, i32) {
    %c0_i32 = arith.constant 0 : i32
    %c0_i32_0 = arith.constant 0 : i32
    %c0_i32_1 = arith.constant 0 : i32
    return %c0_i32, %c0_i32_0 : i32, i32
  }
  func.func @transform_5(%arg0: i32) -> (i32, i32) {
    %c0_i32 = arith.constant 0 : i32
    %c0_i32_0 = arith.constant 0 : i32
    %c0_i32_1 = arith.constant 0 : i32
    return %c0_i32, %c0_i32_0 : i32, i32
  }
  func.func @transform_6(%arg0: i32) -> (i32, i32) {
    %c0_i32 = arith.constant 0 : i32
    %c0_i32_0 = arith.constant 0 : i32
    %c0_i32_1 = arith.constant 0 : i32
    return %c0_i32, %c0_i32_0 : i32, i32
  }
  func.func @transform_7(%arg0: i32) -> (i32, i32) {
    %c0_i32 = arith.constant 0 : i32
    %c0_i32_0 = arith.constant 0 : i32
    %c0_i32_1 = arith.constant 0 : i32
    return %c0_i32, %c0_i32_0 : i32, i32
  }
  func.func @transform_8(%arg0: i32) -> (i32, i32) {
    %c0_i32 = arith.constant 0 : i32
    %c0_i32_0 = arith.constant 0 : i32
    %c0_i32_1 = arith.constant 0 : i32
    return %c0_i32, %c0_i32_0 : i32, i32
  }
  func.func @transform_9(%arg0: i32) -> (i32, i32) {
    %c0_i32 = arith.constant 0 : i32
    %c0_i32_0 = arith.constant 0 : i32
    %c0_i32_1 = arith.constant 0 : i32
    return %c0_i32, %c0_i32_0 : i32, i32
  }
  func.func @transform_10(%arg0: i32) -> (i32, i32) {
    %c0_i32 = arith.constant 0 : i32
    %c0_i32_0 = arith.constant 0 : i32
    %c0_i32_1 = arith.constant 0 : i32
    return %c0_i32, %c0_i32_0 : i32, i32
  }
  func.func @transform_11(%arg0: i32) -> (i32, i32) {
    %c0_i32 = arith.constant 0 : i32
    %c0_i32_0 = arith.constant 0 : i32
    %c0_i32_1 = arith.constant 0 : i32
    return %c0_i32, %c0_i32_0 : i32, i32
  }
  func.func @transform_12(%arg0: i32) -> (i32, i32) {
    %c0_i32 = arith.constant 0 : i32
    %c0_i32_0 = arith.constant 0 : i32
    %c0_i32_1 = arith.constant 0 : i32
    return %c0_i32, %c0_i32_0 : i32, i32
  }
  func.func @transform_13(%arg0: i32) -> (i32, i32) {
    %c0_i32 = arith.constant 0 : i32
    %c0_i32_0 = arith.constant 0 : i32
    %c0_i32_1 = arith.constant 0 : i32
    return %c0_i32, %c0_i32_0 : i32, i32
  }
  func.func @transform_14(%arg0: i32) -> (i32, i32) {
    %c0_i32 = arith.constant 0 : i32
    %c0_i32_0 = arith.constant 0 : i32
    %c0_i32_1 = arith.constant 0 : i32
    return %c0_i32, %c0_i32_0 : i32, i32
  }
  func.func @transform_15(%arg0: i32) -> (i32, i32) {
    %c0_i32 = arith.constant 0 : i32
    %c0_i32_0 = arith.constant 0 : i32
    %c0_i32_1 = arith.constant 0 : i32
    return %c0_i32, %c0_i32_0 : i32, i32
  }
  func.func @transform_16(%arg0: i32) -> (i32, i32) {
    %c0_i32 = arith.constant 0 : i32
    %c0_i32_0 = arith.constant 0 : i32
    %c0_i32_1 = arith.constant 0 : i32
    return %c0_i32, %c0_i32_0 : i32, i32
  }
  func.func @transform_17(%arg0: i32) -> (i32, i32) {
    %c0_i32 = arith.constant 0 : i32
    %c0_i32_0 = arith.constant 0 : i32
    %c0_i32_1 = arith.constant 0 : i32
    return %c0_i32, %c0_i32_0 : i32, i32
  }
  func.func @transform_18(%arg0: i32) -> (i32, i32) {
    %c0_i32 = arith.constant 0 : i32
    %c0_i32_0 = arith.constant 0 : i32
    %c0_i32_1 = arith.constant 0 : i32
    return %c0_i32, %c0_i32_0 : i32, i32
  }
  func.func @transform_19(%arg0: i32) -> (i32, i32) {
    %c0_i32 = arith.constant 0 : i32
    %c0_i32_0 = arith.constant 0 : i32
    %c0_i32_1 = arith.constant 0 : i32
    return %c0_i32, %c0_i32_0 : i32, i32
  }
  func.func @transform_20(%arg0: i32) -> (i32, i32) {
    %c0_i32 = arith.constant 0 : i32
    %c0_i32_0 = arith.constant 0 : i32
    %c0_i32_1 = arith.constant 0 : i32
    return %c0_i32, %c0_i32_0 : i32, i32
  }
  func.func @transform_21(%arg0: i32) -> (i32, i32) {
    %c0_i32 = arith.constant 0 : i32
    %c0_i32_0 = arith.constant 0 : i32
    %c0_i32_1 = arith.constant 0 : i32
    return %c0_i32, %c0_i32_0 : i32, i32
  }
  func.func @transform_22(%arg0: i32) -> (i32, i32) {
    %c0_i32 = arith.constant 0 : i32
    %c0_i32_0 = arith.constant 0 : i32
    %c0_i32_1 = arith.constant 0 : i32
    return %c0_i32, %c0_i32_0 : i32, i32
  }
  func.func @transform_23(%arg0: i32) -> (i32, i32) {
    %c0_i32 = arith.constant 0 : i32
    %c0_i32_0 = arith.constant 0 : i32
    %c0_i32_1 = arith.constant 0 : i32
    return %c0_i32, %c0_i32_0 : i32, i32
  }
  func.func @transform_24(%arg0: i32) -> (i32, i32) {
    %c0_i32 = arith.constant 0 : i32
    %c0_i32_0 = arith.constant 0 : i32
    %c0_i32_1 = arith.constant 0 : i32
    return %c0_i32, %c0_i32_0 : i32, i32
  }
  func.func @transform_25(%arg0: i32) -> (i32, i32, i32) {
    %c0_i32 = arith.constant 0 : i32
    %c0_i32_0 = arith.constant 0 : i32
    %c0_i32_1 = arith.constant 0 : i32
    return %arg0, %c0_i32, %c0_i32_0 : i32, i32, i32
  }
  func.func @transform_26(%arg0: i32) -> (i32, i32) {
    %c0_i32 = arith.constant 0 : i32
    %c0_i32_0 = arith.constant 0 : i32
    %c0_i32_1 = arith.constant 0 : i32
    return %c0_i32, %c0_i32_0 : i32, i32
  }
  func.func @transform_27(%arg0: i32) -> (i32, i32) {
    %c0_i32 = arith.constant 0 : i32
    %c0_i32_0 = arith.constant 0 : i32
    %c0_i32_1 = arith.constant 0 : i32
    return %c0_i32, %c0_i32_0 : i32, i32
  }
  func.func @transform_28(%arg0: i32) -> (i32, i32) {
    %c0_i32 = arith.constant 0 : i32
    %c0_i32_0 = arith.constant 0 : i32
    %c0_i32_1 = arith.constant 0 : i32
    return %c0_i32, %c0_i32_0 : i32, i32
  }
  func.func @transform_29(%arg0: i32) -> (i32, i32) {
    %c0_i32 = arith.constant 0 : i32
    %c0_i32_0 = arith.constant 0 : i32
    %c0_i32_1 = arith.constant 0 : i32
    return %c0_i32, %c0_i32_0 : i32, i32
  }
}

</mosaic_0001>

<llo_original>
// kernel: tpu_custom_call.1
$region0: #{tpu_custom_call.1}
  #allocation0 [shape = 'u32[]', space=smem, size = 0x4, offset = 0x4, fixed_abs, tag = 'smem constant byte address 0x4 - core index']
  #allocation1 [shape = 'u32[144,128]{1,0:T(1,128)}', space=vmem, size = 0x12000, scoped, tag = 'internal scratch']
  #allocation2 [shape = 'f32[8,32]{1,0:T(8,128)}', space=vmem, size = 0x1000, scoped, tag = 'scratch operand']
  #allocation3 [shape = 'f32[8,32]{1,0:T(8,128)}', space=vmem, size = 0x1000, scoped, tag = 'scratch operand']
  #allocation4 [shape = 'f32[8,32]{1,0:T(8,128)}', space=vmem, size = 0x1000, scoped, tag = 'scratch operand']
  #allocation5 [shape = 'f32[8,32]{1,0:T(8,128)}', space=vmem, size = 0x1000, scoped, tag = 'scratch operand']
  %s0 = inlined_call_operand.smem [shape: u32[30], index: -1, kind: input, shape index: {}]
  %s1 = sld [smem:[%s0]]
  %s2 = scalar_lea.smem %s0, 1
  %s3 = sld [smem:[%s2]]
  %s4 = scalar_lea.smem %s0, 2
  %s5 = sld [smem:[%s4]]
  %s6 = scalar_lea.smem %s0, 3
  %s7 = sld [smem:[%s6]]
  %s8 = scalar_lea.smem %s0, 4
  %s9 = sld [smem:[%s8]]
  %s10 = scalar_lea.smem %s0, 5
  %s11 = sld [smem:[%s10]]
  %s12 = scalar_lea.smem %s0, 6
  %s13 = sld [smem:[%s12]]
  %s14 = scalar_lea.smem %s0, 7
  %s15 = sld [smem:[%s14]]
  %s16 = scalar_lea.smem %s0, 8
  %s17 = sld [smem:[%s16]]
  %s18 = scalar_lea.smem %s0, 9
  %s19 = sld [smem:[%s18]]
  %s20 = scalar_lea.smem %s0, 10
  %s21 = sld [smem:[%s20]]
  %s22 = scalar_lea.smem %s0, 11
  %s23 = sld [smem:[%s22]]
  %s24 = scalar_lea.smem %s0, 12
  %s25 = sld [smem:[%s24]]
  %s26 = scalar_lea.smem %s0, 13
  %s27 = sld [smem:[%s26]]
  %s28 = scalar_lea.smem %s0, 14
  %s29 = sld [smem:[%s28]]
  %s30 = scalar_lea.smem %s0, 15
  %s31 = sld [smem:[%s30]]
  %s32 = scalar_lea.smem %s0, 16
  %s33 = sld [smem:[%s32]]
  %s34 = scalar_lea.smem %s0, 17
  %s35 = sld [smem:[%s34]]
  %s36 = scalar_lea.smem %s0, 18
  %s37 = sld [smem:[%s36]]
  %s38 = scalar_lea.smem %s0, 19
  %s39 = sld [smem:[%s38]]
  %s40 = scalar_lea.smem %s0, 20
  %s41 = sld [smem:[%s40]]
  %s42 = scalar_lea.smem %s0, 21
  %s43 = sld [smem:[%s42]]
  %s44 = scalar_lea.smem %s0, 22
  %s45 = sld [smem:[%s44]]
  %s46 = scalar_lea.smem %s0, 23
  %s47 = sld [smem:[%s46]]
  %s48 = scalar_lea.smem %s0, 24
  %s49 = sld [smem:[%s48]]
  %s50 = scalar_lea.smem %s0, 25
  %s51 = sld [smem:[%s50]]
  %s52 = scalar_lea.smem %s0, 26
  %s53 = sld [smem:[%s52]]
  %s54 = scalar_lea.smem %s0, 27
  %s55 = sld [smem:[%s54]]
  %s56 = scalar_lea.smem %s0, 28
  %s57 = sld [smem:[%s56]]
  %s58 = scalar_lea.smem %s0, 29
  %s59 = sld [smem:[%s58]]
  %60 = xla_tuple %s51, %s53, %s55, %s57, %s59
  %s61 = sld [smem:[#allocation0]]
  $region249: #{tpu_custom_call.1} parent=0
    _
  %s63 = ssub.s32 1, %s61
  %s64 = scalar_select 0, %s63, %s61
  $region1: #{tpu_custom_call.1} parent=0
    #allocation6 [shape = 'u8[8192]{0}', space=vmem, size = 0x2000, scoped, tag = 'input window, operand 0']
    #allocation7 [shape = 's32[2]{0}', space=sflag, size = 0x8, scoped, tag = 'scoped memory for tpu_custom_call.1']
    #allocation8 [shape = 's32[2]{0}', space=sflag, size = 0x8, scoped, tag = 'scoped memory for tpu_custom_call.1']
    #allocation9 [shape = 'u8[4096]{0}', space=vmem, size = 0x1000, scoped, tag = 'input window, operand 1, single buffered']
    #allocation10 [shape = 's32[1]{0}', space=sflag, size = 0x4, scoped, tag = 'scoped memory for tpu_custom_call.1']
    #allocation11 [shape = 'u8[4096]{0}', space=vmem, size = 0x1000, scoped, tag = 'input window, operand 2, single buffered']
    #allocation12 [shape = 'u8[4096]{0}', space=vmem, size = 0x1000, scoped, tag = 'input window, operand 3, single buffered']
    #allocation13 [shape = 's32[1]{0}', space=sflag, size = 0x4, scoped, tag = 'scoped memory for tpu_custom_call.1']
    #allocation14 [shape = 'u8[4096]{0}', space=vmem, size = 0x1000, scoped, tag = 'input window, operand 4, single buffered']
    #allocation15 [shape = 'u8[20480]{0}', space=vmem, size = 0x5000, scoped, tag = 'input window, operand 5, single buffered']
    #allocation16 [shape = 's32[1]{0}', space=sflag, size = 0x4, scoped, tag = 'scoped memory for tpu_custom_call.1']
    #allocation17 [shape = 'u8[512]{0}', space=vmem, size = 0x400, scoped, tag = 'input window, operand 6, single buffered']
    #allocation18 [shape = 'u8[32768]{0}', space=vmem, size = 0x8000, scoped, tag = 'input window, operand 7, single buffered']
    #allocation19 [shape = 's32[1]{0}', space=sflag, size = 0x4, scoped, tag = 'scoped memory for tpu_custom_call.1']
    #allocation20 [shape = 'u8[512]{0}', space=vmem, size = 0x400, scoped, tag = 'input window, operand 8, single buffered']
    #allocation21 [shape = 'u8[512]{0}', space=vmem, size = 0x400, scoped, tag = 'input window, operand 10, single buffered']
    #allocation22 [shape = 's32[1]{0}', space=sflag, size = 0x4, scoped, tag = 'scoped memory for tpu_custom_call.1']
    #allocation23 [shape = 'u8[65536]{0}', space=vmem, size = 0x10000, scoped, tag = 'input window, operand 11, single buffered']
    #allocation24 [shape = 'u8[32768]{0}', space=vmem, size = 0x8000, scoped, tag = 'input window, operand 12, single buffered']
    #allocation25 [shape = 's32[1]{0}', space=sflag, size = 0x4, scoped, tag = 'scoped memory for tpu_custom_call.1']
    #allocation26 [shape = 'u8[16384]{0}', space=vmem, size = 0x4000, scoped, tag = 'input window, operand 13, single buffered']
    #allocation27 [shape = 'u8[512]{0}', space=vmem, size = 0x400, scoped, tag = 'input window, operand 14, single buffered']
    #allocation28 [shape = 's32[1]{0}', space=sflag, size = 0x4, scoped, tag = 'scoped memory for tpu_custom_call.1']
    #allocation29 [shape = 'u8[49152]{0}', space=vmem, size = 0xc000, scoped, tag = 'input window, operand 15, single buffered']
    #allocation30 [shape = 'u8[1536]{0}', space=vmem, size = 0x800, scoped, tag = 'input window, operand 16, single buffered']
    #allocation31 [shape = 's32[1]{0}', space=sflag, size = 0x4, scoped, tag = 'scoped memory for tpu_custom_call.1']
    #allocation32 [shape = 'u8[512]{0}', space=vmem, size = 0x400, scoped, tag = 'input window, operand 17, single buffered']
    #allocation33 [shape = 'u8[512]{0}', space=vmem, size = 0x400, scoped, tag = 'input window, operand 18, single buffered']
    #allocation34 [shape = 's32[1]{0}', space=sflag, size = 0x4, scoped, tag = 'scoped memory for tpu_custom_call.1']
    #allocation35 [shape = 'u8[2048]{0}', space=vmem, size = 0x800, scoped, tag = 'input window, operand 19, single buffered']
    #allocation36 [shape = 'u8[8192]{0}', space=vmem, size = 0x2000, scoped, tag = 'output window, operand 0']
    #allocation37 [shape = 'u8[4096]{0}', space=vmem, size = 0x1000, scoped, tag = 'output window, operand 1, single buffered']
    #allocation38 [shape = 's32[1]{0}', space=sflag, size = 0x4, scoped, tag = 'scoped memory for tpu_custom_call.1']
    #allocation39 [shape = 'u8[4096]{0}', space=vmem, size = 0x1000, scoped, tag = 'output window, operand 2, single buffered']
    #allocation40 [shape = 'u8[4096]{0}', space=vmem, size = 0x1000, scoped, tag = 'output window, operand 3, single buffered']
    #allocation41 [shape = 's32[1]{0}', space=sflag, size = 0x4, scoped, tag = 'scoped memory for tpu_custom_call.1']
    #allocation42 [shape = 'u8[4096]{0}', space=vmem, size = 0x1000, scoped, tag = 'output window, operand 4, single buffered']
    %65 = vsyncpa [#allocation7], 0
    %s66 = scalar_lea.sflag [#allocation7], 1
    %67 = vsyncpa %s66, 0
    %68 = vsyncpa [#allocation10], 0
    %69 = vsyncpa [#allocation13], 0
    %70 = vsyncpa [#allocation16], 0
    %71 = vsyncpa [#allocation19], 0
    %72 = vsyncpa [#allocation22], 0
    %73 = vsyncpa [#allocation25], 0
    %74 = vsyncpa [#allocation28], 0
    %75 = vsyncpa [#allocation31], 0
    %76 = vsyncpa [#allocation34], 0
    %77 = vsyncpa [#allocation8], 0
    %s78 = scalar_lea.sflag [#allocation8], 1
    %79 = vsyncpa %s78, 0
    %80 = vsyncpa [#allocation38], 0
    %81 = vsyncpa [#allocation41], 0
    loop: start=0, step=1, limit=10
    $region2: #{tpu_custom_call.1} parent=1 // loop_pre_header
      _
    $region3: #{tpu_custom_call.1} parent=1 // loop_header
      %s83 = sphi 0, %s87
      %p84 = scmp.ge.s32.totalorder %s83, 10
      %s93 = sphi 0, %s95
      %s96 = sphi 0, %s93
      %s97 = sphi 0, %s96
      %s113 = sphi 0, %s97
      %s117 = sphi 0, %s117
      %s119 = sphi 0, %s117
      %s120 = sphi 0, %s119
      %s134 = sphi 0, %s120
      %s138 = sphi 0, %s138
      %s140 = sphi 0, %s138
      %s141 = sphi 0, %s140
      %s155 = sphi 0, %s141
      %s159 = sphi 0, %s159
      %s161 = sphi 0, %s159
      %s162 = sphi 0, %s161
      %s176 = sphi 0, %s162
      %s180 = sphi 0, %s180
      %s182 = sphi 0, %s180
      %s183 = sphi 0, %s182
      %s197 = sphi 0, %s183
      %s201 = sphi 0, %s201
      %s203 = sphi 0, %s201
      %s204 = sphi 0, %s203
      %s218 = sphi 0, %s204
      %s222 = sphi 0, %s222
      %s224 = sphi 0, %s222
      %s225 = sphi 0, %s224
      %s239 = sphi 0, %s225
      %s243 = sphi 0, %s243
      %s245 = sphi 0, %s243
      %s246 = sphi 0, %s245
      %s260 = sphi 0, %s246
      %s264 = sphi 0, %s264
      %s266 = sphi 0, %s264
      %s267 = sphi 0, %s266
      %s281 = sphi 0, %s267
      %s285 = sphi 0, %s285
      %s287 = sphi 0, %s285
      %s288 = sphi 0, %s287
      %s302 = sphi 0, %s288
      %s306 = sphi 0, %s306
      %s308 = sphi 0, %s306
      %s309 = sphi 0, %s308
      %s323 = sphi 0, %s309
      %s327 = sphi 0, %s327
      %s329 = sphi 0, %s327
      %s330 = sphi 0, %s329
      %s344 = sphi 0, %s330
      %s348 = sphi 0, %s348
      %s350 = sphi 0, %s348
      %s351 = sphi 0, %s350
      %s365 = sphi 0, %s351
      %s369 = sphi 0, %s369
      %s371 = sphi 0, %s369
      %s372 = sphi 0, %s371
      %s386 = sphi 0, %s372
      %s390 = sphi 0, %s390
      %s392 = sphi 0, %s390
      %s393 = sphi 0, %s392
      %s407 = sphi 0, %s393
      %s411 = sphi 0, %s411
      %s413 = sphi 0, %s411
      %s414 = sphi 0, %s413
      %s428 = sphi 0, %s414
      %s432 = sphi 0, %s432
      %s434 = sphi 0, %s432
      %s435 = sphi 0, %s434
      %s449 = sphi 0, %s435
      %s453 = sphi 0, %s453
      %s455 = sphi 0, %s453
      %s456 = sphi 0, %s455
      %s470 = sphi 0, %s456
      %s474 = sphi 0, %s474
      %s476 = sphi 0, %s474
      %s477 = sphi 0, %s476
      %s491 = sphi 0, %s477
      %s495 = sphi 0, %s495
      %s497 = sphi 0, %s495
      %s498 = sphi 0, %s497
      %s512 = sphi 0, %s498
      %s516 = sphi 0, %s516
      %s518 = sphi 0, %s516
      %s519 = sphi 0, %s518
      %s533 = sphi 0, %s519
      %s537 = sphi 0, %s537
      %s539 = sphi 0, %s537
      %s540 = sphi 0, %s539
      %s554 = sphi 0, %s540
      %s558 = sphi 0, %s558
      %s560 = sphi 0, %s558
      %s561 = sphi 0, %s560
      %s575 = sphi 0, %s561
      %s579 = sphi 0, %s579
      %s581 = sphi 0, %s579
      %s582 = sphi 0, %s581
      %s596 = sphi 0, %s582
      %s600 = sphi 0, %s600
      %s602 = sphi 0, %s600
      %s603 = sphi 0, %s602
      %s617 = sphi 0, %s603
      %s623 = sphi 0, %s625
      %s626 = sphi 0, %s623
      %s627 = sphi 0, %s626
      %s643 = sphi 0, %s627
      %s647 = sphi 0, %s647
      %s649 = sphi 0, %s647
      %s650 = sphi 0, %s649
      %s664 = sphi 0, %s650
      %s668 = sphi 0, %s668
      %s670 = sphi 0, %s668
      %s671 = sphi 0, %s670
      %s685 = sphi 0, %s671
      %s689 = sphi 0, %s689
      %s691 = sphi 0, %s689
      %s692 = sphi 0, %s691
      %s706 = sphi 0, %s692
      %s710 = sphi 0, %s710
      %s712 = sphi 0, %s710
      %s713 = sphi 0, %s712
      %s727 = sphi 0, %s713
    $region4: #{tpu_custom_call.1} parent=1 // loop_header_branch
      %86 = sbr.rel (%p84) target = $region8
    $region5: #{tpu_custom_call.1} parent=1 // loop_body
      %s88 = ssub.s32 %s83, 1
      %s89 = ssub.s32 %s83, 2
      %s90 = sadd.s32 %s83, 1
      %s91 = ssub.s32 %s83, %s90
      %p92 = scmp.eq.s32.totalorder %s91, 0
      %s94 = sadd.s32 %s93, 1
      %s95 = scalar_select %p92, %s93, %s94
      %p98 = pneg %p92
      %p99 = scmp.eq.s32.totalorder %s83, 7
      %p100 = por %p98, %p99
      %p101 = scmp.ne.s32.totalorder %s93, %s96
      %p102 = scmp.eq.s32.totalorder %s83, 0
      %p103 = por %p101, %p102
      %p104 = scmp.ne.s32.totalorder %s93, %s96
      %p105 = scmp.eq.s32.totalorder %s88, 7
      %p106 = por %p104, %p105
      %p107 = scmp.ne.s32.totalorder %s96, %s97
      %p108 = scmp.eq.s32.totalorder %s88, 0
      %p109 = por %p107, %p108
      %p110 = scmp.ne.s32.totalorder %s96, %s97
      %p111 = scmp.eq.s32.totalorder %s89, 7
      %p112 = por %p110, %p111
      %p114 = scmp.ne.s32.totalorder %s97, %s113
      %p115 = scmp.eq.s32.totalorder %s89, 0
      %p116 = por %p114, %p115
      %s118 = sadd.s32 %s117, 1
      %p121 = scmp.eq.s32.totalorder %s83, 7
      %p122 = scmp.ne.s32.totalorder %s117, %s119
      %p123 = scmp.eq.s32.totalorder %s83, 0
      %p124 = por %p122, %p123
      %p125 = scmp.ne.s32.totalorder %s117, %s119
      %p126 = scmp.eq.s32.totalorder %s88, 7
      %p127 = por %p125, %p126
      %p128 = scmp.ne.s32.totalorder %s119, %s120
      %p129 = scmp.eq.s32.totalorder %s88, 0
      %p130 = por %p128, %p129
      %p131 = scmp.ne.s32.totalorder %s119, %s120
      %p132 = scmp.eq.s32.totalorder %s89, 7
      %p133 = por %p131, %p132
      %p135 = scmp.ne.s32.totalorder %s120, %s134
      %p136 = scmp.eq.s32.totalorder %s89, 0
      %p137 = por %p135, %p136
      %s139 = sadd.s32 %s138, 1
      %p142 = scmp.eq.s32.totalorder %s83, 7
      %p143 = scmp.ne.s32.totalorder %s138, %s140
      %p144 = scmp.eq.s32.totalorder %s83, 0
      %p145 = por %p143, %p144
      %p146 = scmp.ne.s32.totalorder %s138, %s140
      %p147 = scmp.eq.s32.totalorder %s88, 7
      %p148 = por %p146, %p147
      %p149 = scmp.ne.s32.totalorder %s140, %s141
      %p150 = scmp.eq.s32.totalorder %s88, 0
      %p151 = por %p149, %p150
      %p152 = scmp.ne.s32.totalorder %s140, %s141
      %p153 = scmp.eq.s32.totalorder %s89, 7
      %p154 = por %p152, %p153
      %p156 = scmp.ne.s32.totalorder %s141, %s155
      %p157 = scmp.eq.s32.totalorder %s89, 0
      %p158 = por %p156, %p157
      %s160 = sadd.s32 %s159, 1
      %p163 = scmp.eq.s32.totalorder %s83, 7
      %p164 = scmp.ne.s32.totalorder %s159, %s161
      %p165 = scmp.eq.s32.totalorder %s83, 0
      %p166 = por %p164, %p165
      %p167 = scmp.ne.s32.totalorder %s159, %s161
      %p168 = scmp.eq.s32.totalorder %s88, 7
      %p169 = por %p167, %p168
      %p170 = scmp.ne.s32.totalorder %s161, %s162
      %p171 = scmp.eq.s32.totalorder %s88, 0
      %p172 = por %p170, %p171
      %p173 = scmp.ne.s32.totalorder %s161, %s162
      %p174 = scmp.eq.s32.totalorder %s89, 7
      %p175 = por %p173, %p174
      %p177 = scmp.ne.s32.totalorder %s162, %s176
      %p178 = scmp.eq.s32.totalorder %s89, 0
      %p179 = por %p177, %p178
      %s181 = sadd.s32 %s180, 1
      %p184 = scmp.eq.s32.totalorder %s83, 7
      %p185 = scmp.ne.s32.totalorder %s180, %s182
      %p186 = scmp.eq.s32.totalorder %s83, 0
      %p187 = por %p185, %p186
      %p188 = scmp.ne.s32.totalorder %s180, %s182
      %p189 = scmp.eq.s32.totalorder %s88, 7
      %p190 = por %p188, %p189
      %p191 = scmp.ne.s32.totalorder %s182, %s183
      %p192 = scmp.eq.s32.totalorder %s88, 0
      %p193 = por %p191, %p192
      %p194 = scmp.ne.s32.totalorder %s182, %s183
      %p195 = scmp.eq.s32.totalorder %s89, 7
      %p196 = por %p194, %p195
      %p198 = scmp.ne.s32.totalorder %s183, %s197
      %p199 = scmp.eq.s32.totalorder %s89, 0
      %p200 = por %p198, %p199
      %s202 = sadd.s32 %s201, 1
      %p205 = scmp.eq.s32.totalorder %s83, 7
      %p206 = scmp.ne.s32.totalorder %s201, %s203
      %p207 = scmp.eq.s32.totalorder %s83, 0
      %p208 = por %p206, %p207
      %p209 = scmp.ne.s32.totalorder %s201, %s203
      %p210 = scmp.eq.s32.totalorder %s88, 7
      %p211 = por %p209, %p210
      %p212 = scmp.ne.s32.totalorder %s203, %s204
      %p213 = scmp.eq.s32.totalorder %s88, 0
      %p214 = por %p212, %p213
      %p215 = scmp.ne.s32.totalorder %s203, %s204
      %p216 = scmp.eq.s32.totalorder %s89, 7
      %p217 = por %p215, %p216
      %p219 = scmp.ne.s32.totalorder %s204, %s218
      %p220 = scmp.eq.s32.totalorder %s89, 0
      %p221 = por %p219, %p220
      %s223 = sadd.s32 %s222, 1
      %p226 = scmp.eq.s32.totalorder %s83, 7
      %p227 = scmp.ne.s32.totalorder %s222, %s224
      %p228 = scmp.eq.s32.totalorder %s83, 0
      %p229 = por %p227, %p228
      %p230 = scmp.ne.s32.totalorder %s222, %s224
      %p231 = scmp.eq.s32.totalorder %s88, 7
      %p232 = por %p230, %p231
      %p233 = scmp.ne.s32.totalorder %s224, %s225
      %p234 = scmp.eq.s32.totalorder %s88, 0
      %p235 = por %p233, %p234
      %p236 = scmp.ne.s32.totalorder %s224, %s225
      %p237 = scmp.eq.s32.totalorder %s89, 7
      %p238 = por %p236, %p237
      %p240 = scmp.ne.s32.totalorder %s225, %s239
      %p241 = scmp.eq.s32.totalorder %s89, 0
      %p242 = por %p240, %p241
      %s244 = sadd.s32 %s243, 1
      %p247 = scmp.eq.s32.totalorder %s83, 7
      %p248 = scmp.ne.s32.totalorder %s243, %s245
      %p249 = scmp.eq.s32.totalorder %s83, 0
      %p250 = por %p248, %p249
      %p251 = scmp.ne.s32.totalorder %s243, %s245
      %p252 = scmp.eq.s32.totalorder %s88, 7
      %p253 = por %p251, %p252
      %p254 = scmp.ne.s32.totalorder %s245, %s246
      %p255 = scmp.eq.s32.totalorder %s88, 0
      %p256 = por %p254, %p255
      %p257 = scmp.ne.s32.totalorder %s245, %s246
      %p258 = scmp.eq.s32.totalorder %s89, 7
      %p259 = por %p257, %p258
      %p261 = scmp.ne.s32.totalorder %s246, %s260
      %p262 = scmp.eq.s32.totalorder %s89, 0
      %p263 = por %p261, %p262
      %s265 = sadd.s32 %s264, 1
      %p268 = scmp.eq.s32.totalorder %s83, 7
      %p269 = scmp.ne.s32.totalorder %s264, %s266
      %p270 = scmp.eq.s32.totalorder %s83, 0
      %p271 = por %p269, %p270
      %p272 = scmp.ne.s32.totalorder %s264, %s266
      %p273 = scmp.eq.s32.totalorder %s88, 7
      %p274 = por %p272, %p273
      %p275 = scmp.ne.s32.totalorder %s266, %s267
      %p276 = scmp.eq.s32.totalorder %s88, 0
      %p277 = por %p275, %p276
      %p278 = scmp.ne.s32.totalorder %s266, %s267
      %p279 = scmp.eq.s32.totalorder %s89, 7
      %p280 = por %p278, %p279
      %p282 = scmp.ne.s32.totalorder %s267, %s281
      %p283 = scmp.eq.s32.totalorder %s89, 0
      %p284 = por %p282, %p283
      %s286 = sadd.s32 %s285, 1
      %p289 = scmp.eq.s32.totalorder %s83, 7
      %p290 = scmp.ne.s32.totalorder %s285, %s287
      %p291 = scmp.eq.s32.totalorder %s83, 0
      %p292 = por %p290, %p291
      %p293 = scmp.ne.s32.totalorder %s285, %s287
      %p294 = scmp.eq.s32.totalorder %s88, 7
      %p295 = por %p293, %p294
      %p296 = scmp.ne.s32.totalorder %s287, %s288
      %p297 = scmp.eq.s32.totalorder %s88, 0
      %p298 = por %p296, %p297
      %p299 = scmp.ne.s32.totalorder %s287, %s288
      %p300 = scmp.eq.s32.totalorder %s89, 7
      %p301 = por %p299, %p300
      %p303 = scmp.ne.s32.totalorder %s288, %s302
      %p304 = scmp.eq.s32.totalorder %s89, 0
      %p305 = por %p303, %p304
      %s307 = sadd.s32 %s306, 1
      %p310 = scmp.eq.s32.totalorder %s83, 7
      %p311 = scmp.ne.s32.totalorder %s306, %s308
      %p312 = scmp.eq.s32.totalorder %s83, 0
      %p313 = por %p311, %p312
      %p314 = scmp.ne.s32.totalorder %s306, %s308
      %p315 = scmp.eq.s32.totalorder %s88, 7
      %p316 = por %p314, %p315
      %p317 = scmp.ne.s32.totalorder %s308, %s309
      %p318 = scmp.eq.s32.totalorder %s88, 0
      %p319 = por %p317, %p318
      %p320 = scmp.ne.s32.totalorder %s308, %s309
      %p321 = scmp.eq.s32.totalorder %s89, 7
      %p322 = por %p320, %p321
      %p324 = scmp.ne.s32.totalorder %s309, %s323
      %p325 = scmp.eq.s32.totalorder %s89, 0
      %p326 = por %p324, %p325
      %s328 = sadd.s32 %s327, 1
      %p331 = scmp.eq.s32.totalorder %s83, 7
      %p332 = scmp.ne.s32.totalorder %s327, %s329
      %p333 = scmp.eq.s32.totalorder %s83, 0
      %p334 = por %p332, %p333
      %p335 = scmp.ne.s32.totalorder %s327, %s329
      %p336 = scmp.eq.s32.totalorder %s88, 7
      %p337 = por %p335, %p336
      %p338 = scmp.ne.s32.totalorder %s329, %s330
      %p339 = scmp.eq.s32.totalorder %s88, 0
      %p340 = por %p338, %p339
      %p341 = scmp.ne.s32.totalorder %s329, %s330
      %p342 = scmp.eq.s32.totalorder %s89, 7
      %p343 = por %p341, %p342
      %p345 = scmp.ne.s32.totalorder %s330, %s344
      %p346 = scmp.eq.s32.totalorder %s89, 0
      %p347 = por %p345, %p346
      %s349 = sadd.s32 %s348, 1
      %p352 = scmp.eq.s32.totalorder %s83, 7
      %p353 = scmp.ne.s32.totalorder %s348, %s350
      %p354 = scmp.eq.s32.totalorder %s83, 0
      %p355 = por %p353, %p354
      %p356 = scmp.ne.s32.totalorder %s348, %s350
      %p357 = scmp.eq.s32.totalorder %s88, 7
      %p358 = por %p356, %p357
      %p359 = scmp.ne.s32.totalorder %s350, %s351
      %p360 = scmp.eq.s32.totalorder %s88, 0
      %p361 = por %p359, %p360
      %p362 = scmp.ne.s32.totalorder %s350, %s351
      %p363 = scmp.eq.s32.totalorder %s89, 7
      %p364 = por %p362, %p363
      %p366 = scmp.ne.s32.totalorder %s351, %s365
      %p367 = scmp.eq.s32.totalorder %s89, 0
      %p368 = por %p366, %p367
      %s370 = sadd.s32 %s369, 1
      %p373 = scmp.eq.s32.totalorder %s83, 7
      %p374 = scmp.ne.s32.totalorder %s369, %s371
      %p375 = scmp.eq.s32.totalorder %s83, 0
      %p376 = por %p374, %p375
      %p377 = scmp.ne.s32.totalorder %s369, %s371
      %p378 = scmp.eq.s32.totalorder %s88, 7
      %p379 = por %p377, %p378
      %p380 = scmp.ne.s32.totalorder %s371, %s372
      %p381 = scmp.eq.s32.totalorder %s88, 0
      %p382 = por %p380, %p381
      %p383 = scmp.ne.s32.totalorder %s371, %s372
      %p384 = scmp.eq.s32.totalorder %s89, 7
      %p385 = por %p383, %p384
      %p387 = scmp.ne.s32.totalorder %s372, %s386
      %p388 = scmp.eq.s32.totalorder %s89, 0
      %p389 = por %p387, %p388
      %s391 = sadd.s32 %s390, 1
      %p394 = scmp.eq.s32.totalorder %s83, 7
      %p395 = scmp.ne.s32.totalorder %s390, %s392
      %p396 = scmp.eq.s32.totalorder %s83, 0
      %p397 = por %p395, %p396
      %p398 = scmp.ne.s32.totalorder %s390, %s392
      %p399 = scmp.eq.s32.totalorder %s88, 7
      %p400 = por %p398, %p399
      %p401 = scmp.ne.s32.totalorder %s392, %s393
      %p402 = scmp.eq.s32.totalorder %s88, 0
      %p403 = por %p401, %p402
      %p404 = scmp.ne.s32.totalorder %s392, %s393
      %p405 = scmp.eq.s32.totalorder %s89, 7
      %p406 = por %p404, %p405
      %p408 = scmp.ne.s32.totalorder %s393, %s407
      %p409 = scmp.eq.s32.totalorder %s89, 0
      %p410 = por %p408, %p409
      %s412 = sadd.s32 %s411, 1
      %p415 = scmp.eq.s32.totalorder %s83, 7
      %p416 = scmp.ne.s32.totalorder %s411, %s413
      %p417 = scmp.eq.s32.totalorder %s83, 0
      %p418 = por %p416, %p417
      %p419 = scmp.ne.s32.totalorder %s411, %s413
      %p420 = scmp.eq.s32.totalorder %s88, 7
      %p421 = por %p419, %p420
      %p422 = scmp.ne.s32.totalorder %s413, %s414
      %p423 = scmp.eq.s32.totalorder %s88, 0
      %p424 = por %p422, %p423
      %p425 = scmp.ne.s32.totalorder %s413, %s414
      %p426 = scmp.eq.s32.totalorder %s89, 7
      %p427 = por %p425, %p426
      %p429 = scmp.ne.s32.totalorder %s414, %s428
      %p430 = scmp.eq.s32.totalorder %s89, 0
      %p431 = por %p429, %p430
      %s433 = sadd.s32 %s432, 1
      %p436 = scmp.eq.s32.totalorder %s83, 7
      %p437 = scmp.ne.s32.totalorder %s432, %s434
      %p438 = scmp.eq.s32.totalorder %s83, 0
      %p439 = por %p437, %p438
      %p440 = scmp.ne.s32.totalorder %s432, %s434
      %p441 = scmp.eq.s32.totalorder %s88, 7
      %p442 = por %p440, %p441
      %p443 = scmp.ne.s32.totalorder %s434, %s435
      %p444 = scmp.eq.s32.totalorder %s88, 0
      %p445 = por %p443, %p444
      %p446 = scmp.ne.s32.totalorder %s434, %s435
      %p447 = scmp.eq.s32.totalorder %s89, 7
      %p448 = por %p446, %p447
      %p450 = scmp.ne.s32.totalorder %s435, %s449
      %p451 = scmp.eq.s32.totalorder %s89, 0
      %p452 = por %p450, %p451
      %s454 = sadd.s32 %s453, 1
      %p457 = scmp.eq.s32.totalorder %s83, 7
      %p458 = scmp.ne.s32.totalorder %s453, %s455
      %p459 = scmp.eq.s32.totalorder %s83, 0
      %p460 = por %p458, %p459
      %p461 = scmp.ne.s32.totalorder %s453, %s455
      %p462 = scmp.eq.s32.totalorder %s88, 7
      %p463 = por %p461, %p462
      %p464 = scmp.ne.s32.totalorder %s455, %s456
      %p465 = scmp.eq.s32.totalorder %s88, 0
      %p466 = por %p464, %p465
      %p467 = scmp.ne.s32.totalorder %s455, %s456
      %p468 = scmp.eq.s32.totalorder %s89, 7
      %p469 = por %p467, %p468
      %p471 = scmp.ne.s32.totalorder %s456, %s470
      %p472 = scmp.eq.s32.totalorder %s89, 0
      %p473 = por %p471, %p472
      %s475 = sadd.s32 %s474, 1
      %p478 = scmp.eq.s32.totalorder %s83, 7
      %p479 = scmp.ne.s32.totalorder %s474, %s476
      %p480 = scmp.eq.s32.totalorder %s83, 0
      %p481 = por %p479, %p480
      %p482 = scmp.ne.s32.totalorder %s474, %s476
      %p483 = scmp.eq.s32.totalorder %s88, 7
      %p484 = por %p482, %p483
      %p485 = scmp.ne.s32.totalorder %s476, %s477
      %p486 = scmp.eq.s32.totalorder %s88, 0
      %p487 = por %p485, %p486
      %p488 = scmp.ne.s32.totalorder %s476, %s477
      %p489 = scmp.eq.s32.totalorder %s89, 7
      %p490 = por %p488, %p489
      %p492 = scmp.ne.s32.totalorder %s477, %s491
      %p493 = scmp.eq.s32.totalorder %s89, 0
      %p494 = por %p492, %p493
      %s496 = sadd.s32 %s495, 1
      %p499 = scmp.eq.s32.totalorder %s83, 7
      %p500 = scmp.ne.s32.totalorder %s495, %s497
      %p501 = scmp.eq.s32.totalorder %s83, 0
      %p502 = por %p500, %p501
      %p503 = scmp.ne.s32.totalorder %s495, %s497
      %p504 = scmp.eq.s32.totalorder %s88, 7
      %p505 = por %p503, %p504
      %p506 = scmp.ne.s32.totalorder %s497, %s498
      %p507 = scmp.eq.s32.totalorder %s88, 0
      %p508 = por %p506, %p507
      %p509 = scmp.ne.s32.totalorder %s497, %s498
      %p510 = scmp.eq.s32.totalorder %s89, 7
      %p511 = por %p509, %p510
      %p513 = scmp.ne.s32.totalorder %s498, %s512
      %p514 = scmp.eq.s32.totalorder %s89, 0
      %p515 = por %p513, %p514
      %s517 = sadd.s32 %s516, 1
      %p520 = scmp.eq.s32.totalorder %s83, 7
      %p521 = scmp.ne.s32.totalorder %s516, %s518
      %p522 = scmp.eq.s32.totalorder %s83, 0
      %p523 = por %p521, %p522
      %p524 = scmp.ne.s32.totalorder %s516, %s518
      %p525 = scmp.eq.s32.totalorder %s88, 7
      %p526 = por %p524, %p525
      %p527 = scmp.ne.s32.totalorder %s518, %s519
      %p528 = scmp.eq.s32.totalorder %s88, 0
      %p529 = por %p527, %p528
      %p530 = scmp.ne.s32.totalorder %s518, %s519
      %p531 = scmp.eq.s32.totalorder %s89, 7
      %p532 = por %p530, %p531
      %p534 = scmp.ne.s32.totalorder %s519, %s533
      %p535 = scmp.eq.s32.totalorder %s89, 0
      %p536 = por %p534, %p535
      %s538 = sadd.s32 %s537, 1
      %p541 = scmp.eq.s32.totalorder %s83, 7
      %p542 = scmp.ne.s32.totalorder %s537, %s539
      %p543 = scmp.eq.s32.totalorder %s83, 0
      %p544 = por %p542, %p543
      %p545 = scmp.ne.s32.totalorder %s537, %s539
      %p546 = scmp.eq.s32.totalorder %s88, 7
      %p547 = por %p545, %p546
      %p548 = scmp.ne.s32.totalorder %s539, %s540
      %p549 = scmp.eq.s32.totalorder %s88, 0
      %p550 = por %p548, %p549
      %p551 = scmp.ne.s32.totalorder %s539, %s540
      %p552 = scmp.eq.s32.totalorder %s89, 7
      %p553 = por %p551, %p552
      %p555 = scmp.ne.s32.totalorder %s540, %s554
      %p556 = scmp.eq.s32.totalorder %s89, 0
      %p557 = por %p555, %p556
      %s559 = sadd.s32 %s558, 1
      %p562 = scmp.eq.s32.totalorder %s83, 7
      %p563 = scmp.ne.s32.totalorder %s558, %s560
      %p564 = scmp.eq.s32.totalorder %s83, 0
      %p565 = por %p563, %p564
      %p566 = scmp.ne.s32.totalorder %s558, %s560
      %p567 = scmp.eq.s32.totalorder %s88, 7
      %p568 = por %p566, %p567
      %p569 = scmp.ne.s32.totalorder %s560, %s561
      %p570 = scmp.eq.s32.totalorder %s88, 0
      %p571 = por %p569, %p570
      %p572 = scmp.ne.s32.totalorder %s560, %s561
      %p573 = scmp.eq.s32.totalorder %s89, 7
      %p574 = por %p572, %p573
      %p576 = scmp.ne.s32.totalorder %s561, %s575
      %p577 = scmp.eq.s32.totalorder %s89, 0
      %p578 = por %p576, %p577
      %s580 = sadd.s32 %s579, 1
      %p583 = scmp.eq.s32.totalorder %s83, 7
      %p584 = scmp.ne.s32.totalorder %s579, %s581
      %p585 = scmp.eq.s32.totalorder %s83, 0
      %p586 = por %p584, %p585
      %p587 = scmp.ne.s32.totalorder %s579, %s581
      %p588 = scmp.eq.s32.totalorder %s88, 7
      %p589 = por %p587, %p588
      %p590 = scmp.ne.s32.totalorder %s581, %s582
      %p591 = scmp.eq.s32.totalorder %s88, 0
      %p592 = por %p590, %p591
      %p593 = scmp.ne.s32.totalorder %s581, %s582
      %p594 = scmp.eq.s32.totalorder %s89, 7
      %p595 = por %p593, %p594
      %p597 = scmp.ne.s32.totalorder %s582, %s596
      %p598 = scmp.eq.s32.totalorder %s89, 0
      %p599 = por %p597, %p598
      %s601 = sadd.s32 %s600, 1
      %p604 = scmp.eq.s32.totalorder %s83, 7
      %p605 = scmp.ne.s32.totalorder %s600, %s602
      %p606 = scmp.eq.s32.totalorder %s83, 0
      %p607 = por %p605, %p606
      %p608 = scmp.ne.s32.totalorder %s600, %s602
      %p609 = scmp.eq.s32.totalorder %s88, 7
      %p610 = por %p608, %p609
      %p611 = scmp.ne.s32.totalorder %s602, %s603
      %p612 = scmp.eq.s32.totalorder %s88, 0
      %p613 = por %p611, %p612
      %p614 = scmp.ne.s32.totalorder %s602, %s603
      %p615 = scmp.eq.s32.totalorder %s89, 7
      %p616 = por %p614, %p615
      %p618 = scmp.ne.s32.totalorder %s603, %s617
      %p619 = scmp.eq.s32.totalorder %s89, 0
      %p620 = por %p618, %p619
      %s621 = ssub.s32 %s83, %s90
      %p622 = scmp.eq.s32.totalorder %s621, 0
      %s624 = sadd.s32 %s623, 1
      %s625 = scalar_select %p622, %s623, %s624
      %p628 = pneg %p622
      %p629 = scmp.eq.s32.totalorder %s83, 7
      %p630 = por %p628, %p629
      %p631 = scmp.ne.s32.totalorder %s623, %s626
      %p632 = scmp.eq.s32.totalorder %s83, 0
      %p633 = por %p631, %p632
      %p634 = scmp.ne.s32.totalorder %s623, %s626
      %p635 = scmp.eq.s32.totalorder %s88, 7
      %p636 = por %p634, %p635
      %p637 = scmp.ne.s32.totalorder %s626, %s627
      %p638 = scmp.eq.s32.totalorder %s88, 0
      %p639 = por %p637, %p638
      %p640 = scmp.ne.s32.totalorder %s626, %s627
      %p641 = scmp.eq.s32.totalorder %s89, 7
      %p642 = por %p640, %p641
      %p644 = scmp.ne.s32.totalorder %s627, %s643
      %p645 = scmp.eq.s32.totalorder %s89, 0
      %p646 = por %p644, %p645
      %s648 = sadd.s32 %s647, 1
      %p651 = scmp.eq.s32.totalorder %s83, 7
      %p652 = scmp.ne.s32.totalorder %s647, %s649
      %p653 = scmp.eq.s32.totalorder %s83, 0
      %p654 = por %p652, %p653
      %p655 = scmp.ne.s32.totalorder %s647, %s649
      %p656 = scmp.eq.s32.totalorder %s88, 7
      %p657 = por %p655, %p656
      %p658 = scmp.ne.s32.totalorder %s649, %s650
      %p659 = scmp.eq.s32.totalorder %s88, 0
      %p660 = por %p658, %p659
      %p661 = scmp.ne.s32.totalorder %s649, %s650
      %p662 = scmp.eq.s32.totalorder %s89, 7
      %p663 = por %p661, %p662
      %p665 = scmp.ne.s32.totalorder %s650, %s664
      %p666 = scmp.eq.s32.totalorder %s89, 0
      %p667 = por %p665, %p666
      %s669 = sadd.s32 %s668, 1
      %p672 = scmp.eq.s32.totalorder %s83, 7
      %p673 = scmp.ne.s32.totalorder %s668, %s670
      %p674 = scmp.eq.s32.totalorder %s83, 0
      %p675 = por %p673, %p674
      %p676 = scmp.ne.s32.totalorder %s668, %s670
      %p677 = scmp.eq.s32.totalorder %s88, 7
      %p678 = por %p676, %p677
      %p679 = scmp.ne.s32.totalorder %s670, %s671
      %p680 = scmp.eq.s32.totalorder %s88, 0
      %p681 = por %p679, %p680
      %p682 = scmp.ne.s32.totalorder %s670, %s671
      %p683 = scmp.eq.s32.totalorder %s89, 7
      %p684 = por %p682, %p683
      %p686 = scmp.ne.s32.totalorder %s671, %s685
      %p687 = scmp.eq.s32.totalorder %s89, 0
      %p688 = por %p686, %p687
      %s690 = sadd.s32 %s689, 1
      %p693 = scmp.eq.s32.totalorder %s83, 7
      %p694 = scmp.ne.s32.totalorder %s689, %s691
      %p695 = scmp.eq.s32.totalorder %s83, 0
      %p696 = por %p694, %p695
      %p697 = scmp.ne.s32.totalorder %s689, %s691
      %p698 = scmp.eq.s32.totalorder %s88, 7
      %p699 = por %p697, %p698
      %p700 = scmp.ne.s32.totalorder %s691, %s692
      %p701 = scmp.eq.s32.totalorder %s88, 0
      %p702 = por %p700, %p701
      %p703 = scmp.ne.s32.totalorder %s691, %s692
      %p704 = scmp.eq.s32.totalorder %s89, 7
      %p705 = por %p703, %p704
      %p707 = scmp.ne.s32.totalorder %s692, %s706
      %p708 = scmp.eq.s32.totalorder %s89, 0
      %p709 = por %p707, %p708
      %s711 = sadd.s32 %s710, 1
      %p714 = scmp.eq.s32.totalorder %s83, 7
      %p715 = scmp.ne.s32.totalorder %s710, %s712
      %p716 = scmp.eq.s32.totalorder %s83, 0
      %p717 = por %p715, %p716
      %p718 = scmp.ne.s32.totalorder %s710, %s712
      %p719 = scmp.eq.s32.totalorder %s88, 7
      %p720 = por %p718, %p719
      %p721 = scmp.ne.s32.totalorder %s712, %s713
      %p722 = scmp.eq.s32.totalorder %s88, 0
      %p723 = por %p721, %p722
      %p724 = scmp.ne.s32.totalorder %s712, %s713
      %p725 = scmp.eq.s32.totalorder %s89, 7
      %p726 = por %p724, %p725
      %p728 = scmp.ne.s32.totalorder %s713, %s727
      %p729 = scmp.eq.s32.totalorder %s89, 0
      %p730 = por %p728, %p729
      %p731 = scmp.le.s32.totalorder 1, %s83
      %p732 = scmp.lt.s32.totalorder %s83, 9
      %p733 = pnand %p731, %p732
      %p734 = pneg %p733
      // Predicated region
      $region9: #{tpu_custom_call.1} parent=5 // pred_check
        _
      $region10: #{tpu_custom_call.1} parent=5 // pred_check_branch
        %736 = sbr.rel (%p733) target = $region12
      $region11: #{tpu_custom_call.1} parent=5 // pred_region
        %s737 = ssub.s32 %s83, 1
        // Predicated region
        $region13: #{tpu_custom_call.1} parent=11 // pred_check
          %p738 = pneg %p130
        $region14: #{tpu_custom_call.1} parent=11 // pred_check_branch
          %740 = sbr.rel (%p738) target = $region16
        $region15: #{tpu_custom_call.1} parent=11 // pred_region
          %s742 = ssub.s32 128, 128
          %743 = vsyncadd [#allocation10], %s742
          %s745 = sshll.u32 [#allocation9], 4
          %s746 = int_to_ptr.vmem [resolvable:$true] %s745
          %748 = dma.hbm_to_vmem [thread:$0]  %s3, 128, %s746, [#allocation10]
        $region16: #{tpu_custom_call.1} parent=11 // pred_fallthru
          _
        // Predicated region
        $region17: #{tpu_custom_call.1} parent=11 // pred_check
          %p749 = pneg %p151
        $region18: #{tpu_custom_call.1} parent=11 // pred_check_branch
          %751 = sbr.rel (%p749) target = $region20
        $region19: #{tpu_custom_call.1} parent=11 // pred_region
          %s753 = ssub.s32 128, 128
          %754 = vsyncadd [#allocation10], %s753
          %s756 = sshll.u32 [#allocation11], 4
          %s757 = int_to_ptr.vmem [resolvable:$true] %s756
          %759 = dma.hbm_to_vmem [thread:$0]  %s5, 128, %s757, [#allocation10]
        $region20: #{tpu_custom_call.1} parent=11 // pred_fallthru
          _
        // Predicated region
        $region21: #{tpu_custom_call.1} parent=11 // pred_check
          %p760 = pneg %p172
        $region22: #{tpu_custom_call.1} parent=11 // pred_check_branch
          %762 = sbr.rel (%p760) target = $region24
        $region23: #{tpu_custom_call.1} parent=11 // pred_region
          %s764 = ssub.s32 128, 128
          %765 = vsyncadd [#allocation13], %s764
          %s767 = sshll.u32 [#allocation12], 4
          %s768 = int_to_ptr.vmem [resolvable:$true] %s767
          %770 = dma.hbm_to_vmem [thread:$0]  %s7, 128, %s768, [#allocation13]
        $region24: #{tpu_custom_call.1} parent=11 // pred_fallthru
          _
        // Predicated region
        $region25: #{tpu_custom_call.1} parent=11 // pred_check
          %p771 = pneg %p193
        $region26: #{tpu_custom_call.1} parent=11 // pred_check_branch
          %773 = sbr.rel (%p771) target = $region28
        $region27: #{tpu_custom_call.1} parent=11 // pred_region
          %s775 = ssub.s32 128, 128
          %776 = vsyncadd [#allocation13], %s775
          %s778 = sshll.u32 [#allocation14], 4
          %s779 = int_to_ptr.vmem [resolvable:$true] %s778
          %781 = dma.hbm_to_vmem [thread:$0]  %s9, 128, %s779, [#allocation13]
        $region28: #{tpu_custom_call.1} parent=11 // pred_fallthru
          _
        // Predicated region
        $region29: #{tpu_custom_call.1} parent=11 // pred_check
          %p782 = pneg %p214
        $region30: #{tpu_custom_call.1} parent=11 // pred_check_branch
          %784 = sbr.rel (%p782) target = $region32
        $region31: #{tpu_custom_call.1} parent=11 // pred_region
          %s786 = ssub.s32 640, 640
          %787 = vsyncadd [#allocation16], %s786
          %s788 = sshll.u32 [#allocation15], 4
          %s789 = int_to_ptr.vmem [resolvable:$true] %s788
          %794 = dma.hbm_to_vmem [thread:$0]  %s11, 640, %s789, [#allocation16], 128, 128, 8
        $region32: #{tpu_custom_call.1} parent=11 // pred_fallthru
          _
        // Predicated region
        $region33: #{tpu_custom_call.1} parent=11 // pred_check
          %p795 = pneg %p235
        $region34: #{tpu_custom_call.1} parent=11 // pred_check_branch
          %797 = sbr.rel (%p795) target = $region36
        $region35: #{tpu_custom_call.1} parent=11 // pred_region
          %s799 = ssub.s32 16, 16
          %800 = vsyncadd [#allocation16], %s799
          %s802 = sshll.u32 [#allocation17], 4
          %s803 = int_to_ptr.vmem [resolvable:$true] %s802
          %805 = dma.hbm_to_vmem [thread:$0]  %s13, 16, %s803, [#allocation16]
        $region36: #{tpu_custom_call.1} parent=11 // pred_fallthru
          _
        // Predicated region
        $region37: #{tpu_custom_call.1} parent=11 // pred_check
          %p806 = pneg %p256
        $region38: #{tpu_custom_call.1} parent=11 // pred_check_branch
          %808 = sbr.rel (%p806) target = $region40
        $region39: #{tpu_custom_call.1} parent=11 // pred_region
          %s810 = ssub.s32 1024, 1024
          %811 = vsyncadd [#allocation19], %s810
          %s812 = sshll.u32 [#allocation18], 4
          %s813 = int_to_ptr.vmem [resolvable:$true] %s812
          %818 = dma.hbm_to_vmem [thread:$0]  %s15, 1024, %s813, [#allocation19], 128, 128, 8
        $region40: #{tpu_custom_call.1} parent=11 // pred_fallthru
          _
        // Predicated region
        $region41: #{tpu_custom_call.1} parent=11 // pred_check
          %p819 = pneg %p277
        $region42: #{tpu_custom_call.1} parent=11 // pred_check_branch
          %821 = sbr.rel (%p819) target = $region44
        $region43: #{tpu_custom_call.1} parent=11 // pred_region
          %s823 = ssub.s32 16, 16
          %824 = vsyncadd [#allocation19], %s823
          %s826 = sshll.u32 [#allocation20], 4
          %s827 = int_to_ptr.vmem [resolvable:$true] %s826
          %829 = dma.hbm_to_vmem [thread:$0]  %s17, 16, %s827, [#allocation19]
        $region44: #{tpu_custom_call.1} parent=11 // pred_fallthru
          _
        // Predicated region
        $region45: #{tpu_custom_call.1} parent=11 // pred_check
          %p830 = pneg %p298
        $region46: #{tpu_custom_call.1} parent=11 // pred_check_branch
          %832 = sbr.rel (%p830) target = $region48
        $region47: #{tpu_custom_call.1} parent=11 // pred_region
          _
        $region48: #{tpu_custom_call.1} parent=11 // pred_fallthru
          _
        // Predicated region
        $region49: #{tpu_custom_call.1} parent=11 // pred_check
          %p833 = pneg %p319
        $region50: #{tpu_custom_call.1} parent=11 // pred_check_branch
          %835 = sbr.rel (%p833) target = $region52
        $region51: #{tpu_custom_call.1} parent=11 // pred_region
          %s837 = ssub.s32 16, 16
          %838 = vsyncadd [#allocation22], %s837
          %s840 = sshll.u32 [#allocation21], 4
          %s841 = int_to_ptr.vmem [resolvable:$true] %s840
          %843 = dma.hbm_to_vmem [thread:$0]  %s21, 16, %s841, [#allocation22]
        $region52: #{tpu_custom_call.1} parent=11 // pred_fallthru
          _
        // Predicated region
        $region53: #{tpu_custom_call.1} parent=11 // pred_check
          %p844 = pneg %p340
        $region54: #{tpu_custom_call.1} parent=11 // pred_check_branch
          %846 = sbr.rel (%p844) target = $region56
        $region55: #{tpu_custom_call.1} parent=11 // pred_region
          %s848 = ssub.s32 2048, 2048
          %849 = vsyncadd [#allocation22], %s848
          %s850 = sshll.u32 [#allocation23], 4
          %s851 = int_to_ptr.vmem [resolvable:$true] %s850
          %856 = dma.hbm_to_vmem [thread:$0]  %s23, 2048, %s851, [#allocation22], 256, 256, 16
        $region56: #{tpu_custom_call.1} parent=11 // pred_fallthru
          _
        // Predicated region
        $region57: #{tpu_custom_call.1} parent=11 // pred_check
          %p857 = pneg %p361
        $region58: #{tpu_custom_call.1} parent=11 // pred_check_branch
          %859 = sbr.rel (%p857) target = $region60
        $region59: #{tpu_custom_call.1} parent=11 // pred_region
          %s861 = ssub.s32 1024, 1024
          %862 = vsyncadd [#allocation25], %s861
          %s863 = sshll.u32 [#allocation24], 4
          %s864 = int_to_ptr.vmem [resolvable:$true] %s863
          %869 = dma.hbm_to_vmem [thread:$0]  %s25, 1024, %s864, [#allocation25], 256, 256, 16
        $region60: #{tpu_custom_call.1} parent=11 // pred_fallthru
          _
        // Predicated region
        $region61: #{tpu_custom_call.1} parent=11 // pred_check
          %p870 = pneg %p382
        $region62: #{tpu_custom_call.1} parent=11 // pred_check_branch
          %872 = sbr.rel (%p870) target = $region64
        $region63: #{tpu_custom_call.1} parent=11 // pred_region
          %s874 = ssub.s32 512, 512
          %875 = vsyncadd [#allocation25], %s874
          %s876 = sshll.u32 [#allocation26], 4
          %s877 = int_to_ptr.vmem [resolvable:$true] %s876
          %882 = dma.hbm_to_vmem [thread:$0]  %s27, 512, %s877, [#allocation25], 128, 128, 8
        $region64: #{tpu_custom_call.1} parent=11 // pred_fallthru
          _
        // Predicated region
        $region65: #{tpu_custom_call.1} parent=11 // pred_check
          %p883 = pneg %p403
        $region66: #{tpu_custom_call.1} parent=11 // pred_check_branch
          %885 = sbr.rel (%p883) target = $region68
        $region67: #{tpu_custom_call.1} parent=11 // pred_region
          %s887 = ssub.s32 16, 16
          %888 = vsyncadd [#allocation28], %s887
          %s890 = sshll.u32 [#allocation27], 4
          %s891 = int_to_ptr.vmem [resolvable:$true] %s890
          %893 = dma.hbm_to_vmem [thread:$0]  %s29, 16, %s891, [#allocation28]
        $region68: #{tpu_custom_call.1} parent=11 // pred_fallthru
          _
        // Predicated region
        $region69: #{tpu_custom_call.1} parent=11 // pred_check
          %p894 = pneg %p424
        $region70: #{tpu_custom_call.1} parent=11 // pred_check_branch
          %896 = sbr.rel (%p894) target = $region72
        $region71: #{tpu_custom_call.1} parent=11 // pred_region
          %s898 = ssub.s32 1536, 1536
          %899 = vsyncadd [#allocation28], %s898
          %s900 = sshll.u32 [#allocation29], 4
          %s901 = int_to_ptr.vmem [resolvable:$true] %s900
          %906 = dma.hbm_to_vmem [thread:$0]  %s31, 1536, %s901, [#allocation28], 384, 384, 24
        $region72: #{tpu_custom_call.1} parent=11 // pred_fallthru
          _
        // Predicated region
        $region73: #{tpu_custom_call.1} parent=11 // pred_check
          %p907 = pneg %p445
        $region74: #{tpu_custom_call.1} parent=11 // pred_check_branch
          %909 = sbr.rel (%p907) target = $region76
        $region75: #{tpu_custom_call.1} parent=11 // pred_region
          %s911 = ssub.s32 48, 48
          %912 = vsyncadd [#allocation31], %s911
          %s914 = sshll.u32 [#allocation30], 4
          %s915 = int_to_ptr.vmem [resolvable:$true] %s914
          %917 = dma.hbm_to_vmem [thread:$0]  %s33, 48, %s915, [#allocation31]
        $region76: #{tpu_custom_call.1} parent=11 // pred_fallthru
          _
        // Predicated region
        $region77: #{tpu_custom_call.1} parent=11 // pred_check
          %p918 = pneg %p466
        $region78: #{tpu_custom_call.1} parent=11 // pred_check_branch
          %920 = sbr.rel (%p918) target = $region80
        $region79: #{tpu_custom_call.1} parent=11 // pred_region
          %s922 = ssub.s32 16, 16
          %923 = vsyncadd [#allocation31], %s922
          %s925 = sshll.u32 [#allocation32], 4
          %s926 = int_to_ptr.vmem [resolvable:$true] %s925
          %928 = dma.hbm_to_vmem [thread:$0]  %s35, 16, %s926, [#allocation31]
        $region80: #{tpu_custom_call.1} parent=11 // pred_fallthru
          _
        // Predicated region
        $region81: #{tpu_custom_call.1} parent=11 // pred_check
          %p929 = pneg %p487
        $region82: #{tpu_custom_call.1} parent=11 // pred_check_branch
          %931 = sbr.rel (%p929) target = $region84
        $region83: #{tpu_custom_call.1} parent=11 // pred_region
          %s933 = ssub.s32 16, 16
          %934 = vsyncadd [#allocation34], %s933
          %s936 = sshll.u32 [#allocation33], 4
          %s937 = int_to_ptr.vmem [resolvable:$true] %s936
          %939 = dma.hbm_to_vmem [thread:$0]  %s37, 16, %s937, [#allocation34]
        $region84: #{tpu_custom_call.1} parent=11 // pred_fallthru
          _
        // Predicated region
        $region85: #{tpu_custom_call.1} parent=11 // pred_check
          %p940 = pneg %p508
        $region86: #{tpu_custom_call.1} parent=11 // pred_check_branch
          %942 = sbr.rel (%p940) target = $region88
        $region87: #{tpu_custom_call.1} parent=11 // pred_region
          %s944 = ssub.s32 64, 64
          %945 = vsyncadd [#allocation34], %s944
          %s947 = sshll.u32 [#allocation35], 4
          %s948 = int_to_ptr.vmem [resolvable:$true] %s947
          %950 = dma.hbm_to_vmem [thread:$0]  %s39, 64, %s948, [#allocation34]
        $region88: #{tpu_custom_call.1} parent=11 // pred_fallthru
          _
        // Predicated region
        $region89: #{tpu_custom_call.1} parent=11 // pred_check
          %p951 = pneg %p529
        $region90: #{tpu_custom_call.1} parent=11 // pred_check_branch
          %953 = sbr.rel (%p951) target = $region92
        $region91: #{tpu_custom_call.1} parent=11 // pred_region
          _
        $region92: #{tpu_custom_call.1} parent=11 // pred_fallthru
          _
        // Predicated region
        $region93: #{tpu_custom_call.1} parent=11 // pred_check
          %p954 = pneg %p550
        $region94: #{tpu_custom_call.1} parent=11 // pred_check_branch
          %956 = sbr.rel (%p954) target = $region96
        $region95: #{tpu_custom_call.1} parent=11 // pred_region
          _
        $region96: #{tpu_custom_call.1} parent=11 // pred_fallthru
          _
        // Predicated region
        $region97: #{tpu_custom_call.1} parent=11 // pred_check
          %p957 = pneg %p571
        $region98: #{tpu_custom_call.1} parent=11 // pred_check_branch
          %959 = sbr.rel (%p957) target = $region100
        $region99: #{tpu_custom_call.1} parent=11 // pred_region
          _
        $region100: #{tpu_custom_call.1} parent=11 // pred_fallthru
          _
        // Predicated region
        $region101: #{tpu_custom_call.1} parent=11 // pred_check
          %p960 = pneg %p592
        $region102: #{tpu_custom_call.1} parent=11 // pred_check_branch
          %962 = sbr.rel (%p960) target = $region104
        $region103: #{tpu_custom_call.1} parent=11 // pred_region
          _
        $region104: #{tpu_custom_call.1} parent=11 // pred_fallthru
          _
        // Predicated region
        $region105: #{tpu_custom_call.1} parent=11 // pred_check
          %p963 = pneg %p613
        $region106: #{tpu_custom_call.1} parent=11 // pred_check_branch
          %965 = sbr.rel (%p963) target = $region108
        $region107: #{tpu_custom_call.1} parent=11 // pred_region
          _
        $region108: #{tpu_custom_call.1} parent=11 // pred_fallthru
          _
      $region12: #{tpu_custom_call.1} parent=5 // pred_fallthru
        _
      %p966 = scmp.lt.s32.totalorder %s83, 8
      // Predicated region
      $region109: #{tpu_custom_call.1} parent=5 // pred_check
        %p967 = pneg %p966
      $region110: #{tpu_custom_call.1} parent=5 // pred_check_branch
        %969 = sbr.rel (%p967) target = $region112
      $region111: #{tpu_custom_call.1} parent=5 // pred_region
        // Predicated region
        $region113: #{tpu_custom_call.1} parent=111 // pred_check
          %p970 = pneg %p103
        $region114: #{tpu_custom_call.1} parent=111 // pred_check_branch
          %972 = sbr.rel (%p970) target = $region116
        $region115: #{tpu_custom_call.1} parent=111 // pred_region
          %s973 = sand.u32 %s93, 1
          %s974 = scalar_lea.sflag [#allocation7], %s973
          %s975 = sand.u32 %s93, 1
          %s976 = smul.addr %s975, 8
          %s977 = scalar_lea.vmem [#allocation6], %s976
          %s979 = ssub.s32 128, 128
          %980 = vsyncadd %s974, %s979
          %s981 = smul.addr %s83, 128
          %s982 = scalar_lea.hbm %s1, %s981
          %s984 = sshll.u32 %s977, 4
          %s985 = int_to_ptr.vmem [resolvable:$true] %s984
          %987 = dma.hbm_to_vmem [thread:$0]  %s982, 128, %s985, %s974
        $region116: #{tpu_custom_call.1} parent=111 // pred_fallthru
          _
      $region112: #{tpu_custom_call.1} parent=5 // pred_fallthru
        _
      %p988 = scmp.le.s32.totalorder 1, %s83
      %p989 = scmp.lt.s32.totalorder %s83, 9
      %p990 = pnand %p988, %p989
      %p991 = pneg %p990
      // Predicated region
      $region117: #{tpu_custom_call.1} parent=5 // pred_check
        _
      $region118: #{tpu_custom_call.1} parent=5 // pred_check_branch
        %993 = sbr.rel (%p990) target = $region120
      $region119: #{tpu_custom_call.1} parent=5 // pred_region
        %s994 = ssub.s32 %s83, 1
        %s995 = sand.u32 %s96, 1
        %s996 = scalar_lea.sflag [#allocation7], %s995
        %s997 = sand.u32 %s96, 1
        %s998 = smul.addr %s997, 8
        %s999 = scalar_lea.vmem [#allocation6], %s998
        // Predicated region
        $region121: #{tpu_custom_call.1} parent=119 // pred_check
          %p1000 = pneg %p109
        $region122: #{tpu_custom_call.1} parent=119 // pred_check_branch
          %1002 = sbr.rel (%p1000) target = $region124
        $region123: #{tpu_custom_call.1} parent=119 // pred_region
          %1003 = dma.done %s996, 128
        $region124: #{tpu_custom_call.1} parent=119 // pred_fallthru
          _
        // Predicated region
        $region125: #{tpu_custom_call.1} parent=119 // pred_check
          %p1004 = pneg %p130
        $region126: #{tpu_custom_call.1} parent=119 // pred_check_branch
          %1006 = sbr.rel (%p1004) target = $region128
        $region127: #{tpu_custom_call.1} parent=119 // pred_region
          %1007 = dma.done [#allocation10], 128
        $region128: #{tpu_custom_call.1} parent=119 // pred_fallthru
          _
        // Predicated region
        $region129: #{tpu_custom_call.1} parent=119 // pred_check
          %p1008 = pneg %p151
        $region130: #{tpu_custom_call.1} parent=119 // pred_check_branch
          %1010 = sbr.rel (%p1008) target = $region132
        $region131: #{tpu_custom_call.1} parent=119 // pred_region
          %1011 = dma.done [#allocation10], 128
        $region132: #{tpu_custom_call.1} parent=119 // pred_fallthru
          _
        // Predicated region
        $region133: #{tpu_custom_call.1} parent=119 // pred_check
          %p1012 = pneg %p172
        $region134: #{tpu_custom_call.1} parent=119 // pred_check_branch
          %1014 = sbr.rel (%p1012) target = $region136
        $region135: #{tpu_custom_call.1} parent=119 // pred_region
          %1015 = dma.done [#allocation13], 128
        $region136: #{tpu_custom_call.1} parent=119 // pred_fallthru
          _
        // Predicated region
        $region137: #{tpu_custom_call.1} parent=119 // pred_check
          %p1016 = pneg %p193
        $region138: #{tpu_custom_call.1} parent=119 // pred_check_branch
          %1018 = sbr.rel (%p1016) target = $region140
        $region139: #{tpu_custom_call.1} parent=119 // pred_region
          %1019 = dma.done [#allocation13], 128
        $region140: #{tpu_custom_call.1} parent=119 // pred_fallthru
          _
        // Predicated region
        $region141: #{tpu_custom_call.1} parent=119 // pred_check
          %p1020 = pneg %p214
        $region142: #{tpu_custom_call.1} parent=119 // pred_check_branch
          %1022 = sbr.rel (%p1020) target = $region144
        $region143: #{tpu_custom_call.1} parent=119 // pred_region
          %1023 = dma.done [#allocation16], 640
        $region144: #{tpu_custom_call.1} parent=119 // pred_fallthru
          _
        // Predicated region
        $region145: #{tpu_custom_call.1} parent=119 // pred_check
          %p1024 = pneg %p235
        $region146: #{tpu_custom_call.1} parent=119 // pred_check_branch
          %1026 = sbr.rel (%p1024) target = $region148
        $region147: #{tpu_custom_call.1} parent=119 // pred_region
          %1027 = dma.done [#allocation16], 16
        $region148: #{tpu_custom_call.1} parent=119 // pred_fallthru
          _
        // Predicated region
        $region149: #{tpu_custom_call.1} parent=119 // pred_check
          %p1028 = pneg %p256
        $region150: #{tpu_custom_call.1} parent=119 // pred_check_branch
          %1030 = sbr.rel (%p1028) target = $region152
        $region151: #{tpu_custom_call.1} parent=119 // pred_region
          %1031 = dma.done [#allocation19], 1024
        $region152: #{tpu_custom_call.1} parent=119 // pred_fallthru
          _
        // Predicated region
        $region153: #{tpu_custom_call.1} parent=119 // pred_check
          %p1032 = pneg %p277
        $region154: #{tpu_custom_call.1} parent=119 // pred_check_branch
          %1034 = sbr.rel (%p1032) target = $region156
        $region155: #{tpu_custom_call.1} parent=119 // pred_region
          %1035 = dma.done [#allocation19], 16
        $region156: #{tpu_custom_call.1} parent=119 // pred_fallthru
          _
        // Predicated region
        $region157: #{tpu_custom_call.1} parent=119 // pred_check
          %p1036 = pneg %p319
        $region158: #{tpu_custom_call.1} parent=119 // pred_check_branch
          %1038 = sbr.rel (%p1036) target = $region160
        $region159: #{tpu_custom_call.1} parent=119 // pred_region
          %1039 = dma.done [#allocation22], 16
        $region160: #{tpu_custom_call.1} parent=119 // pred_fallthru
          _
        // Predicated region
        $region161: #{tpu_custom_call.1} parent=119 // pred_check
          %p1040 = pneg %p340
        $region162: #{tpu_custom_call.1} parent=119 // pred_check_branch
          %1042 = sbr.rel (%p1040) target = $region164
        $region163: #{tpu_custom_call.1} parent=119 // pred_region
          %1043 = dma.done [#allocation22], 2048
        $region164: #{tpu_custom_call.1} parent=119 // pred_fallthru
          _
        // Predicated region
        $region165: #{tpu_custom_call.1} parent=119 // pred_check
          %p1044 = pneg %p361
        $region166: #{tpu_custom_call.1} parent=119 // pred_check_branch
          %1046 = sbr.rel (%p1044) target = $region168
        $region167: #{tpu_custom_call.1} parent=119 // pred_region
          %1047 = dma.done [#allocation25], 1024
        $region168: #{tpu_custom_call.1} parent=119 // pred_fallthru
          _
        // Predicated region
        $region169: #{tpu_custom_call.1} parent=119 // pred_check
          %p1048 = pneg %p382
        $region170: #{tpu_custom_call.1} parent=119 // pred_check_branch
          %1050 = sbr.rel (%p1048) target = $region172
        $region171: #{tpu_custom_call.1} parent=119 // pred_region
          %1051 = dma.done [#allocation25], 512
        $region172: #{tpu_custom_call.1} parent=119 // pred_fallthru
          _
        // Predicated region
        $region173: #{tpu_custom_call.1} parent=119 // pred_check
          %p1052 = pneg %p403
        $region174: #{tpu_custom_call.1} parent=119 // pred_check_branch
          %1054 = sbr.rel (%p1052) target = $region176
        $region175: #{tpu_custom_call.1} parent=119 // pred_region
          %1055 = dma.done [#allocation28], 16
        $region176: #{tpu_custom_call.1} parent=119 // pred_fallthru
          _
        // Predicated region
        $region177: #{tpu_custom_call.1} parent=119 // pred_check
          %p1056 = pneg %p424
        $region178: #{tpu_custom_call.1} parent=119 // pred_check_branch
          %1058 = sbr.rel (%p1056) target = $region180
        $region179: #{tpu_custom_call.1} parent=119 // pred_region
          %1059 = dma.done [#allocation28], 1536
        $region180: #{tpu_custom_call.1} parent=119 // pred_fallthru
          _
        // Predicated region
        $region181: #{tpu_custom_call.1} parent=119 // pred_check
          %p1060 = pneg %p445
        $region182: #{tpu_custom_call.1} parent=119 // pred_check_branch
          %1062 = sbr.rel (%p1060) target = $region184
        $region183: #{tpu_custom_call.1} parent=119 // pred_region
          %1063 = dma.done [#allocation31], 48
        $region184: #{tpu_custom_call.1} parent=119 // pred_fallthru
          _
        // Predicated region
        $region185: #{tpu_custom_call.1} parent=119 // pred_check
          %p1064 = pneg %p466
        $region186: #{tpu_custom_call.1} parent=119 // pred_check_branch
          %1066 = sbr.rel (%p1064) target = $region188
        $region187: #{tpu_custom_call.1} parent=119 // pred_region
          %1067 = dma.done [#allocation31], 16
        $region188: #{tpu_custom_call.1} parent=119 // pred_fallthru
          _
        // Predicated region
        $region189: #{tpu_custom_call.1} parent=119 // pred_check
          %p1068 = pneg %p487
        $region190: #{tpu_custom_call.1} parent=119 // pred_check_branch
          %1070 = sbr.rel (%p1068) target = $region192
        $region191: #{tpu_custom_call.1} parent=119 // pred_region
          %1071 = dma.done [#allocation34], 16
        $region192: #{tpu_custom_call.1} parent=119 // pred_fallthru
          _
        // Predicated region
        $region193: #{tpu_custom_call.1} parent=119 // pred_check
          %p1072 = pneg %p508
        $region194: #{tpu_custom_call.1} parent=119 // pred_check_branch
          %1074 = sbr.rel (%p1072) target = $region196
        $region195: #{tpu_custom_call.1} parent=119 // pred_region
          %1075 = dma.done [#allocation34], 64
        $region196: #{tpu_custom_call.1} parent=119 // pred_fallthru
          _
        %s1076 = sand.u32 %s96, 1
        %s1077 = scalar_lea.sflag [#allocation7], %s1076
        %s1078 = sand.u32 %s96, 1
        %s1079 = smul.addr %s1078, 8
        %s1080 = scalar_lea.vmem [#allocation6], %s1079
        %p1081 = pneg %p109
        %p1082 = pneg %p106
        %p1083 = pneg %p130
        %p1084 = pneg %p127
        %p1085 = pneg %p151
        %p1086 = pneg %p148
        %p1087 = pneg %p172
        %p1088 = pneg %p169
        %p1089 = pneg %p193
        %p1090 = pneg %p190
        %p1091 = pneg %p214
        %p1092 = pneg %p211
        %p1093 = pneg %p235
        %p1094 = pneg %p232
        %p1095 = pneg %p256
        %p1096 = pneg %p253
        %p1097 = pneg %p277
        %p1098 = pneg %p274
        %p1099 = pneg %p298
        %p1100 = pneg %p295
        %p1101 = pneg %p319
        %p1102 = pneg %p316
        %p1103 = pneg %p340
        %p1104 = pneg %p337
        %p1105 = pneg %p361
        %p1106 = pneg %p358
        %p1107 = pneg %p382
        %p1108 = pneg %p379
        %p1109 = pneg %p403
        %p1110 = pneg %p400
        %p1111 = pneg %p424
        %p1112 = pneg %p421
        %p1113 = pneg %p445
        %p1114 = pneg %p442
        %p1115 = pneg %p466
        %p1116 = pneg %p463
        %p1117 = pneg %p487
        %p1118 = pneg %p484
        %p1119 = pneg %p508
        %p1120 = pneg %p505
        %p1121 = pneg %p529
        %p1122 = pneg %p526
        %p1123 = pneg %p550
        %p1124 = pneg %p547
        %p1125 = pneg %p571
        %p1126 = pneg %p568
        %p1127 = pneg %p592
        %p1128 = pneg %p589
        %p1129 = pneg %p613
        %p1130 = pneg %p610
        %p1131 = pneg %p639
        %p1132 = pneg %p636
        %s1133 = sand.u32 %s626, 1
        %s1134 = scalar_lea.sflag [#allocation8], %s1133
        %s1135 = sand.u32 %s626, 1
        %s1136 = smul.addr %s1135, 8
        %s1137 = scalar_lea.vmem [#allocation36], %s1136
        %p1138 = pneg %p660
        %p1139 = pneg %p657
        %p1140 = pneg %p681
        %p1141 = pneg %p678
        %p1142 = pneg %p702
        %p1143 = pneg %p699
        %p1144 = pneg %p723
        %p1145 = pneg %p720
        %p1146 = scmp.eq.s32.totalorder %s88, 0
        // Predicated region
        $region197: #{tpu_custom_call.1} parent=119 // pred_check
          %p1147 = pneg %p1146
        $region198: #{tpu_custom_call.1} parent=119 // pred_check_branch
          %1149 = sbr.rel (%p1147) target = $region200
        $region199: #{tpu_custom_call.1} parent=119 // pred_region
          %v1150 = vld [vmem:[#allocation9] sm:$0xff]
          %vm1151 = vcmask 261120
          %1152 = vst.msk [vmem:[#allocation2] sm:$0xff] %vm1151, %v1150
          %v1153 = vld [vmem:[#allocation11] sm:$0xff]
          %1154 = vst.msk [vmem:[#allocation3] sm:$0xff] %vm1151, %v1153
          %v1155 = vld [vmem:[#allocation12] sm:$0xff]
          %1156 = vst.msk [vmem:[#allocation4] sm:$0xff] %vm1151, %v1155
          %v1157 = vld [vmem:[#allocation14] sm:$0xff]
          %1158 = vst.msk [vmem:[#allocation5] sm:$0xff] %vm1151, %v1157
        $region200: #{tpu_custom_call.1} parent=119 // pred_fallthru
          _
        %v1159 = vld [vmem:[%s999] sm:$0xff]
        %v1160 = vld [vmem:[#allocation2] sm:$0xff]
        %v1161 = vld [vmem:[#allocation3] sm:$0xff]
        %v1162 = vld [vmem:[#allocation4] sm:$0xff]
        %v1163 = vld [vmem:[#allocation5] sm:$0xff]
        %v1164 = vld [vmem:[#allocation15] sm:$0xff]
        %v1165 = vld [vmem:[#allocation15 + $0x8] sm:$0xff]
        %v1166 = vld [vmem:[#allocation15 + $0x10] sm:$0xff]
        %v1167 = vld [vmem:[#allocation15 + $0x18] sm:$0xff]
        %v1168 = vld [vmem:[#allocation15 + $0x20] sm:$0x1f]
        %v1169 = vld [vmem:[#allocation17] sm:$0x1]
        %v1171 = vlaneseq
        %v1172 = vshrl.u32 %v1171, 7
        %v1173 = vsub.s32 0, %v1172
        %v1174 = vrot.slane %v1169, %v1173
        %vm1176 = vcmask 302080
        %v1178 = vsel %vm1176, %v1159, 0
        %vm1180 = vcmask 1044480
        %v1182 = vsel %vm1180, %v1168, 0
        %1184 = vmatprep.subr.mxu0 0.0
        %1185 = vmatpush1.msra.mxu0 0.0
        %1186 = vmatprep.subr.mxu0 0.0
        %1187 = vmatpush1.msra.mxu0 0.0
        %1188 = vmatprep.subr.mxu0 0.0
        %1189 = vmatpush1.msra.mxu0 0.0
        %1190 = vmatprep.subr.mxu0 0.0
        %1191 = vmatpush1.msra.mxu0 0.0
        %1192 = vmatprep.subr.mxu0 0.0
        %1193 = vmatpush1.msra.mxu0 0.0
        %1194 = vmatprep.subr.mxu0 0.0
        %1195 = vmatpush1.msra.mxu0 0.0
        %1196 = vmatprep.subr.mxu0 0.0
        %1197 = vmatpush1.msra.mxu0 0.0
        %1198 = vmatprep.subr.mxu0 0.0
        %1199 = vmatpush1.msra.mxu0 0.0
        %1200 = vmatprep.subr.mxu0 0.0
        %1201 = vmatpush1.msra.mxu0 0.0
        %1202 = vmatprep.subr.mxu0 0.0
        %1203 = vmatpush1.msra.mxu0 0.0
        %1204 = vmatprep.subr.mxu0 0.0
        %1205 = vmatpush1.msra.mxu0 0.0
        %1206 = vmatprep.subr.mxu0 0.0
        %1207 = vmatpush1.msra.mxu0 %v1182
        %1208 = vmatprep.subr.mxu0 0.0
        %1209 = vmatpush1.msra.mxu0 %v1167
        %1210 = vmatprep.subr.mxu0 0.0
        %1211 = vmatpush1.msra.mxu0 %v1166
        %1212 = vmatprep.subr.mxu0 0.0
        %1213 = vmatpush1.msra.mxu0 %v1165
        %1214 = vmatprep.subr.mxu0 0.0
        %1215 = vmatpush1.msra.mxu0 %v1164
        %1216 = vmatprep.subr.mxu0 0.0
        %1217 = vmatpush2.msra.mxu0 0.0
        %1218 = vmatprep.subr.mxu0 0.0
        %1219 = vmatpush2.msra.mxu0 0.0
        %1220 = vmatprep.subr.mxu0 0.0
        %1221 = vmatpush2.msra.mxu0 0.0
        %1222 = vmatprep.subr.mxu0 0.0
        %1223 = vmatpush2.msra.mxu0 0.0
        %1224 = vmatprep.subr.mxu0 0.0
        %1225 = vmatpush2.msra.mxu0 0.0
        %1226 = vmatprep.subr.mxu0 0.0
        %1227 = vmatpush2.msra.mxu0 0.0
        %1228 = vmatprep.subr.mxu0 0.0
        %1229 = vmatpush2.msra.mxu0 0.0
        %1230 = vmatprep.subr.mxu0 0.0
        %1231 = vmatpush2.msra.mxu0 0.0
        %1232 = vmatprep.subr.mxu0 0.0
        %1233 = vmatpush2.msra.mxu0 0.0
        %1234 = vmatprep.subr.mxu0 0.0
        %1235 = vmatpush2.msra.mxu0 0.0
        %1236 = vmatprep.subr.mxu0 0.0
        %1237 = vmatpush2.msra.mxu0 0.0
        %1238 = vmatprep.subr.mxu0 0.0
        %1239 = vmatpush2.msra.mxu0 0.0
        %1240 = vmatprep.subr.mxu0 0.0
        %1241 = vmatpush2.msra.mxu0 0.0
        %1242 = vmatprep.subr.mxu0 0.0
        %1243 = vmatpush2.msra.mxu0 0.0
        %1244 = vmatprep.subr.mxu0 0.0
        %1245 = vmatpush2.msra.mxu0 0.0
        %1246 = vmatprep.subr.mxu0 0.0
        %1247 = vmatpush2.msra.mxu0 0.0
        %1248 = vmatprep.mubr.f32.mxu0 0.0
        %1249 = vmatmul.mubr.f32.gmra.mxu0 %v1178
        %v1250 = vpop.f32.mrf.mxu0
        %v1251 = vadd.f32 %v1174, %v1250
        %v1252 = vpop.f32.mrf.mxu0
        %1253 = vdwg.mxu0
        %v1254 = vmax.f32 %v1251, 0.0
        %v1255 = vld [vmem:[#allocation18] sm:$0xff]
        %v1256 = vld [vmem:[#allocation18 + $0x8] sm:$0xff]
        %v1257 = vld [vmem:[#allocation18 + $0x10] sm:$0xff]
        %v1258 = vld [vmem:[#allocation18 + $0x18] sm:$0xff]
        %v1259 = vld [vmem:[#allocation18 + $0x20] sm:$0xff]
        %v1260 = vld [vmem:[#allocation18 + $0x28] sm:$0xff]
        %v1261 = vld [vmem:[#allocation18 + $0x30] sm:$0xff]
        %v1262 = vld [vmem:[#allocation18 + $0x38] sm:$0xff]
        %v1263 = vld [vmem:[#allocation20] sm:$0x1]
        %v1265 = vlaneseq
        %v1266 = vshrl.u32 %v1265, 7
        %v1267 = vsub.s32 0, %v1266
        %v1268 = vrot.slane %v1263, %v1267
        %vm1270 = vcmask 523264
        %v1272 = vsel %vm1270, %v1254, 0
        %1274 = vmatprep.subr.mxu0 0.0
        %1275 = vmatpush1.msra.mxu0 0.0
        %1276 = vmatprep.subr.mxu0 0.0
        %1277 = vmatpush1.msra.mxu0 0.0
        %1278 = vmatprep.subr.mxu0 0.0
        %1279 = vmatpush1.msra.mxu0 0.0
        %1280 = vmatprep.subr.mxu0 0.0
        %1281 = vmatpush1.msra.mxu0 0.0
        %1282 = vmatprep.subr.mxu0 0.0
        %1283 = vmatpush1.msra.mxu0 0.0
        %1284 = vmatprep.subr.mxu0 0.0
        %1285 = vmatpush1.msra.mxu0 0.0
        %1286 = vmatprep.subr.mxu0 0.0
        %1287 = vmatpush1.msra.mxu0 0.0
        %1288 = vmatprep.subr.mxu0 0.0
        %1289 = vmatpush1.msra.mxu0 0.0
        %1290 = vmatprep.subr.mxu0 0.0
        %1291 = vmatpush1.msra.mxu0 %v1262
        %1292 = vmatprep.subr.mxu0 0.0
        %1293 = vmatpush1.msra.mxu0 %v1261
        %1294 = vmatprep.subr.mxu0 0.0
        %1295 = vmatpush1.msra.mxu0 %v1260
        %1296 = vmatprep.subr.mxu0 0.0
        %1297 = vmatpush1.msra.mxu0 %v1259
        %1298 = vmatprep.subr.mxu0 0.0
        %1299 = vmatpush1.msra.mxu0 %v1258
        %1300 = vmatprep.subr.mxu0 0.0
        %1301 = vmatpush1.msra.mxu0 %v1257
        %1302 = vmatprep.subr.mxu0 0.0
        %1303 = vmatpush1.msra.mxu0 %v1256
        %1304 = vmatprep.subr.mxu0 0.0
        %1305 = vmatpush1.msra.mxu0 %v1255
        %1306 = vmatprep.subr.mxu0 0.0
        %1307 = vmatpush2.msra.mxu0 0.0
        %1308 = vmatprep.subr.mxu0 0.0
        %1309 = vmatpush2.msra.mxu0 0.0
        %1310 = vmatprep.subr.mxu0 0.0
        %1311 = vmatpush2.msra.mxu0 0.0
        %1312 = vmatprep.subr.mxu0 0.0
        %1313 = vmatpush2.msra.mxu0 0.0
        %1314 = vmatprep.subr.mxu0 0.0
        %1315 = vmatpush2.msra.mxu0 0.0
        %1316 = vmatprep.subr.mxu0 0.0
        %1317 = vmatpush2.msra.mxu0 0.0
        %1318 = vmatprep.subr.mxu0 0.0
        %1319 = vmatpush2.msra.mxu0 0.0
        %1320 = vmatprep.subr.mxu0 0.0
        %1321 = vmatpush2.msra.mxu0 0.0
        %1322 = vmatprep.subr.mxu0 0.0
        %1323 = vmatpush2.msra.mxu0 0.0
        %1324 = vmatprep.subr.mxu0 0.0
        %1325 = vmatpush2.msra.mxu0 0.0
        %1326 = vmatprep.subr.mxu0 0.0
        %1327 = vmatpush2.msra.mxu0 0.0
        %1328 = vmatprep.subr.mxu0 0.0
        %1329 = vmatpush2.msra.mxu0 0.0
        %1330 = vmatprep.subr.mxu0 0.0
        %1331 = vmatpush2.msra.mxu0 0.0
        %1332 = vmatprep.subr.mxu0 0.0
        %1333 = vmatpush2.msra.mxu0 0.0
        %1334 = vmatprep.subr.mxu0 0.0
        %1335 = vmatpush2.msra.mxu0 0.0
        %1336 = vmatprep.subr.mxu0 0.0
        %1337 = vmatpush2.msra.mxu0 0.0
        %1338 = vmatprep.mubr.f32.mxu0 0.0
        %1339 = vmatmul.mubr.f32.gmra.mxu0 %v1272
        %v1340 = vpop.f32.mrf.mxu0
        %v1341 = vadd.f32 %v1268, %v1340
        %v1342 = vpop.f32.mrf.mxu0
        %1343 = vdwg.mxu0
        %v1344 = vmax.f32 %v1341, 0.0
        %v1345 = vld [vmem:[%s19] sm:$0xff]
        %v1346 = vld [vmem:[%s19 + $0x8] sm:$0xff]
        %v1347 = vld [vmem:[%s19 + $0x10] sm:$0xff]
        %v1348 = vld [vmem:[%s19 + $0x18] sm:$0xff]
        %v1349 = vld [vmem:[%s19 + $0x20] sm:$0xff]
        %v1350 = vld [vmem:[%s19 + $0x28] sm:$0xff]
        %v1351 = vld [vmem:[%s19 + $0x30] sm:$0xff]
        %v1352 = vld [vmem:[%s19 + $0x38] sm:$0xff]
        %v1353 = vld [vmem:[#allocation21] sm:$0x1]
        %v1355 = vlaneseq
        %v1356 = vshrl.u32 %v1355, 7
        %v1357 = vsub.s32 0, %v1356
        %v1358 = vrot.slane %v1353, %v1357
        %v1361 = vsel %vm1270, %v1344, 0
        %1363 = vmatprep.subr.mxu0 0.0
        %1364 = vmatpush1.msra.mxu0 0.0
        %1365 = vmatprep.subr.mxu0 0.0
        %1366 = vmatpush1.msra.mxu0 0.0
        %1367 = vmatprep.subr.mxu0 0.0
        %1368 = vmatpush1.msra.mxu0 0.0
        %1369 = vmatprep.subr.mxu0 0.0
        %1370 = vmatpush1.msra.mxu0 0.0
        %1371 = vmatprep.subr.mxu0 0.0
        %1372 = vmatpush1.msra.mxu0 0.0
        %1373 = vmatprep.subr.mxu0 0.0
        %1374 = vmatpush1.msra.mxu0 0.0
        %1375 = vmatprep.subr.mxu0 0.0
        %1376 = vmatpush1.msra.mxu0 0.0
        %1377 = vmatprep.subr.mxu0 0.0
        %1378 = vmatpush1.msra.mxu0 0.0
        %1379 = vmatprep.subr.mxu0 0.0
        %1380 = vmatpush1.msra.mxu0 %v1352
        %1381 = vmatprep.subr.mxu0 0.0
        %1382 = vmatpush1.msra.mxu0 %v1351
        %1383 = vmatprep.subr.mxu0 0.0
        %1384 = vmatpush1.msra.mxu0 %v1350
        %1385 = vmatprep.subr.mxu0 0.0
        %1386 = vmatpush1.msra.mxu0 %v1349
        %1387 = vmatprep.subr.mxu0 0.0
        %1388 = vmatpush1.msra.mxu0 %v1348
        %1389 = vmatprep.subr.mxu0 0.0
        %1390 = vmatpush1.msra.mxu0 %v1347
        %1391 = vmatprep.subr.mxu0 0.0
        %1392 = vmatpush1.msra.mxu0 %v1346
        %1393 = vmatprep.subr.mxu0 0.0
        %1394 = vmatpush1.msra.mxu0 %v1345
        %1395 = vmatprep.subr.mxu0 0.0
        %1396 = vmatpush2.msra.mxu0 0.0
        %1397 = vmatprep.subr.mxu0 0.0
        %1398 = vmatpush2.msra.mxu0 0.0
        %1399 = vmatprep.subr.mxu0 0.0
        %1400 = vmatpush2.msra.mxu0 0.0
        %1401 = vmatprep.subr.mxu0 0.0
        %1402 = vmatpush2.msra.mxu0 0.0
        %1403 = vmatprep.subr.mxu0 0.0
        %1404 = vmatpush2.msra.mxu0 0.0
        %1405 = vmatprep.subr.mxu0 0.0
        %1406 = vmatpush2.msra.mxu0 0.0
        %1407 = vmatprep.subr.mxu0 0.0
        %1408 = vmatpush2.msra.mxu0 0.0
        %1409 = vmatprep.subr.mxu0 0.0
        %1410 = vmatpush2.msra.mxu0 0.0
        %1411 = vmatprep.subr.mxu0 0.0
        %1412 = vmatpush2.msra.mxu0 0.0
        %1413 = vmatprep.subr.mxu0 0.0
        %1414 = vmatpush2.msra.mxu0 0.0
        %1415 = vmatprep.subr.mxu0 0.0
        %1416 = vmatpush2.msra.mxu0 0.0
        %1417 = vmatprep.subr.mxu0 0.0
        %1418 = vmatpush2.msra.mxu0 0.0
        %1419 = vmatprep.subr.mxu0 0.0
        %1420 = vmatpush2.msra.mxu0 0.0
        %1421 = vmatprep.subr.mxu0 0.0
        %1422 = vmatpush2.msra.mxu0 0.0
        %1423 = vmatprep.subr.mxu0 0.0
        %1424 = vmatpush2.msra.mxu0 0.0
        %1425 = vmatprep.subr.mxu0 0.0
        %1426 = vmatpush2.msra.mxu0 0.0
        %1427 = vmatprep.mubr.f32.mxu0 0.0
        %1428 = vmatmul.mubr.f32.gmra.mxu0 %v1361
        %v1429 = vpop.f32.mrf.mxu0
        %v1430 = vadd.f32 %v1358, %v1429
        %v1431 = vpop.f32.mrf.mxu0
        %1432 = vdwg.mxu0
        %v1433 = vld [vmem:[#allocation23] sm:$0xff]
        %v1434 = vld [vmem:[#allocation23 + $0x8] sm:$0xff]
        %v1435 = vld [vmem:[#allocation23 + $0x10] sm:$0xff]
        %v1436 = vld [vmem:[#allocation23 + $0x18] sm:$0xff]
        %v1437 = vld [vmem:[#allocation23 + $0x20] sm:$0xff]
        %v1438 = vld [vmem:[#allocation23 + $0x28] sm:$0xff]
        %v1439 = vld [vmem:[#allocation23 + $0x30] sm:$0xff]
        %v1440 = vld [vmem:[#allocation23 + $0x38] sm:$0xff]
        %v1441 = vld [vmem:[#allocation23 + $0x40] sm:$0xff]
        %v1442 = vld [vmem:[#allocation23 + $0x48] sm:$0xff]
        %v1443 = vld [vmem:[#allocation23 + $0x50] sm:$0xff]
        %v1444 = vld [vmem:[#allocation23 + $0x58] sm:$0xff]
        %v1445 = vld [vmem:[#allocation23 + $0x60] sm:$0xff]
        %v1446 = vld [vmem:[#allocation23 + $0x68] sm:$0xff]
        %v1447 = vld [vmem:[#allocation23 + $0x70] sm:$0xff]
        %v1448 = vld [vmem:[#allocation23 + $0x78] sm:$0xff]
        %v1450 = vsel %vm1270, %v1430, 0
        %1452 = vmatprep.subr.mxu0 0.0
        %1453 = vmatpush1.msra.mxu0 0.0
        %1454 = vmatprep.subr.mxu0 0.0
        %1455 = vmatpush1.msra.mxu0 0.0
        %1456 = vmatprep.subr.mxu0 0.0
        %1457 = vmatpush1.msra.mxu0 0.0
        %1458 = vmatprep.subr.mxu0 0.0
        %1459 = vmatpush1.msra.mxu0 0.0
        %1460 = vmatprep.subr.mxu0 0.0
        %1461 = vmatpush1.msra.mxu0 0.0
        %1462 = vmatprep.subr.mxu0 0.0
        %1463 = vmatpush1.msra.mxu0 0.0
        %1464 = vmatprep.subr.mxu0 0.0
        %1465 = vmatpush1.msra.mxu0 0.0
        %1466 = vmatprep.subr.mxu0 0.0
        %1467 = vmatpush1.msra.mxu0 0.0
        %1468 = vmatprep.subr.mxu0 %v1448
        %1469 = vmatpush1.msra.mxu0 %v1447
        %1470 = vmatprep.subr.mxu0 %v1446
        %1471 = vmatpush1.msra.mxu0 %v1445
        %1472 = vmatprep.subr.mxu0 %v1444
        %1473 = vmatpush1.msra.mxu0 %v1443
        %1474 = vmatprep.subr.mxu0 %v1442
        %1475 = vmatpush1.msra.mxu0 %v1441
        %1476 = vmatprep.subr.mxu0 %v1440
        %1477 = vmatpush1.msra.mxu0 %v1439
        %1478 = vmatprep.subr.mxu0 %v1438
        %1479 = vmatpush1.msra.mxu0 %v1437
        %1480 = vmatprep.subr.mxu0 %v1436
        %1481 = vmatpush1.msra.mxu0 %v1435
        %1482 = vmatprep.subr.mxu0 %v1434
        %1483 = vmatpush1.msra.mxu0 %v1433
        %1484 = vmatprep.subr.mxu0 0.0
        %1485 = vmatpush2.msra.mxu0 0.0
        %1486 = vmatprep.subr.mxu0 0.0
        %1487 = vmatpush2.msra.mxu0 0.0
        %1488 = vmatprep.subr.mxu0 0.0
        %1489 = vmatpush2.msra.mxu0 0.0
        %1490 = vmatprep.subr.mxu0 0.0
        %1491 = vmatpush2.msra.mxu0 0.0
        %1492 = vmatprep.subr.mxu0 0.0
        %1493 = vmatpush2.msra.mxu0 0.0
        %1494 = vmatprep.subr.mxu0 0.0
        %1495 = vmatpush2.msra.mxu0 0.0
        %1496 = vmatprep.subr.mxu0 0.0
        %1497 = vmatpush2.msra.mxu0 0.0
        %1498 = vmatprep.subr.mxu0 0.0
        %1499 = vmatpush2.msra.mxu0 0.0
        %1500 = vmatprep.subr.mxu0 0.0
        %1501 = vmatpush2.msra.mxu0 0.0
        %1502 = vmatprep.subr.mxu0 0.0
        %1503 = vmatpush2.msra.mxu0 0.0
        %1504 = vmatprep.subr.mxu0 0.0
        %1505 = vmatpush2.msra.mxu0 0.0
        %1506 = vmatprep.subr.mxu0 0.0
        %1507 = vmatpush2.msra.mxu0 0.0
        %1508 = vmatprep.subr.mxu0 0.0
        %1509 = vmatpush2.msra.mxu0 0.0
        %1510 = vmatprep.subr.mxu0 0.0
        %1511 = vmatpush2.msra.mxu0 0.0
        %1512 = vmatprep.subr.mxu0 0.0
        %1513 = vmatpush2.msra.mxu0 0.0
        %1514 = vmatprep.subr.mxu0 0.0
        %1515 = vmatpush2.msra.mxu0 0.0
        %1516 = vmatprep.mubr.f32.mxu0 0.0
        %1517 = vmatmul.mubr.f32.gmra.mxu0 %v1450
        %v1518 = vpop.f32.mrf.mxu0
        %v1519 = vadd.f32 0.0, %v1518
        %v1520 = vpop.f32.mrf.mxu0
        %v1521 = vadd.f32 0.0, %v1520
        %1522 = vdwg.mxu0
        %v1523 = vld [vmem:[#allocation24] sm:$0xff]
        %v1524 = vld [vmem:[#allocation24 + $0x8] sm:$0xff]
        %v1525 = vld [vmem:[#allocation24 + $0x10] sm:$0xff]
        %v1526 = vld [vmem:[#allocation24 + $0x18] sm:$0xff]
        %v1527 = vld [vmem:[#allocation24 + $0x20] sm:$0xff]
        %v1528 = vld [vmem:[#allocation24 + $0x28] sm:$0xff]
        %v1529 = vld [vmem:[#allocation24 + $0x30] sm:$0xff]
        %v1530 = vld [vmem:[#allocation24 + $0x38] sm:$0xff]
        %vm1531 = vcmask 261120
        %v1533 = vsel %vm1531, %v1160, 0
        %1535 = vmatprep.subr.mxu0 0.0
        %1536 = vmatpush1.msra.mxu0 0.0
        %1537 = vmatprep.subr.mxu0 0.0
        %1538 = vmatpush1.msra.mxu0 0.0
        %1539 = vmatprep.subr.mxu0 0.0
        %1540 = vmatpush1.msra.mxu0 0.0
        %1541 = vmatprep.subr.mxu0 0.0
        %1542 = vmatpush1.msra.mxu0 0.0
        %1543 = vmatprep.subr.mxu0 0.0
        %1544 = vmatpush1.msra.mxu0 0.0
        %1545 = vmatprep.subr.mxu0 0.0
        %1546 = vmatpush1.msra.mxu0 0.0
        %1547 = vmatprep.subr.mxu0 0.0
        %1548 = vmatpush1.msra.mxu0 0.0
        %1549 = vmatprep.subr.mxu0 0.0
        %1550 = vmatpush1.msra.mxu0 0.0
        %1551 = vmatprep.subr.mxu0 0.0
        %1552 = vmatpush1.msra.mxu0 0.0
        %1553 = vmatprep.subr.mxu0 0.0
        %1554 = vmatpush1.msra.mxu0 0.0
        %1555 = vmatprep.subr.mxu0 0.0
        %1556 = vmatpush1.msra.mxu0 0.0
        %1557 = vmatprep.subr.mxu0 0.0
        %1558 = vmatpush1.msra.mxu0 0.0
        %1559 = vmatprep.subr.mxu0 %v1530
        %1560 = vmatpush1.msra.mxu0 %v1529
        %1561 = vmatprep.subr.mxu0 %v1528
        %1562 = vmatpush1.msra.mxu0 %v1527
        %1563 = vmatprep.subr.mxu0 %v1526
        %1564 = vmatpush1.msra.mxu0 %v1525
        %1565 = vmatprep.subr.mxu0 %v1524
        %1566 = vmatpush1.msra.mxu0 %v1523
        %1567 = vmatprep.subr.mxu0 0.0
        %1568 = vmatpush2.msra.mxu0 0.0
        %1569 = vmatprep.subr.mxu0 0.0
        %1570 = vmatpush2.msra.mxu0 0.0
        %1571 = vmatprep.subr.mxu0 0.0
        %1572 = vmatpush2.msra.mxu0 0.0
        %1573 = vmatprep.subr.mxu0 0.0
        %1574 = vmatpush2.msra.mxu0 0.0
        %1575 = vmatprep.subr.mxu0 0.0
        %1576 = vmatpush2.msra.mxu0 0.0
        %1577 = vmatprep.subr.mxu0 0.0
        %1578 = vmatpush2.msra.mxu0 0.0
        %1579 = vmatprep.subr.mxu0 0.0
        %1580 = vmatpush2.msra.mxu0 0.0
        %1581 = vmatprep.subr.mxu0 0.0
        %1582 = vmatpush2.msra.mxu0 0.0
        %1583 = vmatprep.subr.mxu0 0.0
        %1584 = vmatpush2.msra.mxu0 0.0
        %1585 = vmatprep.subr.mxu0 0.0
        %1586 = vmatpush2.msra.mxu0 0.0
        %1587 = vmatprep.subr.mxu0 0.0
        %1588 = vmatpush2.msra.mxu0 0.0
        %1589 = vmatprep.subr.mxu0 0.0
        %1590 = vmatpush2.msra.mxu0 0.0
        %1591 = vmatprep.subr.mxu0 0.0
        %1592 = vmatpush2.msra.mxu0 0.0
        %1593 = vmatprep.subr.mxu0 0.0
        %1594 = vmatpush2.msra.mxu0 0.0
        %1595 = vmatprep.subr.mxu0 0.0
        %1596 = vmatpush2.msra.mxu0 0.0
        %1597 = vmatprep.subr.mxu0 0.0
        %1598 = vmatpush2.msra.mxu0 0.0
        %1599 = vmatprep.mubr.f32.mxu0 0.0
        %1600 = vmatmul.mubr.f32.gmra.mxu0 %v1533
        %v1601 = vpop.f32.mrf.mxu0
        %v1602 = vadd.f32 0.0, %v1601
        %v1603 = vpop.f32.mrf.mxu0
        %v1604 = vadd.f32 0.0, %v1603
        %1605 = vdwg.mxu0
        %v1606 = vadd.f32 %v1519, %v1602
        %v1607 = vld [vmem:[#allocation26] sm:$0xff]
        %v1608 = vld [vmem:[#allocation26 + $0x8] sm:$0xff]
        %v1609 = vld [vmem:[#allocation26 + $0x10] sm:$0xff]
        %v1610 = vld [vmem:[#allocation26 + $0x18] sm:$0xff]
        %v1612 = vsel %vm1531, %v1162, 0
        %1614 = vmatprep.subr.mxu0 0.0
        %1615 = vmatpush1.msra.mxu0 0.0
        %1616 = vmatprep.subr.mxu0 0.0
        %1617 = vmatpush1.msra.mxu0 0.0
        %1618 = vmatprep.subr.mxu0 0.0
        %1619 = vmatpush1.msra.mxu0 0.0
        %1620 = vmatprep.subr.mxu0 0.0
        %1621 = vmatpush1.msra.mxu0 0.0
        %1622 = vmatprep.subr.mxu0 0.0
        %1623 = vmatpush1.msra.mxu0 0.0
        %1624 = vmatprep.subr.mxu0 0.0
        %1625 = vmatpush1.msra.mxu0 0.0
        %1626 = vmatprep.subr.mxu0 0.0
        %1627 = vmatpush1.msra.mxu0 0.0
        %1628 = vmatprep.subr.mxu0 0.0
        %1629 = vmatpush1.msra.mxu0 0.0
        %1630 = vmatprep.subr.mxu0 0.0
        %1631 = vmatpush1.msra.mxu0 0.0
        %1632 = vmatprep.subr.mxu0 0.0
        %1633 = vmatpush1.msra.mxu0 0.0
        %1634 = vmatprep.subr.mxu0 0.0
        %1635 = vmatpush1.msra.mxu0 0.0
        %1636 = vmatprep.subr.mxu0 0.0
        %1637 = vmatpush1.msra.mxu0 0.0
        %1638 = vmatprep.subr.mxu0 0.0
        %1639 = vmatpush1.msra.mxu0 %v1610
        %1640 = vmatprep.subr.mxu0 0.0
        %1641 = vmatpush1.msra.mxu0 %v1609
        %1642 = vmatprep.subr.mxu0 0.0
        %1643 = vmatpush1.msra.mxu0 %v1608
        %1644 = vmatprep.subr.mxu0 0.0
        %1645 = vmatpush1.msra.mxu0 %v1607
        %1646 = vmatprep.subr.mxu0 0.0
        %1647 = vmatpush2.msra.mxu0 0.0
        %1648 = vmatprep.subr.mxu0 0.0
        %1649 = vmatpush2.msra.mxu0 0.0
        %1650 = vmatprep.subr.mxu0 0.0
        %1651 = vmatpush2.msra.mxu0 0.0
        %1652 = vmatprep.subr.mxu0 0.0
        %1653 = vmatpush2.msra.mxu0 0.0
        %1654 = vmatprep.subr.mxu0 0.0
        %1655 = vmatpush2.msra.mxu0 0.0
        %1656 = vmatprep.subr.mxu0 0.0
        %1657 = vmatpush2.msra.mxu0 0.0
        %1658 = vmatprep.subr.mxu0 0.0
        %1659 = vmatpush2.msra.mxu0 0.0
        %1660 = vmatprep.subr.mxu0 0.0
        %1661 = vmatpush2.msra.mxu0 0.0
        %1662 = vmatprep.subr.mxu0 0.0
        %1663 = vmatpush2.msra.mxu0 0.0
        %1664 = vmatprep.subr.mxu0 0.0
        %1665 = vmatpush2.msra.mxu0 0.0
        %1666 = vmatprep.subr.mxu0 0.0
        %1667 = vmatpush2.msra.mxu0 0.0
        %1668 = vmatprep.subr.mxu0 0.0
        %1669 = vmatpush2.msra.mxu0 0.0
        %1670 = vmatprep.subr.mxu0 0.0
        %1671 = vmatpush2.msra.mxu0 0.0
        %1672 = vmatprep.subr.mxu0 0.0
        %1673 = vmatpush2.msra.mxu0 0.0
        %1674 = vmatprep.subr.mxu0 0.0
        %1675 = vmatpush2.msra.mxu0 0.0
        %1676 = vmatprep.subr.mxu0 0.0
        %1677 = vmatpush2.msra.mxu0 0.0
        %1678 = vmatprep.mubr.f32.mxu0 0.0
        %1679 = vmatmul.mubr.f32.gmra.mxu0 %v1612
        %v1680 = vpop.f32.mrf.mxu0
        %v1681 = vadd.f32 0.0, %v1680
        %v1682 = vpop.f32.mrf.mxu0
        %1683 = vdwg.mxu0
        %v1684 = vadd.f32 %v1606, %v1681
        %v1685 = vld [vmem:[#allocation27] sm:$0x1]
        %v1687 = vlaneseq
        %v1688 = vshrl.u32 %v1687, 7
        %v1689 = vsub.s32 0, %v1688
        %v1690 = vrot.slane %v1685, %v1689
        %v1692 = vadd.f32 %v1684, %v1690
        %v1693 = vxor.u32 %v1692, 2147483648
        %v1694 = vmul.f32 %v1693, 1.442695
        %v1695 = vpow.pop %v1694
        %v1696 = vadd.f32 %v1695, 1.0
        %v1697 = vrcp.pop %v1696
        %v1698 = vmul.f32 1.0, %v1697
        %1700 = vrot.lane.b32.xlu0 %v1163, 32
        %v1701 = vpop.permute.xlu0 %1700
        %v1703 = vmul.f32 %v1698, %v1701
        %v1704 = vtanh.pop %v1692
        %1706 = vrot.lane.b32.xlu0 %v1704, 64
        %v1707 = vpop.permute.xlu0 %1706
        %v1709 = vmul.f32 %v1698, %v1707
        %1711 = vrot.lane.b32.xlu0 %v1709, 32
        %v1712 = vpop.permute.xlu0 %1711
        %v1714 = vadd.f32 %v1703, %v1712
        %v1715 = vtanh.pop %v1714
        %1717 = vrot.lane.b32.xlu0 %v1715, 64
        %v1718 = vpop.permute.xlu0 %1717
        %v1720 = vmul.f32 %v1698, %v1718
        %v1721 = vld [vmem:[#allocation29] sm:$0xff]
        %v1722 = vld [vmem:[#allocation29 + $0x8] sm:$0xff]
        %v1723 = vld [vmem:[#allocation29 + $0x10] sm:$0xff]
        %v1724 = vld [vmem:[#allocation29 + $0x18] sm:$0xff]
        %v1725 = vld [vmem:[#allocation29 + $0x20] sm:$0xff]
        %v1726 = vld [vmem:[#allocation29 + $0x28] sm:$0xff]
        %v1727 = vld [vmem:[#allocation29 + $0x30] sm:$0xff]
        %v1728 = vld [vmem:[#allocation29 + $0x38] sm:$0xff]
        %v1729 = vld [vmem:[#allocation29 + $0x40] sm:$0xff]
        %v1730 = vld [vmem:[#allocation29 + $0x48] sm:$0xff]
        %v1731 = vld [vmem:[#allocation29 + $0x50] sm:$0xff]
        %v1732 = vld [vmem:[#allocation29 + $0x58] sm:$0xff]
        %v1733 = vld [vmem:[#allocation30] sm:$0x7]
        %v1735 = vlaneseq
        %v1736 = vshrl.u32 %v1735, 7
        %v1737 = vsub.s32 0, %v1736
        %v1738 = vrot.slane %v1733, %v1737
        %v1739 = vlaneseq
        %v1740 = vshrl.u32 %v1739, 7
        %v1741 = vsub.s32 1, %v1740
        %v1742 = vrot.slane %v1733, %v1741
        %v1743 = vlaneseq
        %v1744 = vshrl.u32 %v1743, 7
        %v1745 = vsub.s32 2, %v1744
        %v1746 = vrot.slane %v1733, %v1745
        %1751 = vrot.lane.b32.xlu0 %v1720, 32
        %v1752 = vpop.permute.xlu0 %1751
        %v1753 = vsel %vm1531, %v1752, 0
        %1755 = vmatprep.subr.mxu0 0.0
        %1756 = vmatpush1.msra.mxu0 0.0
        %1757 = vmatprep.subr.mxu0 0.0
        %1758 = vmatpush1.msra.mxu0 0.0
        %1759 = vmatprep.subr.mxu0 0.0
        %1760 = vmatpush1.msra.mxu0 0.0
        %1761 = vmatprep.subr.mxu0 0.0
        %1762 = vmatpush1.msra.mxu0 0.0
        %1763 = vmatprep.subr.mxu0 0.0
        %1764 = vmatpush1.msra.mxu0 0.0
        %1765 = vmatprep.subr.mxu0 0.0
        %1766 = vmatpush1.msra.mxu0 0.0
        %1767 = vmatprep.subr.mxu0 0.0
        %1768 = vmatpush1.msra.mxu0 0.0
        %1769 = vmatprep.subr.mxu0 0.0
        %1770 = vmatpush1.msra.mxu0 0.0
        %1771 = vmatprep.subr.mxu0 0.0
        %1772 = vmatpush1.msra.mxu0 0.0
        %1773 = vmatprep.subr.mxu0 0.0
        %1774 = vmatpush1.msra.mxu0 0.0
        %1775 = vmatprep.subr.mxu0 0.0
        %1776 = vmatpush1.msra.mxu0 0.0
        %1777 = vmatprep.subr.mxu0 0.0
        %1778 = vmatpush1.msra.mxu0 0.0
        %1779 = vmatprep.subr.mxu0 %v1731
        %1780 = vmatpush1.msra.mxu0 %v1730
        %1781 = vmatprep.subr.mxu0 %v1728
        %1782 = vmatpush1.msra.mxu0 %v1727
        %1783 = vmatprep.subr.mxu0 %v1725
        %1784 = vmatpush1.msra.mxu0 %v1724
        %1785 = vmatprep.subr.mxu0 %v1722
        %1786 = vmatpush1.msra.mxu0 %v1721
        %1787 = vmatprep.subr.mxu0 0.0
        %1788 = vmatpush2.msra.mxu0 0.0
        %1789 = vmatprep.subr.mxu0 0.0
        %1790 = vmatpush2.msra.mxu0 0.0
        %1791 = vmatprep.subr.mxu0 0.0
        %1792 = vmatpush2.msra.mxu0 0.0
        %1793 = vmatprep.subr.mxu0 0.0
        %1794 = vmatpush2.msra.mxu0 0.0
        %1795 = vmatprep.subr.mxu0 0.0
        %1796 = vmatpush2.msra.mxu0 0.0
        %1797 = vmatprep.subr.mxu0 0.0
        %1798 = vmatpush2.msra.mxu0 0.0
        %1799 = vmatprep.subr.mxu0 0.0
        %1800 = vmatpush2.msra.mxu0 0.0
        %1801 = vmatprep.subr.mxu0 0.0
        %1802 = vmatpush2.msra.mxu0 0.0
        %1803 = vmatprep.subr.mxu0 0.0
        %1804 = vmatpush2.msra.mxu0 0.0
        %1805 = vmatprep.subr.mxu0 0.0
        %1806 = vmatpush2.msra.mxu0 0.0
        %1807 = vmatprep.subr.mxu0 0.0
        %1808 = vmatpush2.msra.mxu0 0.0
        %1809 = vmatprep.subr.mxu0 0.0
        %1810 = vmatpush2.msra.mxu0 0.0
        %1811 = vmatprep.subr.mxu0 0.0
        %1812 = vmatpush2.msra.mxu0 0.0
        %1813 = vmatprep.subr.mxu0 0.0
        %1814 = vmatpush2.msra.mxu0 0.0
        %1815 = vmatprep.subr.mxu0 0.0
        %1816 = vmatpush2.msra.mxu0 0.0
        %1817 = vmatprep.subr.mxu0 0.0
        %1818 = vmatpush2.msra.mxu0 0.0
        %1819 = vmatprep.mubr.f32.mxu0 0.0
        %1820 = vmatmul.mubr.f32.gmra.mxu0 %v1753
        %v1821 = vpop.f32.mrf.mxu0
        %v1822 = vadd.f32 %v1738, %v1821
        %v1823 = vpop.f32.mrf.mxu0
        %v1824 = vadd.f32 %v1742, %v1823
        %1825 = vdwg.mxu0
        %1826 = vmatprep.subr.mxu0 0.0
        %1827 = vmatpush1.msra.mxu0 0.0
        %1828 = vmatprep.subr.mxu0 0.0
        %1829 = vmatpush1.msra.mxu0 0.0
        %1830 = vmatprep.subr.mxu0 0.0
        %1831 = vmatpush1.msra.mxu0 0.0
        %1832 = vmatprep.subr.mxu0 0.0
        %1833 = vmatpush1.msra.mxu0 0.0
        %1834 = vmatprep.subr.mxu0 0.0
        %1835 = vmatpush1.msra.mxu0 0.0
        %1836 = vmatprep.subr.mxu0 0.0
        %1837 = vmatpush1.msra.mxu0 0.0
        %1838 = vmatprep.subr.mxu0 0.0
        %1839 = vmatpush1.msra.mxu0 0.0
        %1840 = vmatprep.subr.mxu0 0.0
        %1841 = vmatpush1.msra.mxu0 0.0
        %1842 = vmatprep.subr.mxu0 0.0
        %1843 = vmatpush1.msra.mxu0 0.0
        %1844 = vmatprep.subr.mxu0 0.0
        %1845 = vmatpush1.msra.mxu0 0.0
        %1846 = vmatprep.subr.mxu0 0.0
        %1847 = vmatpush1.msra.mxu0 0.0
        %1848 = vmatprep.subr.mxu0 0.0
        %1849 = vmatpush1.msra.mxu0 0.0
        %1850 = vmatprep.subr.mxu0 0.0
        %1851 = vmatpush1.msra.mxu0 %v1732
        %1852 = vmatprep.subr.mxu0 0.0
        %1853 = vmatpush1.msra.mxu0 %v1729
        %1854 = vmatprep.subr.mxu0 0.0
        %1855 = vmatpush1.msra.mxu0 %v1726
        %1856 = vmatprep.subr.mxu0 0.0
        %1857 = vmatpush1.msra.mxu0 %v1723
        %1858 = vmatprep.subr.mxu0 0.0
        %1859 = vmatpush2.msra.mxu0 0.0
        %1860 = vmatprep.subr.mxu0 0.0
        %1861 = vmatpush2.msra.mxu0 0.0
        %1862 = vmatprep.subr.mxu0 0.0
        %1863 = vmatpush2.msra.mxu0 0.0
        %1864 = vmatprep.subr.mxu0 0.0
        %1865 = vmatpush2.msra.mxu0 0.0
        %1866 = vmatprep.subr.mxu0 0.0
        %1867 = vmatpush2.msra.mxu0 0.0
        %1868 = vmatprep.subr.mxu0 0.0
        %1869 = vmatpush2.msra.mxu0 0.0
        %1870 = vmatprep.subr.mxu0 0.0
        %1871 = vmatpush2.msra.mxu0 0.0
        %1872 = vmatprep.subr.mxu0 0.0
        %1873 = vmatpush2.msra.mxu0 0.0
        %1874 = vmatprep.subr.mxu0 0.0
        %1875 = vmatpush2.msra.mxu0 0.0
        %1876 = vmatprep.subr.mxu0 0.0
        %1877 = vmatpush2.msra.mxu0 0.0
        %1878 = vmatprep.subr.mxu0 0.0
        %1879 = vmatpush2.msra.mxu0 0.0
        %1880 = vmatprep.subr.mxu0 0.0
        %1881 = vmatpush2.msra.mxu0 0.0
        %1882 = vmatprep.subr.mxu0 0.0
        %1883 = vmatpush2.msra.mxu0 0.0
        %1884 = vmatprep.subr.mxu0 0.0
        %1885 = vmatpush2.msra.mxu0 0.0
        %1886 = vmatprep.subr.mxu0 0.0
        %1887 = vmatpush2.msra.mxu0 0.0
        %1888 = vmatprep.subr.mxu0 0.0
        %1889 = vmatpush2.msra.mxu0 0.0
        %1890 = vmatprep.mubr.f32.mxu0 0.0
        %1891 = vmatmul.mubr.f32.gmra.mxu0 %v1753
        %v1892 = vpop.f32.mrf.mxu0
        %v1893 = vadd.f32 %v1746, %v1892
        %v1894 = vpop.f32.mrf.mxu0
        %1895 = vdwg.mxu0
        %v1896 = vmul.f32 %v1521, %v1822
        %v1897 = vmul.f32 %v1604, %v1824
        %v1898 = vadd.f32 %v1896, %v1897
        %v1899 = vld [vmem:[#allocation32] sm:$0x1]
        %v1901 = vlaneseq
        %v1902 = vshrl.u32 %v1901, 7
        %v1903 = vsub.s32 0, %v1902
        %v1904 = vrot.slane %v1899, %v1903
        %v1906 = vmul.f32 %v1904, %v1893
        %v1907 = vadd.f32 %v1898, %v1906
        %v1908 = vld [vmem:[#allocation33] sm:$0x1]
        %v1910 = vlaneseq
        %v1911 = vshrl.u32 %v1910, 7
        %v1912 = vsub.s32 0, %v1911
        %v1913 = vrot.slane %v1908, %v1912
        %v1915 = vadd.f32 %v1907, %v1913
        %v1916 = vld [vmem:[#allocation35] sm:$0xf]
        %v1917 = vld [vmem:[%s41] sm:$0xf]
        %v1918 = vsel %vm1531, %v1915, 0.0
        %1919 = vadd.xlane.f32.xlu0 %v1918
        %v1920 = vpop.xlane.xlu0 %1919
        %v1921 = vrcp.pop 32.0
        %v1922 = vmul.f32 %v1920, %v1921
        %v1923 = vsub.f32 %v1915, %v1922
        %v1924 = vmul.f32 %v1923, %v1923
        %v1925 = vsel %vm1531, %v1924, 0.0
        %1926 = vadd.xlane.f32.xlu0 %v1925
        %v1927 = vpop.xlane.xlu0 %1926
        %v1928 = vmul.f32 %v1927, 0.032258064
        %v1929 = vrsqrt.pop %v1928
        %v1930 = vmul.f32 %v1928, %v1929
        %vm1931 = vcmp.eq.f32.partialorder %v1928, inf
        %v1932 = vsel %vm1931, %v1928, %v1930
        %vm1933 = vcmp.eq.f32.partialorder %v1928, 0.0
        %v1934 = vand.u32 %v1928, 2147483648
        %v1935 = vsel %vm1933, %v1934, %v1932
        %v1936 = vadd.f32 %v1935, 1e-06
        %v1937 = vrcp.pop %v1936
        %v1938 = vlaneseq
        %v1939 = vshrl.u32 %v1938, 7
        %v1940 = vsub.s32 0, %v1939
        %v1941 = vrot.slane %v1916, %v1940
        %v1942 = vmul.f32 %v1941, %v1923
        %v1943 = vmul.f32 %v1942, %v1937
        %v1944 = vlaneseq
        %v1945 = vshrl.u32 %v1944, 7
        %v1946 = vsub.s32 0, %v1945
        %v1947 = vrot.slane %v1917, %v1946
        %v1948 = vadd.f32 %v1943, %v1947
        %1950 = vrot.lane.b32.xlu0 %v1915, 96
        %v1951 = vpop.permute.xlu0 %1950
        %v1953 = vsel %vm1531, %v1951, 0.0
        %1954 = vadd.xlane.f32.xlu0 %v1953
        %v1955 = vpop.xlane.xlu0 %1954
        %v1956 = vmul.f32 %v1955, %v1921
        %v1957 = vsub.f32 %v1915, %v1956
        %v1958 = vmul.f32 %v1957, %v1957
        %1960 = vrot.lane.b32.xlu0 %v1958, 96
        %v1961 = vpop.permute.xlu0 %1960
        %v1963 = vsel %vm1531, %v1961, 0.0
        %1964 = vadd.xlane.f32.xlu0 %v1963
        %v1965 = vpop.xlane.xlu0 %1964
        %v1966 = vmul.f32 %v1965, 0.032258064
        %v1967 = vrsqrt.pop %v1966
        %v1968 = vmul.f32 %v1966, %v1967
        %vm1969 = vcmp.eq.f32.partialorder %v1966, inf
        %v1970 = vsel %vm1969, %v1966, %v1968
        %vm1971 = vcmp.eq.f32.partialorder %v1966, 0.0
        %v1972 = vand.u32 %v1966, 2147483648
        %v1973 = vsel %vm1971, %v1972, %v1970
        %v1974 = vadd.f32 %v1973, 1e-06
        %v1975 = vrcp.pop %v1974
        %v1976 = vlaneseq
        %v1977 = vshrl.u32 %v1976, 7
        %v1978 = vsub.s32 1, %v1977
        %v1979 = vrot.slane %v1916, %v1978
        %1981 = vrot.lane.b32.xlu0 %v1957, 96
        %v1982 = vpop.permute.xlu0 %1981
        %v1984 = vmul.f32 %v1979, %v1982
        %v1985 = vmul.f32 %v1984, %v1975
        %v1986 = vlaneseq
        %v1987 = vshrl.u32 %v1986, 7
        %v1988 = vsub.s32 1, %v1987
        %v1989 = vrot.slane %v1917, %v1988
        %v1990 = vadd.f32 %v1985, %v1989
        %1991 = vrot.lane.b32.xlu0 %v1915, 64
        %v1992 = vpop.permute.xlu0 %1991
        %v1994 = vsel %vm1531, %v1992, 0.0
        %1995 = vadd.xlane.f32.xlu0 %v1994
        %v1996 = vpop.xlane.xlu0 %1995
        %v1997 = vmul.f32 %v1996, %v1921
        %v1998 = vsub.f32 %v1915, %v1997
        %v1999 = vmul.f32 %v1998, %v1998
        %2001 = vrot.lane.b32.xlu0 %v1999, 64
        %v2002 = vpop.permute.xlu0 %2001
        %v2004 = vsel %vm1531, %v2002, 0.0
        %2005 = vadd.xlane.f32.xlu0 %v2004
        %v2006 = vpop.xlane.xlu0 %2005
        %v2007 = vmul.f32 %v2006, 0.032258064
        %v2008 = vrsqrt.pop %v2007
        %v2009 = vmul.f32 %v2007, %v2008
        %vm2010 = vcmp.eq.f32.partialorder %v2007, inf
        %v2011 = vsel %vm2010, %v2007, %v2009
        %vm2012 = vcmp.eq.f32.partialorder %v2007, 0.0
        %v2013 = vand.u32 %v2007, 2147483648
        %v2014 = vsel %vm2012, %v2013, %v2011
        %v2015 = vadd.f32 %v2014, 1e-06
        %v2016 = vrcp.pop %v2015
        %v2017 = vlaneseq
        %v2018 = vshrl.u32 %v2017, 7
        %v2019 = vsub.s32 2, %v2018
        %v2020 = vrot.slane %v1916, %v2019
        %2022 = vrot.lane.b32.xlu0 %v1998, 64
        %v2023 = vpop.permute.xlu0 %2022
        %v2025 = vmul.f32 %v2020, %v2023
        %v2026 = vmul.f32 %v2025, %v2016
        %v2027 = vlaneseq
        %v2028 = vshrl.u32 %v2027, 7
        %v2029 = vsub.s32 2, %v2028
        %v2030 = vrot.slane %v1917, %v2029
        %v2031 = vadd.f32 %v2026, %v2030
        %2032 = vrot.lane.b32.xlu0 %v1915, 32
        %v2033 = vpop.permute.xlu0 %2032
        %v2035 = vsel %vm1531, %v2033, 0.0
        %2036 = vadd.xlane.f32.xlu0 %v2035
        %v2037 = vpop.xlane.xlu0 %2036
        %v2038 = vmul.f32 %v2037, %v1921
        %v2039 = vsub.f32 %v1915, %v2038
        %v2040 = vmul.f32 %v2039, %v2039
        %2042 = vrot.lane.b32.xlu0 %v2040, 32
        %v2043 = vpop.permute.xlu0 %2042
        %v2045 = vsel %vm1531, %v2043, 0.0
        %2046 = vadd.xlane.f32.xlu0 %v2045
        %v2047 = vpop.xlane.xlu0 %2046
        %v2048 = vmul.f32 %v2047, 0.032258064
        %v2049 = vrsqrt.pop %v2048
        %v2050 = vmul.f32 %v2048, %v2049
        %vm2051 = vcmp.eq.f32.partialorder %v2048, inf
        %v2052 = vsel %vm2051, %v2048, %v2050
        %vm2053 = vcmp.eq.f32.partialorder %v2048, 0.0
        %v2054 = vand.u32 %v2048, 2147483648
        %v2055 = vsel %vm2053, %v2054, %v2052
        %v2056 = vadd.f32 %v2055, 1e-06
        %v2057 = vrcp.pop %v2056
        %v2058 = vlaneseq
        %v2059 = vshrl.u32 %v2058, 7
        %v2060 = vsub.s32 3, %v2059
        %v2061 = vrot.slane %v1916, %v2060
        %2063 = vrot.lane.b32.xlu0 %v2039, 32
        %v2064 = vpop.permute.xlu0 %2063
        %v2066 = vmul.f32 %v2061, %v2064
        %v2067 = vmul.f32 %v2066, %v2057
        %v2068 = vlaneseq
        %v2069 = vshrl.u32 %v2068, 7
        %v2070 = vsub.s32 3, %v2069
        %v2071 = vrot.slane %v1917, %v2070
        %v2072 = vadd.f32 %v2067, %v2071
        %v2073 = vxor.u32 %v1990, 2147483648
        %v2074 = vmul.f32 %v2073, 1.442695
        %v2075 = vpow.pop %v2074
        %v2076 = vadd.f32 %v2075, 1.0
        %v2077 = vrcp.pop %v2076
        %v2078 = vmul.f32 1.0, %v2077
        %v2079 = vmul.f32 %v1161, %v2078
        %v2080 = vtanh.pop %v2031
        %v2081 = vxor.u32 %v1948, 2147483648
        %v2082 = vmul.f32 %v2081, 1.442695
        %v2083 = vpow.pop %v2082
        %v2084 = vadd.f32 %v2083, 1.0
        %v2085 = vrcp.pop %v2084
        %v2086 = vmul.f32 1.0, %v2085
        %v2087 = vmul.f32 %v2080, %v2086
        %v2088 = vadd.f32 %v2079, %v2087
        %v2089 = vld [vmem:[%s43] sm:$0x1]
        %v2090 = vld [vmem:[%s45] sm:$0x1]
        %v2091 = vsel %vm1531, %v2088, 0.0
        %2092 = vadd.xlane.f32.xlu0 %v2091
        %v2093 = vpop.xlane.xlu0 %2092
        %v2094 = vmul.f32 %v2093, %v1921
        %v2095 = vsub.f32 %v2088, %v2094
        %v2096 = vmul.f32 %v2095, %v2095
        %v2097 = vsel %vm1531, %v2096, 0.0
        %2098 = vadd.xlane.f32.xlu0 %v2097
        %v2099 = vpop.xlane.xlu0 %2098
        %v2100 = vmul.f32 %v2099, 0.032258064
        %v2101 = vrsqrt.pop %v2100
        %v2102 = vmul.f32 %v2100, %v2101
        %vm2103 = vcmp.eq.f32.partialorder %v2100, inf
        %v2104 = vsel %vm2103, %v2100, %v2102
        %vm2105 = vcmp.eq.f32.partialorder %v2100, 0.0
        %v2106 = vand.u32 %v2100, 2147483648
        %v2107 = vsel %vm2105, %v2106, %v2104
        %v2108 = vadd.f32 %v2107, 1e-06
        %v2109 = vrcp.pop %v2108
        %v2111 = vlaneseq
        %v2112 = vshrl.u32 %v2111, 7
        %v2113 = vsub.s32 0, %v2112
        %v2114 = vrot.slane %v2089, %v2113
        %v2116 = vmul.f32 %v2114, %v2095
        %v2117 = vmul.f32 %v2116, %v2109
        %v2119 = vlaneseq
        %v2120 = vshrl.u32 %v2119, 7
        %v2121 = vsub.s32 0, %v2120
        %v2122 = vrot.slane %v2090, %v2121
        %v2124 = vadd.f32 %v2117, %v2122
        %v2125 = vtanh.pop %v2124
        %v2126 = vxor.u32 %v2072, 2147483648
        %v2127 = vmul.f32 %v2126, 1.442695
        %v2128 = vpow.pop %v2127
        %v2129 = vadd.f32 %v2128, 1.0
        %v2130 = vrcp.pop %v2129
        %v2131 = vmul.f32 1.0, %v2130
        %v2132 = vmul.f32 %v2125, %v2131
        %v2133 = vld [vmem:[%s47] sm:$0xff]
        %v2134 = vld [vmem:[%s47 + $0x8] sm:$0xff]
        %v2135 = vld [vmem:[%s47 + $0x10] sm:$0xff]
        %v2136 = vld [vmem:[%s47 + $0x18] sm:$0xff]
        %v2137 = vld [vmem:[%s49] sm:$0x1]
        %v2139 = vlaneseq
        %v2140 = vshrl.u32 %v2139, 7
        %v2141 = vsub.s32 0, %v2140
        %v2142 = vrot.slane %v2137, %v2141
        %v2145 = vsel %vm1531, %v2132, 0
        %2147 = vmatprep.subr.mxu0 0.0
        %2148 = vmatpush1.msra.mxu0 0.0
        %2149 = vmatprep.subr.mxu0 0.0
        %2150 = vmatpush1.msra.mxu0 0.0
        %2151 = vmatprep.subr.mxu0 0.0
        %2152 = vmatpush1.msra.mxu0 0.0
        %2153 = vmatprep.subr.mxu0 0.0
        %2154 = vmatpush1.msra.mxu0 0.0
        %2155 = vmatprep.subr.mxu0 0.0
        %2156 = vmatpush1.msra.mxu0 0.0
        %2157 = vmatprep.subr.mxu0 0.0
        %2158 = vmatpush1.msra.mxu0 0.0
        %2159 = vmatprep.subr.mxu0 0.0
        %2160 = vmatpush1.msra.mxu0 0.0
        %2161 = vmatprep.subr.mxu0 0.0
        %2162 = vmatpush1.msra.mxu0 0.0
        %2163 = vmatprep.subr.mxu0 0.0
        %2164 = vmatpush1.msra.mxu0 0.0
        %2165 = vmatprep.subr.mxu0 0.0
        %2166 = vmatpush1.msra.mxu0 0.0
        %2167 = vmatprep.subr.mxu0 0.0
        %2168 = vmatpush1.msra.mxu0 0.0
        %2169 = vmatprep.subr.mxu0 0.0
        %2170 = vmatpush1.msra.mxu0 0.0
        %2171 = vmatprep.subr.mxu0 0.0
        %2172 = vmatpush1.msra.mxu0 %v2136
        %2173 = vmatprep.subr.mxu0 0.0
        %2174 = vmatpush1.msra.mxu0 %v2135
        %2175 = vmatprep.subr.mxu0 0.0
        %2176 = vmatpush1.msra.mxu0 %v2134
        %2177 = vmatprep.subr.mxu0 0.0
        %2178 = vmatpush1.msra.mxu0 %v2133
        %2179 = vmatprep.subr.mxu0 0.0
        %2180 = vmatpush2.msra.mxu0 0.0
        %2181 = vmatprep.subr.mxu0 0.0
        %2182 = vmatpush2.msra.mxu0 0.0
        %2183 = vmatprep.subr.mxu0 0.0
        %2184 = vmatpush2.msra.mxu0 0.0
        %2185 = vmatprep.subr.mxu0 0.0
        %2186 = vmatpush2.msra.mxu0 0.0
        %2187 = vmatprep.subr.mxu0 0.0
        %2188 = vmatpush2.msra.mxu0 0.0
        %2189 = vmatprep.subr.mxu0 0.0
        %2190 = vmatpush2.msra.mxu0 0.0
        %2191 = vmatprep.subr.mxu0 0.0
        %2192 = vmatpush2.msra.mxu0 0.0
        %2193 = vmatprep.subr.mxu0 0.0
        %2194 = vmatpush2.msra.mxu0 0.0
        %2195 = vmatprep.subr.mxu0 0.0
        %2196 = vmatpush2.msra.mxu0 0.0
        %2197 = vmatprep.subr.mxu0 0.0
        %2198 = vmatpush2.msra.mxu0 0.0
        %2199 = vmatprep.subr.mxu0 0.0
        %2200 = vmatpush2.msra.mxu0 0.0
        %2201 = vmatprep.subr.mxu0 0.0
        %2202 = vmatpush2.msra.mxu0 0.0
        %2203 = vmatprep.subr.mxu0 0.0
        %2204 = vmatpush2.msra.mxu0 0.0
        %2205 = vmatprep.subr.mxu0 0.0
        %2206 = vmatpush2.msra.mxu0 0.0
        %2207 = vmatprep.subr.mxu0 0.0
        %2208 = vmatpush2.msra.mxu0 0.0
        %2209 = vmatprep.subr.mxu0 0.0
        %2210 = vmatpush2.msra.mxu0 0.0
        %2211 = vmatprep.mubr.f32.mxu0 0.0
        %2212 = vmatmul.mubr.f32.gmra.mxu0 %v2145
        %v2213 = vpop.f32.mrf.mxu0
        %v2214 = vadd.f32 %v2142, %v2213
        %v2215 = vpop.f32.mrf.mxu0
        %2216 = vdwg.mxu0
        %vm2217 = vcmask 130048
        %2218 = vst.msk [vmem:[%s1137] sm:$0xff] %vm2217, %v2214
        %2219 = vst.msk [vmem:[#allocation2] sm:$0xff] %vm1531, %v2132
        %2220 = vst.msk [vmem:[#allocation3] sm:$0xff] %vm1531, %v2124
        %2222 = vst.msk [vmem:[#allocation4] sm:$0xff] %vm1531, %v1752
        %2224 = vrot.lane.b32.xlu0 %v1714, 96
        %v2225 = vpop.permute.xlu0 %2224
        %2227 = vst.msk [vmem:[#allocation5] sm:$0xff] %vm1531, %v2225
        %p2228 = scmp.eq.s32.totalorder %s88, 7
        // Predicated region
        $region201: #{tpu_custom_call.1} parent=119 // pred_check
          %p2229 = pneg %p2228
        $region202: #{tpu_custom_call.1} parent=119 // pred_check_branch
          %2231 = sbr.rel (%p2229) target = $region204
        $region203: #{tpu_custom_call.1} parent=119 // pred_region
          %2232 = vst.msk [vmem:[#allocation37] sm:$0xff] %vm1531, %v2132
          %2233 = vst.msk [vmem:[#allocation39] sm:$0xff] %vm1531, %v2124
          %2234 = vst.msk [vmem:[#allocation40] sm:$0xff] %vm1531, %v1752
          %2235 = vst.msk [vmem:[#allocation42] sm:$0xff] %vm1531, %v2225
        $region204: #{tpu_custom_call.1} parent=119 // pred_fallthru
          _
        %s2236 = sand.u32 %s626, 1
        %s2237 = scalar_lea.sflag [#allocation8], %s2236
        %s2238 = sand.u32 %s626, 1
        %s2239 = smul.addr %s2238, 8
        %s2240 = scalar_lea.vmem [#allocation36], %s2239
        // Predicated region
        $region205: #{tpu_custom_call.1} parent=119 // pred_check
          %p2241 = pneg %p636
        $region206: #{tpu_custom_call.1} parent=119 // pred_check_branch
          %2243 = sbr.rel (%p2241) target = $region208
        $region207: #{tpu_custom_call.1} parent=119 // pred_region
          %s2245 = ssub.s32 128, 128
          %2246 = vsyncadd %s2237, %s2245
          %s2247 = smul.addr %s88, 128
          %s2248 = scalar_lea.hbm %s51, %s2247
          %s2250 = sshll.u32 %s2240, 4
          %s2251 = int_to_ptr.vmem [resolvable:$true] %s2250
          %2253 = dma.vmem_to_hbm [thread:$0]  %s2251, 128, %s2248, %s2237
        $region208: #{tpu_custom_call.1} parent=119 // pred_fallthru
          _
        // Predicated region
        $region209: #{tpu_custom_call.1} parent=119 // pred_check
          %p2254 = pneg %p657
        $region210: #{tpu_custom_call.1} parent=119 // pred_check_branch
          %2256 = sbr.rel (%p2254) target = $region212
        $region211: #{tpu_custom_call.1} parent=119 // pred_region
          %s2258 = ssub.s32 128, 128
          %2259 = vsyncadd [#allocation38], %s2258
          %s2261 = sshll.u32 [#allocation37], 4
          %s2262 = int_to_ptr.vmem [resolvable:$true] %s2261
          %2264 = dma.vmem_to_hbm [thread:$0]  %s2262, 128, %s53, [#allocation38]
        $region212: #{tpu_custom_call.1} parent=119 // pred_fallthru
          _
        // Predicated region
        $region213: #{tpu_custom_call.1} parent=119 // pred_check
          %p2265 = pneg %p678
        $region214: #{tpu_custom_call.1} parent=119 // pred_check_branch
          %2267 = sbr.rel (%p2265) target = $region216
        $region215: #{tpu_custom_call.1} parent=119 // pred_region
          %s2269 = ssub.s32 128, 128
          %2270 = vsyncadd [#allocation38], %s2269
          %s2272 = sshll.u32 [#allocation39], 4
          %s2273 = int_to_ptr.vmem [resolvable:$true] %s2272
          %2275 = dma.vmem_to_hbm [thread:$0]  %s2273, 128, %s55, [#allocation38]
        $region216: #{tpu_custom_call.1} parent=119 // pred_fallthru
          _
        // Predicated region
        $region217: #{tpu_custom_call.1} parent=119 // pred_check
          %p2276 = pneg %p699
        $region218: #{tpu_custom_call.1} parent=119 // pred_check_branch
          %2278 = sbr.rel (%p2276) target = $region220
        $region219: #{tpu_custom_call.1} parent=119 // pred_region
          %s2280 = ssub.s32 128, 128
          %2281 = vsyncadd [#allocation41], %s2280
          %s2283 = sshll.u32 [#allocation40], 4
          %s2284 = int_to_ptr.vmem [resolvable:$true] %s2283
          %2286 = dma.vmem_to_hbm [thread:$0]  %s2284, 128, %s57, [#allocation41]
        $region220: #{tpu_custom_call.1} parent=119 // pred_fallthru
          _
        // Predicated region
        $region221: #{tpu_custom_call.1} parent=119 // pred_check
          %p2287 = pneg %p720
        $region222: #{tpu_custom_call.1} parent=119 // pred_check_branch
          %2289 = sbr.rel (%p2287) target = $region224
        $region223: #{tpu_custom_call.1} parent=119 // pred_region
          %s2291 = ssub.s32 128, 128
          %2292 = vsyncadd [#allocation41], %s2291
          %s2294 = sshll.u32 [#allocation42], 4
          %s2295 = int_to_ptr.vmem [resolvable:$true] %s2294
          %2297 = dma.vmem_to_hbm [thread:$0]  %s2295, 128, %s59, [#allocation41]
        $region224: #{tpu_custom_call.1} parent=119 // pred_fallthru
          _
        // Predicated region
        $region225: #{tpu_custom_call.1} parent=119 // pred_check
          %p2298 = pneg %p657
        $region226: #{tpu_custom_call.1} parent=119 // pred_check_branch
          %2300 = sbr.rel (%p2298) target = $region228
        $region227: #{tpu_custom_call.1} parent=119 // pred_region
          %2301 = dma.done [#allocation38], 128
        $region228: #{tpu_custom_call.1} parent=119 // pred_fallthru
          _
        // Predicated region
        $region229: #{tpu_custom_call.1} parent=119 // pred_check
          %p2302 = pneg %p678
        $region230: #{tpu_custom_call.1} parent=119 // pred_check_branch
          %2304 = sbr.rel (%p2302) target = $region232
        $region231: #{tpu_custom_call.1} parent=119 // pred_region
          %2305 = dma.done [#allocation38], 128
        $region232: #{tpu_custom_call.1} parent=119 // pred_fallthru
          _
        // Predicated region
        $region233: #{tpu_custom_call.1} parent=119 // pred_check
          %p2306 = pneg %p699
        $region234: #{tpu_custom_call.1} parent=119 // pred_check_branch
          %2308 = sbr.rel (%p2306) target = $region236
        $region235: #{tpu_custom_call.1} parent=119 // pred_region
          %2309 = dma.done [#allocation41], 128
        $region236: #{tpu_custom_call.1} parent=119 // pred_fallthru
          _
        // Predicated region
        $region237: #{tpu_custom_call.1} parent=119 // pred_check
          %p2310 = pneg %p720
        $region238: #{tpu_custom_call.1} parent=119 // pred_check_branch
          %2312 = sbr.rel (%p2310) target = $region240
        $region239: #{tpu_custom_call.1} parent=119 // pred_region
          %2313 = dma.done [#allocation41], 128
        $region240: #{tpu_custom_call.1} parent=119 // pred_fallthru
          _
      $region120: #{tpu_custom_call.1} parent=5 // pred_fallthru
        _
      %p2314 = scmp.le.s32.totalorder 2, %s83
      // Predicated region
      $region241: #{tpu_custom_call.1} parent=5 // pred_check
        %p2315 = pneg %p2314
      $region242: #{tpu_custom_call.1} parent=5 // pred_check_branch
        %2317 = sbr.rel (%p2315) target = $region244
      $region243: #{tpu_custom_call.1} parent=5 // pred_region
        %s2318 = ssub.s32 %s83, 2
        // Predicated region
        $region245: #{tpu_custom_call.1} parent=243 // pred_check
          %p2319 = pneg %p642
        $region246: #{tpu_custom_call.1} parent=243 // pred_check_branch
          %2321 = sbr.rel (%p2319) target = $region248
        $region247: #{tpu_custom_call.1} parent=243 // pred_region
          %s2322 = sand.u32 %s627, 1
          %s2323 = scalar_lea.sflag [#allocation8], %s2322
          %s2324 = sand.u32 %s627, 1
          %s2325 = smul.addr %s2324, 8
          %s2326 = scalar_lea.vmem [#allocation36], %s2325
          %2327 = dma.done %s2323, 128
        $region248: #{tpu_custom_call.1} parent=243 // pred_fallthru
          _
      $region244: #{tpu_custom_call.1} parent=5 // pred_fallthru
        _
    $region6: #{tpu_custom_call.1} parent=1 // loop_footer
      %s87 = sadd.s32 1, %s83
    $region7: #{tpu_custom_call.1} parent=1 // loop_footer_branch
      %82 = sbr.rel target = $region3
    $region8: #{tpu_custom_call.1} parent=1 // loop_exit
      _
    %2328 = vsyncpa [#allocation7], 1
    %s2329 = scalar_lea.sflag [#allocation7], 1
    %2330 = vsyncpa %s2329, 1
    %2331 = vsyncpa [#allocation10], 1
    %2332 = vsyncpa [#allocation13], 1
    %2333 = vsyncpa [#allocation16], 1
    %2334 = vsyncpa [#allocation19], 1
    %2335 = vsyncpa [#allocation22], 1
    %2336 = vsyncpa [#allocation25], 1
    %2337 = vsyncpa [#allocation28], 1
    %2338 = vsyncpa [#allocation31], 1
    %2339 = vsyncpa [#allocation34], 1
    %2340 = vsyncpa [#allocation8], 1
    %s2341 = scalar_lea.sflag [#allocation8], 1
    %2342 = vsyncpa %s2341, 1
    %2343 = vsyncpa [#allocation38], 1
    %2344 = vsyncpa [#allocation41], 1

</llo_original>
